<compile_context>
chip_gen: v7x
topology: tpu7x:2x2x1
jax: 0.10.0
libtpu: 0.0.40
codegen_flags: <defaults>
</compile_context>

<pallas_src>
import numpy as np
import jax
import jax.numpy as jnp
from jax import lax
from jax.experimental import pallas as pl
from jax.experimental.pallas import tpu as pltpu


def _pick_block_b(B):
    # Batch as many images per grid step as possible (amortize the ~0.35 us
    # per-step overhead, grow matmul M, densify the output store). For larger
    # batches keep >= 2 grid steps so dimension_semantics=("parallel",) can
    # shard steps across v7x's two TensorCores.
    if B <= 8:
        return B
    for cand in range(8, 0, -1):
        if B % cand == 0:
            return cand
    return 1


def image_encoder(x, w1_taps, b1, w2_taps, b2, w3, b3):
    """Forward pass of ImageEncoder.

    x       : [B, 3, H, W]   (NCHW, like the PyTorch module)
    w1_taps : [9, 3, 16]     conv1 weights, tap-major (t = 3*dy + dx), [Cin, Cout] per tap
    b1      : [1, 16]
    w2_taps : [9, 16, 32]
    b2      : [1, 32]
    w3      : [32, 32]       final Linear stored as [in, out]
    b3      : [1, 32]
    returns : [B, 32]
    """
    if x.dtype != w1_taps.dtype:          # mirrors the module's dtype cast
        x = x.astype(w1_taps.dtype)

    B, C0, H, W = x.shape
    C1 = w1_taps.shape[-1]
    C2 = w2_taps.shape[-1]
    C3 = w3.shape[-1]
    assert H % 2 == 0 and W % 2 == 0

    Bblk = _pick_block_b(B)
    n_blocks = B // Bblk

    HW = H * W                             # conv1 output rows per image
    H2, W2 = H // 2, W // 2                # pooled spatial dims
    WP2 = W2 + 2                           # padded pooled width
    NB2 = H2 * WP2                         # conv2 output rows per image (padded width)
    S2R = (H2 + 2) * WP2 + 2               # padded pooled image rows per image (+2 guards)
    K1 = 9 * C0                            # im2col contraction dim for conv1
    ROWS1 = Bblk * HW                      # conv1 matmul M per grid step
    LV = ROWS1 - W                         # rows after vertical (y / y+1) max
    LH = LV - 1                            # rows after horizontal (x / x+1) max
    L2 = (Bblk - 1) * S2R + NB2            # conv2 matmul M over the stacked slab

    def kernel(x_ref, w1_ref, b1_ref, w2_ref, b2_ref, msel_ref, w3_ref, b3_ref,
               o_ref, hm_ref, s2_ref):
        # ---- conv1: one im2col matmul (K = 27) + bias + ReLU, value form ----
        h1 = jnp.dot(x_ref[...], w1_ref[...], preferred_element_type=jnp.float32)
        h1 = jnp.maximum(h1 + b1_ref[...], 0.0)              # [ROWS1, C1]

        # ---- maxpool 2x2 stride 2 ----
        # Rows are (image, y, x)-major, so the vertical neighbour of row r is
        # r + W and the horizontal neighbour is r + 1. Full-slab shifted maxima
        # on values (VPU + one sublane shift each), then a single stride-2
        # downselect per pooled row. Only rows with even y and even x are
        # consumed, so the shifted garbage rows never matter.
        vm = jnp.maximum(h1[:LV, :], h1[W:, :])               # valid at even-y rows
        hm = jnp.maximum(vm[:LH, :], vm[1:, :])               # valid at even-x rows
        hm_ref[...] = hm                                      # one dense store

        # Scatter pooled rows into the zero-padded, flattened pooled images
        # (per-image guard layout so conv2 taps are static row shifts).
        s2_ref[...] = jnp.zeros_like(s2_ref)
        for b in range(Bblk):
            for py in range(H2):
                src = b * HW + 2 * py * W                     # even-y, x = 0 row
                dst = b * S2R + (py + 1) * WP2 + 2            # interior row start
                s2_ref[dst:dst + W2, :] = hm_ref[pl.ds(src, W2, stride=2), :]

        # ---- conv2 (3x3, pad 1): 9 row-shifted matmuls over the whole stacked
        #      slab, value-form accumulation (no scratch round trips) ----
        acc2 = jnp.zeros((L2, C2), jnp.float32)
        for t in range(9):
            dy, dx = divmod(t, 3)
            start = dy * WP2 + dx                             # static shift
            acc2 = acc2 + jnp.dot(s2_ref[start:start + L2, :], w2_ref[t],
                                  preferred_element_type=jnp.float32)
        h2 = jnp.maximum(acc2 + b2_ref[...], 0.0)             # [L2, C2]

        # ---- global average pool (per-image masked selection matmul; also
        #      drops padded-border and inter-image slack rows) + Linear ----
        pooled = jnp.dot(msel_ref[...], h2,
                         preferred_element_type=jnp.float32)  # [Bblk, C2]
        y = jnp.dot(pooled, w3_ref[...],
                    preferred_element_type=jnp.float32) + b3_ref[...]
        o_ref[...] = y.astype(o_ref.dtype)                    # dense (Bblk, C3) store

    # --- wrapper-side layout plumbing (no compute hoisted out of the kernel) ---
    # im2col for conv1: NCHW -> NHWC, zero-pad 1 pixel, gather the 9 taps into
    # the lane dim -> [B*H*W, 27] (tap-major, matching w1_taps order).
    x_nhwc = jnp.transpose(x, (0, 2, 3, 1))
    xp = jnp.pad(x_nhwc, ((0, 0), (1, 1), (1, 1), (0, 0)))
    patches = [xp[:, dy:dy + H, dx:dx + W, :] for dy in range(3) for dx in range(3)]
    x_col = jnp.concatenate(patches, axis=-1).reshape(B * HW, K1)
    w1_col = w1_taps.reshape(K1, C1)

    # Constant avg-pool selection matrix: row b holds 1/(H2*W2) at the interior
    # columns of image b's conv2 output rows inside the stacked slab.
    msel_np = np.zeros((Bblk, L2), np.float32)
    for b in range(Bblk):
        for k in range(NB2):
            if 1 <= (k % WP2) <= W2:
                msel_np[b, b * S2R + k] = 1.0 / (H2 * W2)
    msel = jnp.asarray(msel_np)

    flops_per_step = (2 * ROWS1 * K1 * C1 + 9 * 2 * L2 * C1 * C2
                      + 2 * Bblk * L2 * C2 + 2 * Bblk * C2 * C3)
    bytes_accessed = 4 * (x_col.size + w1_col.size + b1.size + w2_taps.size
                          + b2.size + msel.size + w3.size + b3.size + B * C3)

    out = pl.pallas_call(
        kernel,
        out_shape=jax.ShapeDtypeStruct((B, C3), w1_taps.dtype),
        grid=(n_blocks,),
        in_specs=[
            pl.BlockSpec((ROWS1, K1), lambda i: (i, 0)),      # im2col input slab
            pl.BlockSpec((K1, C1), lambda i: (0, 0)),         # conv1 weight
            pl.BlockSpec((1, C1), lambda i: (0, 0)),          # conv1 bias
            pl.BlockSpec((9, C1, C2), lambda i: (0, 0, 0)),   # conv2 taps
            pl.BlockSpec((1, C2), lambda i: (0, 0)),          # conv2 bias
            pl.BlockSpec((Bblk, L2), lambda i: (0, 0)),       # avg-pool selection
            pl.BlockSpec((C2, C3), lambda i: (0, 0)),         # linear weight
            pl.BlockSpec((1, C3), lambda i: (0, 0)),          # linear bias
        ],
        out_specs=pl.BlockSpec((Bblk, C3), lambda i: (i, 0)),
        scratch_shapes=[
            pltpu.VMEM((LH, C1), jnp.float32),                # 2x2-max candidate slab
            pltpu.VMEM((Bblk * S2R, C1), jnp.float32),        # padded pooled images
        ],
        compiler_params=pltpu.CompilerParams(
            dimension_semantics=("parallel",)),
        cost_estimate=pl.CostEstimate(flops=flops_per_step * n_blocks,
                                      transcendentals=0,
                                      bytes_accessed=bytes_accessed),
    )(x_col, w1_col, b1, w2_taps, b2, msel, w3, b3)
    return out


def reference(x, w1_taps, b1, w2_taps, b2, w3, b3):
    """Plain-JAX reference (highest precision) with the same math as PyTorch."""
    B, C0, H, W = x.shape
    C1 = w1_taps.shape[-1]
    C2 = w2_taps.shape[-1]
    hp = lax.Precision.HIGHEST
    w1_hwio = w1_taps.reshape(3, 3, C0, C1)
    w2_hwio = w2_taps.reshape(3, 3, C1, C2)
    y = jnp.transpose(x, (0, 2, 3, 1))                               # NHWC
    y = lax.conv_general_dilated(y, w1_hwio, (1, 1), "SAME",
                                 dimension_numbers=("NHWC", "HWIO", "NHWC"),
                                 precision=hp)
    y = jnp.maximum(y + b1.reshape(1, 1, 1, -1), 0.0)
    y = y.reshape(B, H // 2, 2, W // 2, 2, C1).max(axis=(2, 4))      # MaxPool2d(2)
    y = lax.conv_general_dilated(y, w2_hwio, (1, 1), "SAME",
                                 dimension_numbers=("NHWC", "HWIO", "NHWC"),
                                 precision=hp)
    y = jnp.maximum(y + b2.reshape(1, 1, 1, -1), 0.0)
    y = jnp.mean(y, axis=(1, 2))                          # AdaptiveAvgPool2d + Flatten
    return jnp.dot(y, w3, precision=hp) + b3              # Linear(32, 32)


if __name__ == "__main__":
    B, C_IN, H, W = 2, 3, 16, 16
    key = jax.random.PRNGKey(0)
    k_x, k_w1, k_b1, k_w2, k_b2, k_w3, k_b3 = jax.random.split(key, 7)

    x = jax.random.normal(k_x, (B, C_IN, H, W), dtype=jnp.float32)
    w1_taps = jax.random.normal(k_w1, (9, 3, 16), dtype=jnp.float32) * 0.1
    b1 = jax.random.normal(k_b1, (1, 16), dtype=jnp.float32) * 0.1
    w2_taps = jax.random.normal(k_w2, (9, 16, 32), dtype=jnp.float32) * 0.05
    b2 = jax.random.normal(k_b2, (1, 32), dtype=jnp.float32) * 0.05
    w3 = jax.random.normal(k_w3, (32, 32), dtype=jnp.float32) * 0.1
    b3 = jax.random.normal(k_b3, (1, 32), dtype=jnp.float32) * 0.1

    out = image_encoder(x, w1_taps, b1, w2_taps, b2, w3, b3)
    jax.block_until_ready(out)

    ref = reference(x, w1_taps, b1, w2_taps, b2, w3, b3)
    assert out.shape == (B, 32)
    err = float(jnp.max(jnp.abs(out - ref)))
    # Kernel matmuls run at default MXU precision (single bf16 pass) with f32
    # accumulation, per the perf review; tolerance sized accordingly.
    assert jnp.allclose(out, ref, atol=2e-2, rtol=2e-2), f"max abs err = {err}"

    print("KERNEL_OK")
</pallas_src>

<mosaic_0001>
module attributes {stable_mosaic.version = 11 : i64} {
  func.func @kernel(%arg0: i32, %arg1: memref<512x27xf32, #tpu.memory_space<vmem>>, %arg2: memref<27x16xf32, #tpu.memory_space<vmem>>, %arg3: memref<1x16xf32, #tpu.memory_space<vmem>>, %arg4: memref<9x16x32xf32, #tpu.memory_space<vmem>>, %arg5: memref<1x32xf32, #tpu.memory_space<vmem>>, %arg6: memref<2x182xf32, #tpu.memory_space<vmem>>, %arg7: memref<32x32xf32, #tpu.memory_space<vmem>>, %arg8: memref<1x32xf32, #tpu.memory_space<vmem>>, %arg9: memref<2x32xf32, #tpu.memory_space<vmem>>, %arg10: memref<495x16xf32, #tpu.memory_space<vmem>>, %arg11: memref<204x16xf32, #tpu.memory_space<vmem>>) attributes {dimension_semantics = [#tpu.dimension_semantics<parallel>], iteration_bounds = array<i64: 1>, scalar_prefetch = 0 : i64, scratch_operands = 2 : i64, tpu.core_type = #tpu.core_type<tc>, window_params = [{transform_indices = @transform_0, window_bounds = array<i64: 512, 27>}, {pipeline_mode = #tpu.pipeline_mode<synchronous>, transform_indices = @transform_1, window_bounds = array<i64: 27, 16>}, {pipeline_mode = #tpu.pipeline_mode<synchronous>, transform_indices = @transform_2, window_bounds = array<i64: 1, 16>}, {pipeline_mode = #tpu.pipeline_mode<synchronous>, transform_indices = @transform_3, window_bounds = array<i64: 9, 16, 32>}, {pipeline_mode = #tpu.pipeline_mode<synchronous>, transform_indices = @transform_4, window_bounds = array<i64: 1, 32>}, {pipeline_mode = #tpu.pipeline_mode<synchronous>, transform_indices = @transform_5, window_bounds = array<i64: 2, 182>}, {pipeline_mode = #tpu.pipeline_mode<synchronous>, transform_indices = @transform_6, window_bounds = array<i64: 32, 32>}, {pipeline_mode = #tpu.pipeline_mode<synchronous>, transform_indices = @transform_7, window_bounds = array<i64: 1, 32>}, {transform_indices = @transform_8, window_bounds = array<i64: 2, 32>}]} {
    %c0 = arith.constant 0 : index
    %c0_0 = arith.constant 0 : index
    %0 = vector.load %arg1[%c0, %c0_0] : memref<512x27xf32, #tpu.memory_space<vmem>>, vector<512x27xf32>
    %c0_1 = arith.constant 0 : index
    %c0_2 = arith.constant 0 : index
    %1 = vector.load %arg2[%c0_1, %c0_2] : memref<27x16xf32, #tpu.memory_space<vmem>>, vector<27x16xf32>
    %cst = arith.constant dense<0.000000e+00> : vector<512x16xf32>
    %2 = tpu.matmul %0, %1, %cst {dimension_numbers = #tpu.dot_dimension_numbers<[1], [0], [0], [1], [0, 0, 1, 1], [], []>} : vector<512x27xf32>, vector<27x16xf32>, vector<512x16xf32> -> vector<512x16xf32>
    %c0_3 = arith.constant 0 : index
    %c0_4 = arith.constant 0 : index
    %3 = vector.load %arg3[%c0_3, %c0_4] : memref<1x16xf32, #tpu.memory_space<vmem>>, vector<1x16xf32>
    %4 = vector.broadcast %3 : vector<1x16xf32> to vector<512x16xf32>
    %5 = arith.addf %2, %4 : vector<512x16xf32>
    %cst_5 = arith.constant 0.000000e+00 : f32
    %6 = vector.broadcast %cst_5 : f32 to vector<512x16xf32>
    %7 = arith.maximumf %5, %6 : vector<512x16xf32>
    %8 = vector.extract_strided_slice %7 {offsets = [0, 0], sizes = [496, 16], strides = [1, 1]} : vector<512x16xf32> to vector<496x16xf32>
    %9 = vector.extract_strided_slice %7 {offsets = [16, 0], sizes = [496, 16], strides = [1, 1]} : vector<512x16xf32> to vector<496x16xf32>
    %10 = arith.maximumf %8, %9 : vector<496x16xf32>
    %11 = vector.extract_strided_slice %10 {offsets = [0, 0], sizes = [495, 16], strides = [1, 1]} : vector<496x16xf32> to vector<495x16xf32>
    %12 = vector.extract_strided_slice %10 {offsets = [1, 0], sizes = [495, 16], strides = [1, 1]} : vector<496x16xf32> to vector<495x16xf32>
    %13 = arith.maximumf %11, %12 : vector<495x16xf32>
    %c0_6 = arith.constant 0 : index
    %c0_7 = arith.constant 0 : index
    %14 = vector.load %arg10[%c0_6, %c0_7] : memref<495x16xf32, #tpu.memory_space<vmem>>, vector<495x16xf32>
    tpu.vector_store %arg10[%c0_6, %c0_7], %13 {strides = array<i32>} : memref<495x16xf32, #tpu.memory_space<vmem>>, vector<495x16xf32>,
    %cst_8 = arith.constant 0.000000e+00 : f32
    %15 = vector.broadcast %cst_8 : f32 to vector<204x16xf32>
    %c0_9 = arith.constant 0 : index
    %c0_10 = arith.constant 0 : index
    %16 = vector.load %arg11[%c0_9, %c0_10] : memref<204x16xf32, #tpu.memory_space<vmem>>, vector<204x16xf32>
    tpu.vector_store %arg11[%c0_9, %c0_10], %15 {strides = array<i32>} : memref<204x16xf32, #tpu.memory_space<vmem>>, vector<204x16xf32>,
    %c0_11 = arith.constant 0 : index
    %c0_12 = arith.constant 0 : index
    %17 = tpu.strided_load %arg10[%c0_11, %c0_12] {strides = array<i32: 2, 1>} : memref<495x16xf32, #tpu.memory_space<vmem>>, vector<8x16xf32>
    %c12 = arith.constant 12 : index
    %c0_13 = arith.constant 0 : index
    %18 = vector.load %arg11[%c12, %c0_13] : memref<204x16xf32, #tpu.memory_space<vmem>>, vector<8x16xf32>
    tpu.vector_store %arg11[%c12, %c0_13], %17 {strides = array<i32>} : memref<204x16xf32, #tpu.memory_space<vmem>>, vector<8x16xf32>,
    %c32 = arith.constant 32 : index
    %c0_14 = arith.constant 0 : index
    %19 = tpu.strided_load %arg10[%c32, %c0_14] {strides = array<i32: 2, 1>} : memref<495x16xf32, #tpu.memory_space<vmem>>, vector<8x16xf32>
    %c22 = arith.constant 22 : index
    %c0_15 = arith.constant 0 : index
    %20 = vector.load %arg11[%c22, %c0_15] : memref<204x16xf32, #tpu.memory_space<vmem>>, vector<8x16xf32>
    tpu.vector_store %arg11[%c22, %c0_15], %19 {strides = array<i32>} : memref<204x16xf32, #tpu.memory_space<vmem>>, vector<8x16xf32>,
    %c64 = arith.constant 64 : index
    %c0_16 = arith.constant 0 : index
    %21 = tpu.strided_load %arg10[%c64, %c0_16] {strides = array<i32: 2, 1>} : memref<495x16xf32, #tpu.memory_space<vmem>>, vector<8x16xf32>
    %c32_17 = arith.constant 32 : index
    %c0_18 = arith.constant 0 : index
    %22 = vector.load %arg11[%c32_17, %c0_18] : memref<204x16xf32, #tpu.memory_space<vmem>>, vector<8x16xf32>
    tpu.vector_store %arg11[%c32_17, %c0_18], %21 {strides = array<i32>} : memref<204x16xf32, #tpu.memory_space<vmem>>, vector<8x16xf32>,
    %c96 = arith.constant 96 : index
    %c0_19 = arith.constant 0 : index
    %23 = tpu.strided_load %arg10[%c96, %c0_19] {strides = array<i32: 2, 1>} : memref<495x16xf32, #tpu.memory_space<vmem>>, vector<8x16xf32>
    %c42 = arith.constant 42 : index
    %c0_20 = arith.constant 0 : index
    %24 = vector.load %arg11[%c42, %c0_20] : memref<204x16xf32, #tpu.memory_space<vmem>>, vector<8x16xf32>
    tpu.vector_store %arg11[%c42, %c0_20], %23 {strides = array<i32>} : memref<204x16xf32, #tpu.memory_space<vmem>>, vector<8x16xf32>,
    %c128 = arith.constant 128 : index
    %c0_21 = arith.constant 0 : index
    %25 = tpu.strided_load %arg10[%c128, %c0_21] {strides = array<i32: 2, 1>} : memref<495x16xf32, #tpu.memory_space<vmem>>, vector<8x16xf32>
    %c52 = arith.constant 52 : index
    %c0_22 = arith.constant 0 : index
    %26 = vector.load %arg11[%c52, %c0_22] : memref<204x16xf32, #tpu.memory_space<vmem>>, vector<8x16xf32>
    tpu.vector_store %arg11[%c52, %c0_22], %25 {strides = array<i32>} : memref<204x16xf32, #tpu.memory_space<vmem>>, vector<8x16xf32>,
    %c160 = arith.constant 160 : index
    %c0_23 = arith.constant 0 : index
    %27 = tpu.strided_load %arg10[%c160, %c0_23] {strides = array<i32: 2, 1>} : memref<495x16xf32, #tpu.memory_space<vmem>>, vector<8x16xf32>
    %c62 = arith.constant 62 : index
    %c0_24 = arith.constant 0 : index
    %28 = vector.load %arg11[%c62, %c0_24] : memref<204x16xf32, #tpu.memory_space<vmem>>, vector<8x16xf32>
    tpu.vector_store %arg11[%c62, %c0_24], %27 {strides = array<i32>} : memref<204x16xf32, #tpu.memory_space<vmem>>, vector<8x16xf32>,
    %c192 = arith.constant 192 : index
    %c0_25 = arith.constant 0 : index
    %29 = tpu.strided_load %arg10[%c192, %c0_25] {strides = array<i32: 2, 1>} : memref<495x16xf32, #tpu.memory_space<vmem>>, vector<8x16xf32>
    %c72 = arith.constant 72 : index
    %c0_26 = arith.constant 0 : index
    %30 = vector.load %arg11[%c72, %c0_26] : memref<204x16xf32, #tpu.memory_space<vmem>>, vector<8x16xf32>
    tpu.vector_store %arg11[%c72, %c0_26], %29 {strides = array<i32>} : memref<204x16xf32, #tpu.memory_space<vmem>>, vector<8x16xf32>,
    %c224 = arith.constant 224 : index
    %c0_27 = arith.constant 0 : index
    %31 = tpu.strided_load %arg10[%c224, %c0_27] {strides = array<i32: 2, 1>} : memref<495x16xf32, #tpu.memory_space<vmem>>, vector<8x16xf32>
    %c82 = arith.constant 82 : index
    %c0_28 = arith.constant 0 : index
    %32 = vector.load %arg11[%c82, %c0_28] : memref<204x16xf32, #tpu.memory_space<vmem>>, vector<8x16xf32>
    tpu.vector_store %arg11[%c82, %c0_28], %31 {strides = array<i32>} : memref<204x16xf32, #tpu.memory_space<vmem>>, vector<8x16xf32>,
    %c256 = arith.constant 256 : index
    %c0_29 = arith.constant 0 : index
    %33 = tpu.strided_load %arg10[%c256, %c0_29] {strides = array<i32: 2, 1>} : memref<495x16xf32, #tpu.memory_space<vmem>>, vector<8x16xf32>
    %c114 = arith.constant 114 : index
    %c0_30 = arith.constant 0 : index
    %34 = vector.load %arg11[%c114, %c0_30] : memref<204x16xf32, #tpu.memory_space<vmem>>, vector<8x16xf32>
    tpu.vector_store %arg11[%c114, %c0_30], %33 {strides = array<i32>} : memref<204x16xf32, #tpu.memory_space<vmem>>, vector<8x16xf32>,
    %c288 = arith.constant 288 : index
    %c0_31 = arith.constant 0 : index
    %35 = tpu.strided_load %arg10[%c288, %c0_31] {strides = array<i32: 2, 1>} : memref<495x16xf32, #tpu.memory_space<vmem>>, vector<8x16xf32>
    %c124 = arith.constant 124 : index
    %c0_32 = arith.constant 0 : index
    %36 = vector.load %arg11[%c124, %c0_32] : memref<204x16xf32, #tpu.memory_space<vmem>>, vector<8x16xf32>
    tpu.vector_store %arg11[%c124, %c0_32], %35 {strides = array<i32>} : memref<204x16xf32, #tpu.memory_space<vmem>>, vector<8x16xf32>,
    %c320 = arith.constant 320 : index
    %c0_33 = arith.constant 0 : index
    %37 = tpu.strided_load %arg10[%c320, %c0_33] {strides = array<i32: 2, 1>} : memref<495x16xf32, #tpu.memory_space<vmem>>, vector<8x16xf32>
    %c134 = arith.constant 134 : index
    %c0_34 = arith.constant 0 : index
    %38 = vector.load %arg11[%c134, %c0_34] : memref<204x16xf32, #tpu.memory_space<vmem>>, vector<8x16xf32>
    tpu.vector_store %arg11[%c134, %c0_34], %37 {strides = array<i32>} : memref<204x16xf32, #tpu.memory_space<vmem>>, vector<8x16xf32>,
    %c352 = arith.constant 352 : index
    %c0_35 = arith.constant 0 : index
    %39 = tpu.strided_load %arg10[%c352, %c0_35] {strides = array<i32: 2, 1>} : memref<495x16xf32, #tpu.memory_space<vmem>>, vector<8x16xf32>
    %c144 = arith.constant 144 : index
    %c0_36 = arith.constant 0 : index
    %40 = vector.load %arg11[%c144, %c0_36] : memref<204x16xf32, #tpu.memory_space<vmem>>, vector<8x16xf32>
    tpu.vector_store %arg11[%c144, %c0_36], %39 {strides = array<i32>} : memref<204x16xf32, #tpu.memory_space<vmem>>, vector<8x16xf32>,
    %c384 = arith.constant 384 : index
    %c0_37 = arith.constant 0 : index
    %41 = tpu.strided_load %arg10[%c384, %c0_37] {strides = array<i32: 2, 1>} : memref<495x16xf32, #tpu.memory_space<vmem>>, vector<8x16xf32>
    %c154 = arith.constant 154 : index
    %c0_38 = arith.constant 0 : index
    %42 = vector.load %arg11[%c154, %c0_38] : memref<204x16xf32, #tpu.memory_space<vmem>>, vector<8x16xf32>
    tpu.vector_store %arg11[%c154, %c0_38], %41 {strides = array<i32>} : memref<204x16xf32, #tpu.memory_space<vmem>>, vector<8x16xf32>,
    %c416 = arith.constant 416 : index
    %c0_39 = arith.constant 0 : index
    %43 = tpu.strided_load %arg10[%c416, %c0_39] {strides = array<i32: 2, 1>} : memref<495x16xf32, #tpu.memory_space<vmem>>, vector<8x16xf32>
    %c164 = arith.constant 164 : index
    %c0_40 = arith.constant 0 : index
    %44 = vector.load %arg11[%c164, %c0_40] : memref<204x16xf32, #tpu.memory_space<vmem>>, vector<8x16xf32>
    tpu.vector_store %arg11[%c164, %c0_40], %43 {strides = array<i32>} : memref<204x16xf32, #tpu.memory_space<vmem>>, vector<8x16xf32>,
    %c448 = arith.constant 448 : index
    %c0_41 = arith.constant 0 : index
    %45 = tpu.strided_load %arg10[%c448, %c0_41] {strides = array<i32: 2, 1>} : memref<495x16xf32, #tpu.memory_space<vmem>>, vector<8x16xf32>
    %c174 = arith.constant 174 : index
    %c0_42 = arith.constant 0 : index
    %46 = vector.load %arg11[%c174, %c0_42] : memref<204x16xf32, #tpu.memory_space<vmem>>, vector<8x16xf32>
    tpu.vector_store %arg11[%c174, %c0_42], %45 {strides = array<i32>} : memref<204x16xf32, #tpu.memory_space<vmem>>, vector<8x16xf32>,
    %c480 = arith.constant 480 : index
    %c0_43 = arith.constant 0 : index
    %47 = tpu.strided_load %arg10[%c480, %c0_43] {strides = array<i32: 2, 1>} : memref<495x16xf32, #tpu.memory_space<vmem>>, vector<8x16xf32>
    %c184 = arith.constant 184 : index
    %c0_44 = arith.constant 0 : index
    %48 = vector.load %arg11[%c184, %c0_44] : memref<204x16xf32, #tpu.memory_space<vmem>>, vector<8x16xf32>
    tpu.vector_store %arg11[%c184, %c0_44], %47 {strides = array<i32>} : memref<204x16xf32, #tpu.memory_space<vmem>>, vector<8x16xf32>,
    %cst_45 = arith.constant 0.000000e+00 : f32
    %49 = vector.broadcast %cst_45 : f32 to vector<182x32xf32>
    %c0_46 = arith.constant 0 : index
    %c0_47 = arith.constant 0 : index
    %50 = vector.load %arg11[%c0_46, %c0_47] : memref<204x16xf32, #tpu.memory_space<vmem>>, vector<182x16xf32>
    %c0_48 = arith.constant 0 : index
    %c0_49 = arith.constant 0 : index
    %c0_50 = arith.constant 0 : index
    %51 = vector.load %arg4[%c0_48, %c0_49, %c0_50] : memref<9x16x32xf32, #tpu.memory_space<vmem>>, vector<1x16x32xf32>
    %52 = vector.shape_cast %51 : vector<1x16x32xf32> to vector<16x32xf32>
    %cst_51 = arith.constant dense<0.000000e+00> : vector<182x32xf32>
    %53 = tpu.matmul %50, %52, %cst_51 {dimension_numbers = #tpu.dot_dimension_numbers<[1], [0], [0], [1], [0, 0, 1, 1], [], []>} : vector<182x16xf32>, vector<16x32xf32>, vector<182x32xf32> -> vector<182x32xf32>
    %54 = arith.addf %49, %53 : vector<182x32xf32>
    %c1 = arith.constant 1 : index
    %c0_52 = arith.constant 0 : index
    %55 = vector.load %arg11[%c1, %c0_52] : memref<204x16xf32, #tpu.memory_space<vmem>>, vector<182x16xf32>
    %c1_53 = arith.constant 1 : index
    %c0_54 = arith.constant 0 : index
    %c0_55 = arith.constant 0 : index
    %56 = vector.load %arg4[%c1_53, %c0_54, %c0_55] : memref<9x16x32xf32, #tpu.memory_space<vmem>>, vector<1x16x32xf32>
    %57 = vector.shape_cast %56 : vector<1x16x32xf32> to vector<16x32xf32>
    %cst_56 = arith.constant dense<0.000000e+00> : vector<182x32xf32>
    %58 = tpu.matmul %55, %57, %cst_56 {dimension_numbers = #tpu.dot_dimension_numbers<[1], [0], [0], [1], [0, 0, 1, 1], [], []>} : vector<182x16xf32>, vector<16x32xf32>, vector<182x32xf32> -> vector<182x32xf32>
    %59 = arith.addf %54, %58 : vector<182x32xf32>
    %c2 = arith.constant 2 : index
    %c0_57 = arith.constant 0 : index
    %60 = vector.load %arg11[%c2, %c0_57] : memref<204x16xf32, #tpu.memory_space<vmem>>, vector<182x16xf32>
    %c2_58 = arith.constant 2 : index
    %c0_59 = arith.constant 0 : index
    %c0_60 = arith.constant 0 : index
    %61 = vector.load %arg4[%c2_58, %c0_59, %c0_60] : memref<9x16x32xf32, #tpu.memory_space<vmem>>, vector<1x16x32xf32>
    %62 = vector.shape_cast %61 : vector<1x16x32xf32> to vector<16x32xf32>
    %cst_61 = arith.constant dense<0.000000e+00> : vector<182x32xf32>
    %63 = tpu.matmul %60, %62, %cst_61 {dimension_numbers = #tpu.dot_dimension_numbers<[1], [0], [0], [1], [0, 0, 1, 1], [], []>} : vector<182x16xf32>, vector<16x32xf32>, vector<182x32xf32> -> vector<182x32xf32>
    %64 = arith.addf %59, %63 : vector<182x32xf32>
    %c10 = arith.constant 10 : index
    %c0_62 = arith.constant 0 : index
    %65 = vector.load %arg11[%c10, %c0_62] : memref<204x16xf32, #tpu.memory_space<vmem>>, vector<182x16xf32>
    %c3 = arith.constant 3 : index
    %c0_63 = arith.constant 0 : index
    %c0_64 = arith.constant 0 : index
    %66 = vector.load %arg4[%c3, %c0_63, %c0_64] : memref<9x16x32xf32, #tpu.memory_space<vmem>>, vector<1x16x32xf32>
    %67 = vector.shape_cast %66 : vector<1x16x32xf32> to vector<16x32xf32>
    %cst_65 = arith.constant dense<0.000000e+00> : vector<182x32xf32>
    %68 = tpu.matmul %65, %67, %cst_65 {dimension_numbers = #tpu.dot_dimension_numbers<[1], [0], [0], [1], [0, 0, 1, 1], [], []>} : vector<182x16xf32>, vector<16x32xf32>, vector<182x32xf32> -> vector<182x32xf32>
    %69 = arith.addf %64, %68 : vector<182x32xf32>
    %c11 = arith.constant 11 : index
    %c0_66 = arith.constant 0 : index
    %70 = vector.load %arg11[%c11, %c0_66] : memref<204x16xf32, #tpu.memory_space<vmem>>, vector<182x16xf32>
    %c4 = arith.constant 4 : index
    %c0_67 = arith.constant 0 : index
    %c0_68 = arith.constant 0 : index
    %71 = vector.load %arg4[%c4, %c0_67, %c0_68] : memref<9x16x32xf32, #tpu.memory_space<vmem>>, vector<1x16x32xf32>
    %72 = vector.shape_cast %71 : vector<1x16x32xf32> to vector<16x32xf32>
    %cst_69 = arith.constant dense<0.000000e+00> : vector<182x32xf32>
    %73 = tpu.matmul %70, %72, %cst_69 {dimension_numbers = #tpu.dot_dimension_numbers<[1], [0], [0], [1], [0, 0, 1, 1], [], []>} : vector<182x16xf32>, vector<16x32xf32>, vector<182x32xf32> -> vector<182x32xf32>
    %74 = arith.addf %69, %73 : vector<182x32xf32>
    %c12_70 = arith.constant 12 : index
    %c0_71 = arith.constant 0 : index
    %75 = vector.load %arg11[%c12_70, %c0_71] : memref<204x16xf32, #tpu.memory_space<vmem>>, vector<182x16xf32>
    %c5 = arith.constant 5 : index
    %c0_72 = arith.constant 0 : index
    %c0_73 = arith.constant 0 : index
    %76 = vector.load %arg4[%c5, %c0_72, %c0_73] : memref<9x16x32xf32, #tpu.memory_space<vmem>>, vector<1x16x32xf32>
    %77 = vector.shape_cast %76 : vector<1x16x32xf32> to vector<16x32xf32>
    %cst_74 = arith.constant dense<0.000000e+00> : vector<182x32xf32>
    %78 = tpu.matmul %75, %77, %cst_74 {dimension_numbers = #tpu.dot_dimension_numbers<[1], [0], [0], [1], [0, 0, 1, 1], [], []>} : vector<182x16xf32>, vector<16x32xf32>, vector<182x32xf32> -> vector<182x32xf32>
    %79 = arith.addf %74, %78 : vector<182x32xf32>
    %c20 = arith.constant 20 : index
    %c0_75 = arith.constant 0 : index
    %80 = vector.load %arg11[%c20, %c0_75] : memref<204x16xf32, #tpu.memory_space<vmem>>, vector<182x16xf32>
    %c6 = arith.constant 6 : index
    %c0_76 = arith.constant 0 : index
    %c0_77 = arith.constant 0 : index
    %81 = vector.load %arg4[%c6, %c0_76, %c0_77] : memref<9x16x32xf32, #tpu.memory_space<vmem>>, vector<1x16x32xf32>
    %82 = vector.shape_cast %81 : vector<1x16x32xf32> to vector<16x32xf32>
    %cst_78 = arith.constant dense<0.000000e+00> : vector<182x32xf32>
    %83 = tpu.matmul %80, %82, %cst_78 {dimension_numbers = #tpu.dot_dimension_numbers<[1], [0], [0], [1], [0, 0, 1, 1], [], []>} : vector<182x16xf32>, vector<16x32xf32>, vector<182x32xf32> -> vector<182x32xf32>
    %84 = arith.addf %79, %83 : vector<182x32xf32>
    %c21 = arith.constant 21 : index
    %c0_79 = arith.constant 0 : index
    %85 = vector.load %arg11[%c21, %c0_79] : memref<204x16xf32, #tpu.memory_space<vmem>>, vector<182x16xf32>
    %c7 = arith.constant 7 : index
    %c0_80 = arith.constant 0 : index
    %c0_81 = arith.constant 0 : index
    %86 = vector.load %arg4[%c7, %c0_80, %c0_81] : memref<9x16x32xf32, #tpu.memory_space<vmem>>, vector<1x16x32xf32>
    %87 = vector.shape_cast %86 : vector<1x16x32xf32> to vector<16x32xf32>
    %cst_82 = arith.constant dense<0.000000e+00> : vector<182x32xf32>
    %88 = tpu.matmul %85, %87, %cst_82 {dimension_numbers = #tpu.dot_dimension_numbers<[1], [0], [0], [1], [0, 0, 1, 1], [], []>} : vector<182x16xf32>, vector<16x32xf32>, vector<182x32xf32> -> vector<182x32xf32>
    %89 = arith.addf %84, %88 : vector<182x32xf32>
    %c22_83 = arith.constant 22 : index
    %c0_84 = arith.constant 0 : index
    %90 = vector.load %arg11[%c22_83, %c0_84] : memref<204x16xf32, #tpu.memory_space<vmem>>, vector<182x16xf32>
    %c8 = arith.constant 8 : index
    %c0_85 = arith.constant 0 : index
    %c0_86 = arith.constant 0 : index
    %91 = vector.load %arg4[%c8, %c0_85, %c0_86] : memref<9x16x32xf32, #tpu.memory_space<vmem>>, vector<1x16x32xf32>
    %92 = vector.shape_cast %91 : vector<1x16x32xf32> to vector<16x32xf32>
    %cst_87 = arith.constant dense<0.000000e+00> : vector<182x32xf32>
    %93 = tpu.matmul %90, %92, %cst_87 {dimension_numbers = #tpu.dot_dimension_numbers<[1], [0], [0], [1], [0, 0, 1, 1], [], []>} : vector<182x16xf32>, vector<16x32xf32>, vector<182x32xf32> -> vector<182x32xf32>
    %94 = arith.addf %89, %93 : vector<182x32xf32>
    %c0_88 = arith.constant 0 : index
    %c0_89 = arith.constant 0 : index
    %95 = vector.load %arg5[%c0_88, %c0_89] : memref<1x32xf32, #tpu.memory_space<vmem>>, vector<1x32xf32>
    %96 = vector.broadcast %95 : vector<1x32xf32> to vector<182x32xf32>
    %97 = arith.addf %94, %96 : vector<182x32xf32>
    %cst_90 = arith.constant 0.000000e+00 : f32
    %98 = vector.broadcast %cst_90 : f32 to vector<182x32xf32>
    %99 = arith.maximumf %97, %98 : vector<182x32xf32>
    %c0_91 = arith.constant 0 : index
    %c0_92 = arith.constant 0 : index
    %100 = vector.load %arg6[%c0_91, %c0_92] : memref<2x182xf32, #tpu.memory_space<vmem>>, vector<2x182xf32>
    %cst_93 = arith.constant dense<0.000000e+00> : vector<2x32xf32>
    %101 = tpu.matmul %100, %99, %cst_93 {dimension_numbers = #tpu.dot_dimension_numbers<[1], [0], [0], [1], [0, 0, 1, 1], [], []>} : vector<2x182xf32>, vector<182x32xf32>, vector<2x32xf32> -> vector<2x32xf32>
    %c0_94 = arith.constant 0 : index
    %c0_95 = arith.constant 0 : index
    %102 = vector.load %arg7[%c0_94, %c0_95] : memref<32x32xf32, #tpu.memory_space<vmem>>, vector<32x32xf32>
    %cst_96 = arith.constant dense<0.000000e+00> : vector<2x32xf32>
    %103 = tpu.matmul %101, %102, %cst_96 {dimension_numbers = #tpu.dot_dimension_numbers<[1], [0], [0], [1], [0, 0, 1, 1], [], []>} : vector<2x32xf32>, vector<32x32xf32>, vector<2x32xf32> -> vector<2x32xf32>
    %c0_97 = arith.constant 0 : index
    %c0_98 = arith.constant 0 : index
    %104 = vector.load %arg8[%c0_97, %c0_98] : memref<1x32xf32, #tpu.memory_space<vmem>>, vector<1x32xf32>
    %105 = vector.broadcast %104 : vector<1x32xf32> to vector<2x32xf32>
    %106 = arith.addf %103, %105 : vector<2x32xf32>
    %c0_99 = arith.constant 0 : index
    %c0_100 = arith.constant 0 : index
    %107 = vector.load %arg9[%c0_99, %c0_100] : memref<2x32xf32, #tpu.memory_space<vmem>>, vector<2x32xf32>
    tpu.vector_store %arg9[%c0_99, %c0_100], %106 {strides = array<i32>} : memref<2x32xf32, #tpu.memory_space<vmem>>, vector<2x32xf32>,
    return
  }
  func.func @transform_0(%arg0: i32) -> (i32, i32) {
    %c0_i32 = arith.constant 0 : i32
    %c0_i32_0 = arith.constant 0 : i32
    return %arg0, %c0_i32 : i32, i32
  }
  func.func @transform_1(%arg0: i32) -> (i32, i32) {
    %c0_i32 = arith.constant 0 : i32
    %c0_i32_0 = arith.constant 0 : i32
    %c0_i32_1 = arith.constant 0 : i32
    return %c0_i32, %c0_i32_0 : i32, i32
  }
  func.func @transform_2(%arg0: i32) -> (i32, i32) {
    %c0_i32 = arith.constant 0 : i32
    %c0_i32_0 = arith.constant 0 : i32
    %c0_i32_1 = arith.constant 0 : i32
    return %c0_i32, %c0_i32_0 : i32, i32
  }
  func.func @transform_3(%arg0: i32) -> (i32, i32, i32) {
    %c0_i32 = arith.constant 0 : i32
    %c0_i32_0 = arith.constant 0 : i32
    %c0_i32_1 = arith.constant 0 : i32
    %c0_i32_2 = arith.constant 0 : i32
    return %c0_i32, %c0_i32_0, %c0_i32_1 : i32, i32, i32
  }
  func.func @transform_4(%arg0: i32) -> (i32, i32) {
    %c0_i32 = arith.constant 0 : i32
    %c0_i32_0 = arith.constant 0 : i32
    %c0_i32_1 = arith.constant 0 : i32
    return %c0_i32, %c0_i32_0 : i32, i32
  }
  func.func @transform_5(%arg0: i32) -> (i32, i32) {
    %c0_i32 = arith.constant 0 : i32
    %c0_i32_0 = arith.constant 0 : i32
    %c0_i32_1 = arith.constant 0 : i32
    return %c0_i32, %c0_i32_0 : i32, i32
  }
  func.func @transform_6(%arg0: i32) -> (i32, i32) {
    %c0_i32 = arith.constant 0 : i32
    %c0_i32_0 = arith.constant 0 : i32
    %c0_i32_1 = arith.constant 0 : i32
    return %c0_i32, %c0_i32_0 : i32, i32
  }
  func.func @transform_7(%arg0: i32) -> (i32, i32) {
    %c0_i32 = arith.constant 0 : i32
    %c0_i32_0 = arith.constant 0 : i32
    %c0_i32_1 = arith.constant 0 : i32
    return %c0_i32, %c0_i32_0 : i32, i32
  }
  func.func @transform_8(%arg0: i32) -> (i32, i32) {
    %c0_i32 = arith.constant 0 : i32
    %c0_i32_0 = arith.constant 0 : i32
    return %arg0, %c0_i32 : i32, i32
  }
}

</mosaic_0001>

<llo_original>
// kernel: tpu_custom_call.1
$region0: #{tpu_custom_call.1}
  #allocation0 [shape = 'u32[]', space=smem, size = 0x4, offset = 0x4, fixed_abs, tag = 'smem constant byte address 0x4 - core index']
  #allocation1 [shape = 'u32[144,128]{1,0:T(1,128)}', space=vmem, size = 0x12000, scoped, tag = 'internal scratch']
  #allocation2 [shape = 'f32[495,16]{1,0:T(8,128)}', space=vmem, size = 0x3e000, scoped, tag = 'scratch operand']
  #allocation3 [shape = 'f32[204,16]{1,0:T(8,128)}', space=vmem, size = 0x1a000, scoped, tag = 'scratch operand']
  %s0 = inlined_call_operand.vmem [shape: f32[512,27], index: 0, kind: input, shape index: {}]
  %s1 = inlined_call_operand.vmem [shape: f32[27,16], index: 1, kind: input, shape index: {}]
  %s2 = inlined_call_operand.vmem [shape: f32[1,16], index: 2, kind: input, shape index: {}]
  %s3 = inlined_call_operand.vmem [shape: f32[9,16,32], index: 3, kind: input, shape index: {}]
  %s4 = inlined_call_operand.vmem [shape: f32[1,32], index: 4, kind: input, shape index: {}]
  %s5 = inlined_call_operand.vmem [shape: f32[2,182], index: 5, kind: input, shape index: {}]
  %s6 = inlined_call_operand.vmem [shape: f32[32,32], index: 6, kind: input, shape index: {}]
  %s7 = inlined_call_operand.vmem [shape: f32[1,32], index: 7, kind: input, shape index: {}]
  %s8 = inlined_call_operand.hbm [shape: f32[2,32], index: 8, kind: output, shape index: {}]
  %s9 = sld [smem:[#allocation0]]
  $region42: #{tpu_custom_call.1} parent=0
    _
  %s11 = ssub.s32 1, %s9
  %s12 = scalar_select 0, %s11, %s9
  $region1: #{tpu_custom_call.1} parent=0
    #allocation4 [shape = 'u8[1024]{0}', space=vmem, size = 0x400, scoped, tag = 'output window, operand 0, single buffered']
    #allocation5 [shape = 's32[1]{0}', space=sflag, size = 0x4, scoped, tag = 'scoped memory for tpu_custom_call.1']
    %13 = vsyncpa [#allocation5], 0
    // Predicated region
    $region2: #{tpu_custom_call.1} parent=1 // pred_check
      _
    $region3: #{tpu_custom_call.1} parent=1 // pred_check_branch
      %15 = sbr.rel (0) target = $region5
    $region4: #{tpu_custom_call.1} parent=1 // pred_region
      _
    $region5: #{tpu_custom_call.1} parent=1 // pred_fallthru
      _
    // Predicated region
    $region6: #{tpu_custom_call.1} parent=1 // pred_check
      _
    $region7: #{tpu_custom_call.1} parent=1 // pred_check_branch
      %17 = sbr.rel (0) target = $region9
    $region8: #{tpu_custom_call.1} parent=1 // pred_region
      _
    $region9: #{tpu_custom_call.1} parent=1 // pred_fallthru
      _
    // Predicated region
    $region10: #{tpu_custom_call.1} parent=1 // pred_check
      _
    $region11: #{tpu_custom_call.1} parent=1 // pred_check_branch
      %19 = sbr.rel (0) target = $region13
    $region12: #{tpu_custom_call.1} parent=1 // pred_region
      _
    $region13: #{tpu_custom_call.1} parent=1 // pred_fallthru
      _
    // Predicated region
    $region14: #{tpu_custom_call.1} parent=1 // pred_check
      _
    $region15: #{tpu_custom_call.1} parent=1 // pred_check_branch
      %21 = sbr.rel (0) target = $region17
    $region16: #{tpu_custom_call.1} parent=1 // pred_region
      _
    $region17: #{tpu_custom_call.1} parent=1 // pred_fallthru
      _
    // Predicated region
    $region18: #{tpu_custom_call.1} parent=1 // pred_check
      _
    $region19: #{tpu_custom_call.1} parent=1 // pred_check_branch
      %23 = sbr.rel (0) target = $region21
    $region20: #{tpu_custom_call.1} parent=1 // pred_region
      _
    $region21: #{tpu_custom_call.1} parent=1 // pred_fallthru
      _
    // Predicated region
    $region22: #{tpu_custom_call.1} parent=1 // pred_check
      _
    $region23: #{tpu_custom_call.1} parent=1 // pred_check_branch
      %25 = sbr.rel (0) target = $region25
    $region24: #{tpu_custom_call.1} parent=1 // pred_region
      _
    $region25: #{tpu_custom_call.1} parent=1 // pred_fallthru
      _
    // Predicated region
    $region26: #{tpu_custom_call.1} parent=1 // pred_check
      _
    $region27: #{tpu_custom_call.1} parent=1 // pred_check_branch
      %27 = sbr.rel (0) target = $region29
    $region28: #{tpu_custom_call.1} parent=1 // pred_region
      _
    $region29: #{tpu_custom_call.1} parent=1 // pred_fallthru
      _
    // Predicated region
    $region30: #{tpu_custom_call.1} parent=1 // pred_check
      _
    $region31: #{tpu_custom_call.1} parent=1 // pred_check_branch
      %29 = sbr.rel (0) target = $region33
    $region32: #{tpu_custom_call.1} parent=1 // pred_region
      _
    $region33: #{tpu_custom_call.1} parent=1 // pred_fallthru
      _
    %v30 = vld [vmem:[%s0] sm:$0xff]
    %v31 = vld [vmem:[%s0 + $0x8] sm:$0xff]
    %v32 = vld [vmem:[%s0 + $0x10] sm:$0xff]
    %v33 = vld [vmem:[%s0 + $0x18] sm:$0xff]
    %v34 = vld [vmem:[%s0 + $0x20] sm:$0xff]
    %v35 = vld [vmem:[%s0 + $0x28] sm:$0xff]
    %v36 = vld [vmem:[%s0 + $0x30] sm:$0xff]
    %v37 = vld [vmem:[%s0 + $0x38] sm:$0xff]
    %v38 = vld [vmem:[%s0 + $0x40] sm:$0xff]
    %v39 = vld [vmem:[%s0 + $0x48] sm:$0xff]
    %v40 = vld [vmem:[%s0 + $0x50] sm:$0xff]
    %v41 = vld [vmem:[%s0 + $0x58] sm:$0xff]
    %v42 = vld [vmem:[%s0 + $0x60] sm:$0xff]
    %v43 = vld [vmem:[%s0 + $0x68] sm:$0xff]
    %v44 = vld [vmem:[%s0 + $0x70] sm:$0xff]
    %v45 = vld [vmem:[%s0 + $0x78] sm:$0xff]
    %v46 = vld [vmem:[%s0 + $0x80] sm:$0xff]
    %v47 = vld [vmem:[%s0 + $0x88] sm:$0xff]
    %v48 = vld [vmem:[%s0 + $0x90] sm:$0xff]
    %v49 = vld [vmem:[%s0 + $0x98] sm:$0xff]
    %v50 = vld [vmem:[%s0 + $0xa0] sm:$0xff]
    %v51 = vld [vmem:[%s0 + $0xa8] sm:$0xff]
    %v52 = vld [vmem:[%s0 + $0xb0] sm:$0xff]
    %v53 = vld [vmem:[%s0 + $0xb8] sm:$0xff]
    %v54 = vld [vmem:[%s0 + $0xc0] sm:$0xff]
    %v55 = vld [vmem:[%s0 + $0xc8] sm:$0xff]
    %v56 = vld [vmem:[%s0 + $0xd0] sm:$0xff]
    %v57 = vld [vmem:[%s0 + $0xd8] sm:$0xff]
    %v58 = vld [vmem:[%s0 + $0xe0] sm:$0xff]
    %v59 = vld [vmem:[%s0 + $0xe8] sm:$0xff]
    %v60 = vld [vmem:[%s0 + $0xf0] sm:$0xff]
    %v61 = vld [vmem:[%s0 + $0xf8] sm:$0xff]
    %v62 = vld [vmem:[%s0 + $0x100] sm:$0xff]
    %v63 = vld [vmem:[%s0 + $0x108] sm:$0xff]
    %v64 = vld [vmem:[%s0 + $0x110] sm:$0xff]
    %v65 = vld [vmem:[%s0 + $0x118] sm:$0xff]
    %v66 = vld [vmem:[%s0 + $0x120] sm:$0xff]
    %v67 = vld [vmem:[%s0 + $0x128] sm:$0xff]
    %v68 = vld [vmem:[%s0 + $0x130] sm:$0xff]
    %v69 = vld [vmem:[%s0 + $0x138] sm:$0xff]
    %v70 = vld [vmem:[%s0 + $0x140] sm:$0xff]
    %v71 = vld [vmem:[%s0 + $0x148] sm:$0xff]
    %v72 = vld [vmem:[%s0 + $0x150] sm:$0xff]
    %v73 = vld [vmem:[%s0 + $0x158] sm:$0xff]
    %v74 = vld [vmem:[%s0 + $0x160] sm:$0xff]
    %v75 = vld [vmem:[%s0 + $0x168] sm:$0xff]
    %v76 = vld [vmem:[%s0 + $0x170] sm:$0xff]
    %v77 = vld [vmem:[%s0 + $0x178] sm:$0xff]
    %v78 = vld [vmem:[%s0 + $0x180] sm:$0xff]
    %v79 = vld [vmem:[%s0 + $0x188] sm:$0xff]
    %v80 = vld [vmem:[%s0 + $0x190] sm:$0xff]
    %v81 = vld [vmem:[%s0 + $0x198] sm:$0xff]
    %v82 = vld [vmem:[%s0 + $0x1a0] sm:$0xff]
    %v83 = vld [vmem:[%s0 + $0x1a8] sm:$0xff]
    %v84 = vld [vmem:[%s0 + $0x1b0] sm:$0xff]
    %v85 = vld [vmem:[%s0 + $0x1b8] sm:$0xff]
    %v86 = vld [vmem:[%s0 + $0x1c0] sm:$0xff]
    %v87 = vld [vmem:[%s0 + $0x1c8] sm:$0xff]
    %v88 = vld [vmem:[%s0 + $0x1d0] sm:$0xff]
    %v89 = vld [vmem:[%s0 + $0x1d8] sm:$0xff]
    %v90 = vld [vmem:[%s0 + $0x1e0] sm:$0xff]
    %v91 = vld [vmem:[%s0 + $0x1e8] sm:$0xff]
    %v92 = vld [vmem:[%s0 + $0x1f0] sm:$0xff]
    %v93 = vld [vmem:[%s0 + $0x1f8] sm:$0xff]
    %v94 = vld [vmem:[%s1] sm:$0xff]
    %v95 = vld [vmem:[%s1 + $0x8] sm:$0xff]
    %v96 = vld [vmem:[%s1 + $0x10] sm:$0xff]
    %v97 = vld [vmem:[%s1 + $0x18] sm:$0x7]
    %v98 = vld [vmem:[%s2] sm:$0x1]
    %v100 = vlaneseq
    %v101 = vshrl.u32 %v100, 7
    %v102 = vsub.s32 0, %v101
    %v103 = vrot.slane %v98, %v102
    %vm105 = vcmask 220160
    %v107 = vsel %vm105, %v30, 0
    %v110 = vsel %vm105, %v31, 0
    %v113 = vsel %vm105, %v32, 0
    %v116 = vsel %vm105, %v33, 0
    %v119 = vsel %vm105, %v34, 0
    %v122 = vsel %vm105, %v35, 0
    %v125 = vsel %vm105, %v36, 0
    %v128 = vsel %vm105, %v37, 0
    %v131 = vsel %vm105, %v38, 0
    %v134 = vsel %vm105, %v39, 0
    %v137 = vsel %vm105, %v40, 0
    %v140 = vsel %vm105, %v41, 0
    %v143 = vsel %vm105, %v42, 0
    %v146 = vsel %vm105, %v43, 0
    %v149 = vsel %vm105, %v44, 0
    %v152 = vsel %vm105, %v45, 0
    %v155 = vsel %vm105, %v46, 0
    %v158 = vsel %vm105, %v47, 0
    %v161 = vsel %vm105, %v48, 0
    %v164 = vsel %vm105, %v49, 0
    %v167 = vsel %vm105, %v50, 0
    %v170 = vsel %vm105, %v51, 0
    %v173 = vsel %vm105, %v52, 0
    %v176 = vsel %vm105, %v53, 0
    %v179 = vsel %vm105, %v54, 0
    %v182 = vsel %vm105, %v55, 0
    %v185 = vsel %vm105, %v56, 0
    %v188 = vsel %vm105, %v57, 0
    %v191 = vsel %vm105, %v58, 0
    %v194 = vsel %vm105, %v59, 0
    %v197 = vsel %vm105, %v60, 0
    %v200 = vsel %vm105, %v61, 0
    %v203 = vsel %vm105, %v62, 0
    %v206 = vsel %vm105, %v63, 0
    %v209 = vsel %vm105, %v64, 0
    %v212 = vsel %vm105, %v65, 0
    %v215 = vsel %vm105, %v66, 0
    %v218 = vsel %vm105, %v67, 0
    %v221 = vsel %vm105, %v68, 0
    %v224 = vsel %vm105, %v69, 0
    %v227 = vsel %vm105, %v70, 0
    %v230 = vsel %vm105, %v71, 0
    %v233 = vsel %vm105, %v72, 0
    %v236 = vsel %vm105, %v73, 0
    %v239 = vsel %vm105, %v74, 0
    %v242 = vsel %vm105, %v75, 0
    %v245 = vsel %vm105, %v76, 0
    %v248 = vsel %vm105, %v77, 0
    %v251 = vsel %vm105, %v78, 0
    %v254 = vsel %vm105, %v79, 0
    %v257 = vsel %vm105, %v80, 0
    %v260 = vsel %vm105, %v81, 0
    %v263 = vsel %vm105, %v82, 0
    %v266 = vsel %vm105, %v83, 0
    %v269 = vsel %vm105, %v84, 0
    %v272 = vsel %vm105, %v85, 0
    %v275 = vsel %vm105, %v86, 0
    %v278 = vsel %vm105, %v87, 0
    %v281 = vsel %vm105, %v88, 0
    %v284 = vsel %vm105, %v89, 0
    %v287 = vsel %vm105, %v90, 0
    %v290 = vsel %vm105, %v91, 0
    %v293 = vsel %vm105, %v92, 0
    %v296 = vsel %vm105, %v93, 0
    %vm298 = vcmask 1042432
    %v300 = vsel %vm298, %v97, 0
    %302 = vmatprep.subr.mxu0 0.0
    %303 = vmatpush1.msra.mxu0 %v94
    %304 = vmatprep.subr.mxu0 0.0
    %305 = vmatpush1.msra.mxu0 %v95
    %306 = vmatprep.subr.mxu0 0.0
    %307 = vmatpush1.msra.mxu0 %v96
    %308 = vmatprep.subr.mxu0 0.0
    %309 = vmatpush1.msra.mxu0 %v300
    %310 = vmatprep.subr.mxu0 0.0
    %311 = vmatpush1.msra.mxu0 0.0
    %312 = vmatprep.subr.mxu0 0.0
    %313 = vmatpush1.msra.mxu0 0.0
    %314 = vmatprep.subr.mxu0 0.0
    %315 = vmatpush1.msra.mxu0 0.0
    %316 = vmatprep.subr.mxu0 0.0
    %317 = vmatpush1.msra.mxu0 0.0
    %318 = vmatprep.subr.mxu0 0.0
    %319 = vmatpush1.msra.mxu0 0.0
    %320 = vmatprep.subr.mxu0 0.0
    %321 = vmatpush1.msra.mxu0 0.0
    %322 = vmatprep.subr.mxu0 0.0
    %323 = vmatpush1.msra.mxu0 0.0
    %324 = vmatprep.subr.mxu0 0.0
    %325 = vmatpush1.msra.mxu0 0.0
    %326 = vmatprep.subr.mxu0 0.0
    %327 = vmatpush1.msra.mxu0 0.0
    %328 = vmatprep.subr.mxu0 0.0
    %329 = vmatpush1.msra.mxu0 0.0
    %330 = vmatprep.subr.mxu0 0.0
    %331 = vmatpush1.msra.mxu0 0.0
    %332 = vmatprep.subr.mxu0 0.0
    %333 = vmatpush1.msra.mxu0 0.0
    %334 = vmatprep.subr.mxu0 0.0
    %335 = vmatpush1.msra.mxu0 0.0
    %336 = vmatprep.subr.mxu0 0.0
    %337 = vmatpush1.msra.mxu0 0.0
    %338 = vmatprep.subr.mxu0 0.0
    %339 = vmatpush1.msra.mxu0 0.0
    %340 = vmatprep.subr.mxu0 0.0
    %341 = vmatpush1.msra.mxu0 0.0
    %342 = vmatprep.subr.mxu0 0.0
    %343 = vmatpush1.msra.mxu0 0.0
    %344 = vmatprep.subr.mxu0 0.0
    %345 = vmatpush1.msra.mxu0 0.0
    %346 = vmatprep.subr.mxu0 0.0
    %347 = vmatpush1.msra.mxu0 0.0
    %348 = vmatprep.subr.mxu0 0.0
    %349 = vmatpush1.msra.mxu0 0.0
    %350 = vmatprep.subr.mxu0 0.0
    %351 = vmatpush1.msra.mxu0 0.0
    %352 = vmatprep.subr.mxu0 0.0
    %353 = vmatpush1.msra.mxu0 0.0
    %354 = vmatprep.subr.mxu0 0.0
    %355 = vmatpush1.msra.mxu0 0.0
    %356 = vmatprep.subr.mxu0 0.0
    %357 = vmatpush1.msra.mxu0 0.0
    %358 = vmatprep.subr.mxu0 0.0
    %359 = vmatpush1.msra.mxu0 0.0
    %360 = vmatprep.subr.mxu0 0.0
    %361 = vmatpush1.msra.mxu0 0.0
    %362 = vmatprep.subr.mxu0 0.0
    %363 = vmatpush1.msra.mxu0 0.0
    %364 = vmatprep.subr.mxu0 0.0
    %365 = vmatpush1.msra.mxu0 0.0
    %366 = vmatprep.mubr.f32.mxu0 0.0
    %367 = vmatmul.mubr.f32.gmra.mrb[0].mxu0 %v107
    %v368 = vpop.f32.mrb[0].mxu0
    %v369 = vadd.f32 %v103, %v368
    %v370 = vpop.f32.mrb[0].mxu0
    %371 = vmatprep.mubr.f32.mxu0 0.0
    %372 = vmatmul.mubr.f32.gmra.mrb[0].mxu0 %v110
    %v373 = vpop.f32.mrb[0].mxu0
    %v374 = vadd.f32 %v103, %v373
    %v375 = vpop.f32.mrb[0].mxu0
    %376 = vmatprep.mubr.f32.mxu0 0.0
    %377 = vmatmul.mubr.f32.gmra.mrb[0].mxu0 %v113
    %v378 = vpop.f32.mrb[0].mxu0
    %v379 = vadd.f32 %v103, %v378
    %v380 = vpop.f32.mrb[0].mxu0
    %381 = vmatprep.mubr.f32.mxu0 0.0
    %382 = vmatmul.mubr.f32.gmra.mrb[0].mxu0 %v116
    %v383 = vpop.f32.mrb[0].mxu0
    %v384 = vadd.f32 %v103, %v383
    %v385 = vpop.f32.mrb[0].mxu0
    %386 = vmatprep.mubr.f32.mxu0 0.0
    %387 = vmatmul.mubr.f32.gmra.mrb[0].mxu0 %v119
    %v388 = vpop.f32.mrb[0].mxu0
    %v389 = vadd.f32 %v103, %v388
    %v390 = vpop.f32.mrb[0].mxu0
    %391 = vmatprep.mubr.f32.mxu0 0.0
    %392 = vmatmul.mubr.f32.gmra.mrb[0].mxu0 %v122
    %v393 = vpop.f32.mrb[0].mxu0
    %v394 = vadd.f32 %v103, %v393
    %v395 = vpop.f32.mrb[0].mxu0
    %396 = vmatprep.mubr.f32.mxu0 0.0
    %397 = vmatmul.mubr.f32.gmra.mrb[0].mxu0 %v125
    %v398 = vpop.f32.mrb[0].mxu0
    %v399 = vadd.f32 %v103, %v398
    %v400 = vpop.f32.mrb[0].mxu0
    %401 = vmatprep.mubr.f32.mxu0 0.0
    %402 = vmatmul.mubr.f32.gmra.mrb[0].mxu0 %v128
    %v403 = vpop.f32.mrb[0].mxu0
    %v404 = vadd.f32 %v103, %v403
    %v405 = vpop.f32.mrb[0].mxu0
    %406 = vmatprep.mubr.f32.mxu0 0.0
    %407 = vmatmul.mubr.f32.gmra.mrb[0].mxu0 %v131
    %v408 = vpop.f32.mrb[0].mxu0
    %v409 = vadd.f32 %v103, %v408
    %v410 = vpop.f32.mrb[0].mxu0
    %411 = vmatprep.mubr.f32.mxu0 0.0
    %412 = vmatmul.mubr.f32.gmra.mrb[0].mxu0 %v134
    %v413 = vpop.f32.mrb[0].mxu0
    %v414 = vadd.f32 %v103, %v413
    %v415 = vpop.f32.mrb[0].mxu0
    %416 = vmatprep.mubr.f32.mxu0 0.0
    %417 = vmatmul.mubr.f32.gmra.mrb[0].mxu0 %v137
    %v418 = vpop.f32.mrb[0].mxu0
    %v419 = vadd.f32 %v103, %v418
    %v420 = vpop.f32.mrb[0].mxu0
    %421 = vmatprep.mubr.f32.mxu0 0.0
    %422 = vmatmul.mubr.f32.gmra.mrb[0].mxu0 %v140
    %v423 = vpop.f32.mrb[0].mxu0
    %v424 = vadd.f32 %v103, %v423
    %v425 = vpop.f32.mrb[0].mxu0
    %426 = vmatprep.mubr.f32.mxu0 0.0
    %427 = vmatmul.mubr.f32.gmra.mrb[0].mxu0 %v143
    %v428 = vpop.f32.mrb[0].mxu0
    %v429 = vadd.f32 %v103, %v428
    %v430 = vpop.f32.mrb[0].mxu0
    %431 = vmatprep.mubr.f32.mxu0 0.0
    %432 = vmatmul.mubr.f32.gmra.mrb[0].mxu0 %v146
    %v433 = vpop.f32.mrb[0].mxu0
    %v434 = vadd.f32 %v103, %v433
    %v435 = vpop.f32.mrb[0].mxu0
    %436 = vmatprep.mubr.f32.mxu0 0.0
    %437 = vmatmul.mubr.f32.gmra.mrb[0].mxu0 %v149
    %v438 = vpop.f32.mrb[0].mxu0
    %v439 = vadd.f32 %v103, %v438
    %v440 = vpop.f32.mrb[0].mxu0
    %441 = vmatprep.mubr.f32.mxu0 0.0
    %442 = vmatmul.mubr.f32.gmra.mrb[0].mxu0 %v152
    %v443 = vpop.f32.mrb[0].mxu0
    %v444 = vadd.f32 %v103, %v443
    %v445 = vpop.f32.mrb[0].mxu0
    %446 = vmatprep.mubr.f32.mxu0 0.0
    %447 = vmatmul.mubr.f32.gmra.mrb[0].mxu0 %v155
    %v448 = vpop.f32.mrb[0].mxu0
    %v449 = vadd.f32 %v103, %v448
    %v450 = vpop.f32.mrb[0].mxu0
    %451 = vmatprep.mubr.f32.mxu0 0.0
    %452 = vmatmul.mubr.f32.gmra.mrb[0].mxu0 %v158
    %v453 = vpop.f32.mrb[0].mxu0
    %v454 = vadd.f32 %v103, %v453
    %v455 = vpop.f32.mrb[0].mxu0
    %456 = vmatprep.mubr.f32.mxu0 0.0
    %457 = vmatmul.mubr.f32.gmra.mrb[0].mxu0 %v161
    %v458 = vpop.f32.mrb[0].mxu0
    %v459 = vadd.f32 %v103, %v458
    %v460 = vpop.f32.mrb[0].mxu0
    %461 = vmatprep.mubr.f32.mxu0 0.0
    %462 = vmatmul.mubr.f32.gmra.mrb[0].mxu0 %v164
    %v463 = vpop.f32.mrb[0].mxu0
    %v464 = vadd.f32 %v103, %v463
    %v465 = vpop.f32.mrb[0].mxu0
    %466 = vmatprep.mubr.f32.mxu0 0.0
    %467 = vmatmul.mubr.f32.gmra.mrb[0].mxu0 %v167
    %v468 = vpop.f32.mrb[0].mxu0
    %v469 = vadd.f32 %v103, %v468
    %v470 = vpop.f32.mrb[0].mxu0
    %471 = vmatprep.mubr.f32.mxu0 0.0
    %472 = vmatmul.mubr.f32.gmra.mrb[0].mxu0 %v170
    %v473 = vpop.f32.mrb[0].mxu0
    %v474 = vadd.f32 %v103, %v473
    %v475 = vpop.f32.mrb[0].mxu0
    %476 = vmatprep.mubr.f32.mxu0 0.0
    %477 = vmatmul.mubr.f32.gmra.mrb[0].mxu0 %v173
    %v478 = vpop.f32.mrb[0].mxu0
    %v479 = vadd.f32 %v103, %v478
    %v480 = vpop.f32.mrb[0].mxu0
    %481 = vmatprep.mubr.f32.mxu0 0.0
    %482 = vmatmul.mubr.f32.gmra.mrb[0].mxu0 %v176
    %v483 = vpop.f32.mrb[0].mxu0
    %v484 = vadd.f32 %v103, %v483
    %v485 = vpop.f32.mrb[0].mxu0
    %486 = vmatprep.mubr.f32.mxu0 0.0
    %487 = vmatmul.mubr.f32.gmra.mrb[0].mxu0 %v179
    %v488 = vpop.f32.mrb[0].mxu0
    %v489 = vadd.f32 %v103, %v488
    %v490 = vpop.f32.mrb[0].mxu0
    %491 = vmatprep.mubr.f32.mxu0 0.0
    %492 = vmatmul.mubr.f32.gmra.mrb[0].mxu0 %v182
    %v493 = vpop.f32.mrb[0].mxu0
    %v494 = vadd.f32 %v103, %v493
    %v495 = vpop.f32.mrb[0].mxu0
    %496 = vmatprep.mubr.f32.mxu0 0.0
    %497 = vmatmul.mubr.f32.gmra.mrb[0].mxu0 %v185
    %v498 = vpop.f32.mrb[0].mxu0
    %v499 = vadd.f32 %v103, %v498
    %v500 = vpop.f32.mrb[0].mxu0
    %501 = vmatprep.mubr.f32.mxu0 0.0
    %502 = vmatmul.mubr.f32.gmra.mrb[0].mxu0 %v188
    %v503 = vpop.f32.mrb[0].mxu0
    %v504 = vadd.f32 %v103, %v503
    %v505 = vpop.f32.mrb[0].mxu0
    %506 = vmatprep.mubr.f32.mxu0 0.0
    %507 = vmatmul.mubr.f32.gmra.mrb[0].mxu0 %v191
    %v508 = vpop.f32.mrb[0].mxu0
    %v509 = vadd.f32 %v103, %v508
    %v510 = vpop.f32.mrb[0].mxu0
    %511 = vmatprep.mubr.f32.mxu0 0.0
    %512 = vmatmul.mubr.f32.gmra.mrb[0].mxu0 %v194
    %v513 = vpop.f32.mrb[0].mxu0
    %v514 = vadd.f32 %v103, %v513
    %v515 = vpop.f32.mrb[0].mxu0
    %516 = vmatprep.mubr.f32.mxu0 0.0
    %517 = vmatmul.mubr.f32.gmra.mrb[0].mxu0 %v197
    %v518 = vpop.f32.mrb[0].mxu0
    %v519 = vadd.f32 %v103, %v518
    %v520 = vpop.f32.mrb[0].mxu0
    %521 = vmatprep.mubr.f32.mxu0 0.0
    %522 = vmatmul.mubr.f32.gmra.mrb[0].mxu0 %v200
    %v523 = vpop.f32.mrb[0].mxu0
    %v524 = vadd.f32 %v103, %v523
    %v525 = vpop.f32.mrb[0].mxu0
    %526 = vmatprep.mubr.f32.mxu0 0.0
    %527 = vmatmul.mubr.f32.gmra.mrb[0].mxu0 %v203
    %v528 = vpop.f32.mrb[0].mxu0
    %v529 = vadd.f32 %v103, %v528
    %v530 = vpop.f32.mrb[0].mxu0
    %531 = vmatprep.mubr.f32.mxu0 0.0
    %532 = vmatmul.mubr.f32.gmra.mrb[0].mxu0 %v206
    %v533 = vpop.f32.mrb[0].mxu0
    %v534 = vadd.f32 %v103, %v533
    %v535 = vpop.f32.mrb[0].mxu0
    %536 = vmatprep.mubr.f32.mxu0 0.0
    %537 = vmatmul.mubr.f32.gmra.mrb[0].mxu0 %v209
    %v538 = vpop.f32.mrb[0].mxu0
    %v539 = vadd.f32 %v103, %v538
    %v540 = vpop.f32.mrb[0].mxu0
    %541 = vmatprep.mubr.f32.mxu0 0.0
    %542 = vmatmul.mubr.f32.gmra.mrb[0].mxu0 %v212
    %v543 = vpop.f32.mrb[0].mxu0
    %v544 = vadd.f32 %v103, %v543
    %v545 = vpop.f32.mrb[0].mxu0
    %546 = vmatprep.mubr.f32.mxu0 0.0
    %547 = vmatmul.mubr.f32.gmra.mrb[0].mxu0 %v215
    %v548 = vpop.f32.mrb[0].mxu0
    %v549 = vadd.f32 %v103, %v548
    %v550 = vpop.f32.mrb[0].mxu0
    %551 = vmatprep.mubr.f32.mxu0 0.0
    %552 = vmatmul.mubr.f32.gmra.mrb[0].mxu0 %v218
    %v553 = vpop.f32.mrb[0].mxu0
    %v554 = vadd.f32 %v103, %v553
    %v555 = vpop.f32.mrb[0].mxu0
    %556 = vmatprep.mubr.f32.mxu0 0.0
    %557 = vmatmul.mubr.f32.gmra.mrb[0].mxu0 %v221
    %v558 = vpop.f32.mrb[0].mxu0
    %v559 = vadd.f32 %v103, %v558
    %v560 = vpop.f32.mrb[0].mxu0
    %561 = vmatprep.mubr.f32.mxu0 0.0
    %562 = vmatmul.mubr.f32.gmra.mrb[0].mxu0 %v224
    %v563 = vpop.f32.mrb[0].mxu0
    %v564 = vadd.f32 %v103, %v563
    %v565 = vpop.f32.mrb[0].mxu0
    %566 = vmatprep.mubr.f32.mxu0 0.0
    %567 = vmatmul.mubr.f32.gmra.mrb[0].mxu0 %v227
    %v568 = vpop.f32.mrb[0].mxu0
    %v569 = vadd.f32 %v103, %v568
    %v570 = vpop.f32.mrb[0].mxu0
    %571 = vmatprep.mubr.f32.mxu0 0.0
    %572 = vmatmul.mubr.f32.gmra.mrb[0].mxu0 %v230
    %v573 = vpop.f32.mrb[0].mxu0
    %v574 = vadd.f32 %v103, %v573
    %v575 = vpop.f32.mrb[0].mxu0
    %576 = vmatprep.mubr.f32.mxu0 0.0
    %577 = vmatmul.mubr.f32.gmra.mrb[0].mxu0 %v233
    %v578 = vpop.f32.mrb[0].mxu0
    %v579 = vadd.f32 %v103, %v578
    %v580 = vpop.f32.mrb[0].mxu0
    %581 = vmatprep.mubr.f32.mxu0 0.0
    %582 = vmatmul.mubr.f32.gmra.mrb[0].mxu0 %v236
    %v583 = vpop.f32.mrb[0].mxu0
    %v584 = vadd.f32 %v103, %v583
    %v585 = vpop.f32.mrb[0].mxu0
    %586 = vmatprep.mubr.f32.mxu0 0.0
    %587 = vmatmul.mubr.f32.gmra.mrb[0].mxu0 %v239
    %v588 = vpop.f32.mrb[0].mxu0
    %v589 = vadd.f32 %v103, %v588
    %v590 = vpop.f32.mrb[0].mxu0
    %591 = vmatprep.mubr.f32.mxu0 0.0
    %592 = vmatmul.mubr.f32.gmra.mrb[0].mxu0 %v242
    %v593 = vpop.f32.mrb[0].mxu0
    %v594 = vadd.f32 %v103, %v593
    %v595 = vpop.f32.mrb[0].mxu0
    %596 = vmatprep.mubr.f32.mxu0 0.0
    %597 = vmatmul.mubr.f32.gmra.mrb[0].mxu0 %v245
    %v598 = vpop.f32.mrb[0].mxu0
    %v599 = vadd.f32 %v103, %v598
    %v600 = vpop.f32.mrb[0].mxu0
    %601 = vmatprep.mubr.f32.mxu0 0.0
    %602 = vmatmul.mubr.f32.gmra.mrb[0].mxu0 %v248
    %v603 = vpop.f32.mrb[0].mxu0
    %v604 = vadd.f32 %v103, %v603
    %v605 = vpop.f32.mrb[0].mxu0
    %606 = vmatprep.mubr.f32.mxu0 0.0
    %607 = vmatmul.mubr.f32.gmra.mrb[0].mxu0 %v251
    %v608 = vpop.f32.mrb[0].mxu0
    %v609 = vadd.f32 %v103, %v608
    %v610 = vpop.f32.mrb[0].mxu0
    %611 = vmatprep.mubr.f32.mxu0 0.0
    %612 = vmatmul.mubr.f32.gmra.mrb[0].mxu0 %v254
    %v613 = vpop.f32.mrb[0].mxu0
    %v614 = vadd.f32 %v103, %v613
    %v615 = vpop.f32.mrb[0].mxu0
    %616 = vmatprep.mubr.f32.mxu0 0.0
    %617 = vmatmul.mubr.f32.gmra.mrb[0].mxu0 %v257
    %v618 = vpop.f32.mrb[0].mxu0
    %v619 = vadd.f32 %v103, %v618
    %v620 = vpop.f32.mrb[0].mxu0
    %621 = vmatprep.mubr.f32.mxu0 0.0
    %622 = vmatmul.mubr.f32.gmra.mrb[0].mxu0 %v260
    %v623 = vpop.f32.mrb[0].mxu0
    %v624 = vadd.f32 %v103, %v623
    %v625 = vpop.f32.mrb[0].mxu0
    %626 = vmatprep.mubr.f32.mxu0 0.0
    %627 = vmatmul.mubr.f32.gmra.mrb[0].mxu0 %v263
    %v628 = vpop.f32.mrb[0].mxu0
    %v629 = vadd.f32 %v103, %v628
    %v630 = vpop.f32.mrb[0].mxu0
    %631 = vmatprep.mubr.f32.mxu0 0.0
    %632 = vmatmul.mubr.f32.gmra.mrb[0].mxu0 %v266
    %v633 = vpop.f32.mrb[0].mxu0
    %v634 = vadd.f32 %v103, %v633
    %v635 = vpop.f32.mrb[0].mxu0
    %636 = vmatprep.mubr.f32.mxu0 0.0
    %637 = vmatmul.mubr.f32.gmra.mrb[0].mxu0 %v269
    %v638 = vpop.f32.mrb[0].mxu0
    %v639 = vadd.f32 %v103, %v638
    %v640 = vpop.f32.mrb[0].mxu0
    %641 = vmatprep.mubr.f32.mxu0 0.0
    %642 = vmatmul.mubr.f32.gmra.mrb[0].mxu0 %v272
    %v643 = vpop.f32.mrb[0].mxu0
    %v644 = vadd.f32 %v103, %v643
    %v645 = vpop.f32.mrb[0].mxu0
    %646 = vmatprep.mubr.f32.mxu0 0.0
    %647 = vmatmul.mubr.f32.gmra.mrb[0].mxu0 %v275
    %v648 = vpop.f32.mrb[0].mxu0
    %v649 = vadd.f32 %v103, %v648
    %v650 = vpop.f32.mrb[0].mxu0
    %651 = vmatprep.mubr.f32.mxu0 0.0
    %652 = vmatmul.mubr.f32.gmra.mrb[0].mxu0 %v278
    %v653 = vpop.f32.mrb[0].mxu0
    %v654 = vadd.f32 %v103, %v653
    %v655 = vpop.f32.mrb[0].mxu0
    %656 = vmatprep.mubr.f32.mxu0 0.0
    %657 = vmatmul.mubr.f32.gmra.mrb[0].mxu0 %v281
    %v658 = vpop.f32.mrb[0].mxu0
    %v659 = vadd.f32 %v103, %v658
    %v660 = vpop.f32.mrb[0].mxu0
    %661 = vmatprep.mubr.f32.mxu0 0.0
    %662 = vmatmul.mubr.f32.gmra.mrb[0].mxu0 %v284
    %v663 = vpop.f32.mrb[0].mxu0
    %v664 = vadd.f32 %v103, %v663
    %v665 = vpop.f32.mrb[0].mxu0
    %666 = vmatprep.mubr.f32.mxu0 0.0
    %667 = vmatmul.mubr.f32.gmra.mrb[0].mxu0 %v287
    %v668 = vpop.f32.mrb[0].mxu0
    %v669 = vadd.f32 %v103, %v668
    %v670 = vpop.f32.mrb[0].mxu0
    %671 = vmatprep.mubr.f32.mxu0 0.0
    %672 = vmatmul.mubr.f32.gmra.mrb[0].mxu0 %v290
    %v673 = vpop.f32.mrb[0].mxu0
    %v674 = vadd.f32 %v103, %v673
    %v675 = vpop.f32.mrb[0].mxu0
    %676 = vmatprep.mubr.f32.mxu0 0.0
    %677 = vmatmul.mubr.f32.gmra.mrb[0].mxu0 %v293
    %v678 = vpop.f32.mrb[0].mxu0
    %v679 = vadd.f32 %v103, %v678
    %v680 = vpop.f32.mrb[0].mxu0
    %681 = vmatprep.mubr.f32.mxu0 0.0
    %682 = vmatmul.mubr.f32.gmra.mrb[0].mxu0 %v296
    %v683 = vpop.f32.mrb[0].mxu0
    %v684 = vadd.f32 %v103, %v683
    %v685 = vpop.f32.mrb[0].mxu0
    %686 = vdwg.mxu0
    %v687 = vmax.f32 %v369, 0.0
    %v688 = vmax.f32 %v374, 0.0
    %v689 = vmax.f32 %v379, 0.0
    %v690 = vmax.f32 %v384, 0.0
    %v691 = vmax.f32 %v389, 0.0
    %v692 = vmax.f32 %v394, 0.0
    %v693 = vmax.f32 %v399, 0.0
    %v694 = vmax.f32 %v404, 0.0
    %v695 = vmax.f32 %v409, 0.0
    %v696 = vmax.f32 %v414, 0.0
    %v697 = vmax.f32 %v419, 0.0
    %v698 = vmax.f32 %v424, 0.0
    %v699 = vmax.f32 %v429, 0.0
    %v700 = vmax.f32 %v434, 0.0
    %v701 = vmax.f32 %v439, 0.0
    %v702 = vmax.f32 %v444, 0.0
    %v703 = vmax.f32 %v449, 0.0
    %v704 = vmax.f32 %v454, 0.0
    %v705 = vmax.f32 %v459, 0.0
    %v706 = vmax.f32 %v464, 0.0
    %v707 = vmax.f32 %v469, 0.0
    %v708 = vmax.f32 %v474, 0.0
    %v709 = vmax.f32 %v479, 0.0
    %v710 = vmax.f32 %v484, 0.0
    %v711 = vmax.f32 %v489, 0.0
    %v712 = vmax.f32 %v494, 0.0
    %v713 = vmax.f32 %v499, 0.0
    %v714 = vmax.f32 %v504, 0.0
    %v715 = vmax.f32 %v509, 0.0
    %v716 = vmax.f32 %v514, 0.0
    %v717 = vmax.f32 %v519, 0.0
    %v718 = vmax.f32 %v524, 0.0
    %v719 = vmax.f32 %v529, 0.0
    %v720 = vmax.f32 %v534, 0.0
    %v721 = vmax.f32 %v539, 0.0
    %v722 = vmax.f32 %v544, 0.0
    %v723 = vmax.f32 %v549, 0.0
    %v724 = vmax.f32 %v554, 0.0
    %v725 = vmax.f32 %v559, 0.0
    %v726 = vmax.f32 %v564, 0.0
    %v727 = vmax.f32 %v569, 0.0
    %v728 = vmax.f32 %v574, 0.0
    %v729 = vmax.f32 %v579, 0.0
    %v730 = vmax.f32 %v584, 0.0
    %v731 = vmax.f32 %v589, 0.0
    %v732 = vmax.f32 %v594, 0.0
    %v733 = vmax.f32 %v599, 0.0
    %v734 = vmax.f32 %v604, 0.0
    %v735 = vmax.f32 %v609, 0.0
    %v736 = vmax.f32 %v614, 0.0
    %v737 = vmax.f32 %v619, 0.0
    %v738 = vmax.f32 %v624, 0.0
    %v739 = vmax.f32 %v629, 0.0
    %v740 = vmax.f32 %v634, 0.0
    %v741 = vmax.f32 %v639, 0.0
    %v742 = vmax.f32 %v644, 0.0
    %v743 = vmax.f32 %v649, 0.0
    %v744 = vmax.f32 %v654, 0.0
    %v745 = vmax.f32 %v659, 0.0
    %v746 = vmax.f32 %v664, 0.0
    %v747 = vmax.f32 %v669, 0.0
    %v748 = vmax.f32 %v674, 0.0
    %v749 = vmax.f32 %v679, 0.0
    %v750 = vmax.f32 %v684, 0.0
    %v751 = vmax.f32 %v687, %v689
    %v752 = vmax.f32 %v688, %v690
    %v753 = vmax.f32 %v689, %v691
    %v754 = vmax.f32 %v690, %v692
    %v755 = vmax.f32 %v691, %v693
    %v756 = vmax.f32 %v692, %v694
    %v757 = vmax.f32 %v693, %v695
    %v758 = vmax.f32 %v694, %v696
    %v759 = vmax.f32 %v695, %v697
    %v760 = vmax.f32 %v696, %v698
    %v761 = vmax.f32 %v697, %v699
    %v762 = vmax.f32 %v698, %v700
    %v763 = vmax.f32 %v699, %v701
    %v764 = vmax.f32 %v700, %v702
    %v765 = vmax.f32 %v701, %v703
    %v766 = vmax.f32 %v702, %v704
    %v767 = vmax.f32 %v703, %v705
    %v768 = vmax.f32 %v704, %v706
    %v769 = vmax.f32 %v705, %v707
    %v770 = vmax.f32 %v706, %v708
    %v771 = vmax.f32 %v707, %v709
    %v772 = vmax.f32 %v708, %v710
    %v773 = vmax.f32 %v709, %v711
    %v774 = vmax.f32 %v710, %v712
    %v775 = vmax.f32 %v711, %v713
    %v776 = vmax.f32 %v712, %v714
    %v777 = vmax.f32 %v713, %v715
    %v778 = vmax.f32 %v714, %v716
    %v779 = vmax.f32 %v715, %v717
    %v780 = vmax.f32 %v716, %v718
    %v781 = vmax.f32 %v717, %v719
    %v782 = vmax.f32 %v718, %v720
    %v783 = vmax.f32 %v719, %v721
    %v784 = vmax.f32 %v720, %v722
    %v785 = vmax.f32 %v721, %v723
    %v786 = vmax.f32 %v722, %v724
    %v787 = vmax.f32 %v723, %v725
    %v788 = vmax.f32 %v724, %v726
    %v789 = vmax.f32 %v725, %v727
    %v790 = vmax.f32 %v726, %v728
    %v791 = vmax.f32 %v727, %v729
    %v792 = vmax.f32 %v728, %v730
    %v793 = vmax.f32 %v729, %v731
    %v794 = vmax.f32 %v730, %v732
    %v795 = vmax.f32 %v731, %v733
    %v796 = vmax.f32 %v732, %v734
    %v797 = vmax.f32 %v733, %v735
    %v798 = vmax.f32 %v734, %v736
    %v799 = vmax.f32 %v735, %v737
    %v800 = vmax.f32 %v736, %v738
    %v801 = vmax.f32 %v737, %v739
    %v802 = vmax.f32 %v738, %v740
    %v803 = vmax.f32 %v739, %v741
    %v804 = vmax.f32 %v740, %v742
    %v805 = vmax.f32 %v741, %v743
    %v806 = vmax.f32 %v742, %v744
    %v807 = vmax.f32 %v743, %v745
    %v808 = vmax.f32 %v744, %v746
    %v809 = vmax.f32 %v745, %v747
    %v810 = vmax.f32 %v746, %v748
    %v811 = vmax.f32 %v747, %v749
    %v812 = vmax.f32 %v748, %v750
    %vm875 = vcmask 1046528
    %v876 = vrot.slane %v751, 1
    %v877 = vrot.slane %v752, 1
    %v878 = vsel %vm875, %v876, %v877
    %v879 = vrot.slane %v753, 1
    %v880 = vsel %vm875, %v877, %v879
    %v881 = vrot.slane %v754, 1
    %v882 = vsel %vm875, %v879, %v881
    %v883 = vrot.slane %v755, 1
    %v884 = vsel %vm875, %v881, %v883
    %v885 = vrot.slane %v756, 1
    %v886 = vsel %vm875, %v883, %v885
    %v887 = vrot.slane %v757, 1
    %v888 = vsel %vm875, %v885, %v887
    %v889 = vrot.slane %v758, 1
    %v890 = vsel %vm875, %v887, %v889
    %v891 = vrot.slane %v759, 1
    %v892 = vsel %vm875, %v889, %v891
    %v893 = vrot.slane %v760, 1
    %v894 = vsel %vm875, %v891, %v893
    %v895 = vrot.slane %v761, 1
    %v896 = vsel %vm875, %v893, %v895
    %v897 = vrot.slane %v762, 1
    %v898 = vsel %vm875, %v895, %v897
    %v899 = vrot.slane %v763, 1
    %v900 = vsel %vm875, %v897, %v899
    %v901 = vrot.slane %v764, 1
    %v902 = vsel %vm875, %v899, %v901
    %v903 = vrot.slane %v765, 1
    %v904 = vsel %vm875, %v901, %v903
    %v905 = vrot.slane %v766, 1
    %v906 = vsel %vm875, %v903, %v905
    %v907 = vrot.slane %v767, 1
    %v908 = vsel %vm875, %v905, %v907
    %v909 = vrot.slane %v768, 1
    %v910 = vsel %vm875, %v907, %v909
    %v911 = vrot.slane %v769, 1
    %v912 = vsel %vm875, %v909, %v911
    %v913 = vrot.slane %v770, 1
    %v914 = vsel %vm875, %v911, %v913
    %v915 = vrot.slane %v771, 1
    %v916 = vsel %vm875, %v913, %v915
    %v917 = vrot.slane %v772, 1
    %v918 = vsel %vm875, %v915, %v917
    %v919 = vrot.slane %v773, 1
    %v920 = vsel %vm875, %v917, %v919
    %v921 = vrot.slane %v774, 1
    %v922 = vsel %vm875, %v919, %v921
    %v923 = vrot.slane %v775, 1
    %v924 = vsel %vm875, %v921, %v923
    %v925 = vrot.slane %v776, 1
    %v926 = vsel %vm875, %v923, %v925
    %v927 = vrot.slane %v777, 1
    %v928 = vsel %vm875, %v925, %v927
    %v929 = vrot.slane %v778, 1
    %v930 = vsel %vm875, %v927, %v929
    %v931 = vrot.slane %v779, 1
    %v932 = vsel %vm875, %v929, %v931
    %v933 = vrot.slane %v780, 1
    %v934 = vsel %vm875, %v931, %v933
    %v935 = vrot.slane %v781, 1
    %v936 = vsel %vm875, %v933, %v935
    %v937 = vrot.slane %v782, 1
    %v938 = vsel %vm875, %v935, %v937
    %v939 = vrot.slane %v783, 1
    %v940 = vsel %vm875, %v937, %v939
    %v941 = vrot.slane %v784, 1
    %v942 = vsel %vm875, %v939, %v941
    %v943 = vrot.slane %v785, 1
    %v944 = vsel %vm875, %v941, %v943
    %v945 = vrot.slane %v786, 1
    %v946 = vsel %vm875, %v943, %v945
    %v947 = vrot.slane %v787, 1
    %v948 = vsel %vm875, %v945, %v947
    %v949 = vrot.slane %v788, 1
    %v950 = vsel %vm875, %v947, %v949
    %v951 = vrot.slane %v789, 1
    %v952 = vsel %vm875, %v949, %v951
    %v953 = vrot.slane %v790, 1
    %v954 = vsel %vm875, %v951, %v953
    %v955 = vrot.slane %v791, 1
    %v956 = vsel %vm875, %v953, %v955
    %v957 = vrot.slane %v792, 1
    %v958 = vsel %vm875, %v955, %v957
    %v959 = vrot.slane %v793, 1
    %v960 = vsel %vm875, %v957, %v959
    %v961 = vrot.slane %v794, 1
    %v962 = vsel %vm875, %v959, %v961
    %v963 = vrot.slane %v795, 1
    %v964 = vsel %vm875, %v961, %v963
    %v965 = vrot.slane %v796, 1
    %v966 = vsel %vm875, %v963, %v965
    %v967 = vrot.slane %v797, 1
    %v968 = vsel %vm875, %v965, %v967
    %v969 = vrot.slane %v798, 1
    %v970 = vsel %vm875, %v967, %v969
    %v971 = vrot.slane %v799, 1
    %v972 = vsel %vm875, %v969, %v971
    %v973 = vrot.slane %v800, 1
    %v974 = vsel %vm875, %v971, %v973
    %v975 = vrot.slane %v801, 1
    %v976 = vsel %vm875, %v973, %v975
    %v977 = vrot.slane %v802, 1
    %v978 = vsel %vm875, %v975, %v977
    %v979 = vrot.slane %v803, 1
    %v980 = vsel %vm875, %v977, %v979
    %v981 = vrot.slane %v804, 1
    %v982 = vsel %vm875, %v979, %v981
    %v983 = vrot.slane %v805, 1
    %v984 = vsel %vm875, %v981, %v983
    %v985 = vrot.slane %v806, 1
    %v986 = vsel %vm875, %v983, %v985
    %v987 = vrot.slane %v807, 1
    %v988 = vsel %vm875, %v985, %v987
    %v989 = vrot.slane %v808, 1
    %v990 = vsel %vm875, %v987, %v989
    %v991 = vrot.slane %v809, 1
    %v992 = vsel %vm875, %v989, %v991
    %v993 = vrot.slane %v810, 1
    %v994 = vsel %vm875, %v991, %v993
    %v995 = vrot.slane %v811, 1
    %v996 = vsel %vm875, %v993, %v995
    %v997 = vrot.slane %v812, 1
    %v998 = vsel %vm875, %v995, %v997
    %v1061 = vmax.f32 %v751, %v878
    %v1062 = vmax.f32 %v752, %v880
    %v1063 = vmax.f32 %v753, %v882
    %v1064 = vmax.f32 %v754, %v884
    %v1065 = vmax.f32 %v755, %v886
    %v1066 = vmax.f32 %v756, %v888
    %v1067 = vmax.f32 %v757, %v890
    %v1068 = vmax.f32 %v758, %v892
    %v1069 = vmax.f32 %v759, %v894
    %v1070 = vmax.f32 %v760, %v896
    %v1071 = vmax.f32 %v761, %v898
    %v1072 = vmax.f32 %v762, %v900
    %v1073 = vmax.f32 %v763, %v902
    %v1074 = vmax.f32 %v764, %v904
    %v1075 = vmax.f32 %v765, %v906
    %v1076 = vmax.f32 %v766, %v908
    %v1077 = vmax.f32 %v767, %v910
    %v1078 = vmax.f32 %v768, %v912
    %v1079 = vmax.f32 %v769, %v914
    %v1080 = vmax.f32 %v770, %v916
    %v1081 = vmax.f32 %v771, %v918
    %v1082 = vmax.f32 %v772, %v920
    %v1083 = vmax.f32 %v773, %v922
    %v1084 = vmax.f32 %v774, %v924
    %v1085 = vmax.f32 %v775, %v926
    %v1086 = vmax.f32 %v776, %v928
    %v1087 = vmax.f32 %v777, %v930
    %v1088 = vmax.f32 %v778, %v932
    %v1089 = vmax.f32 %v779, %v934
    %v1090 = vmax.f32 %v780, %v936
    %v1091 = vmax.f32 %v781, %v938
    %v1092 = vmax.f32 %v782, %v940
    %v1093 = vmax.f32 %v783, %v942
    %v1094 = vmax.f32 %v784, %v944
    %v1095 = vmax.f32 %v785, %v946
    %v1096 = vmax.f32 %v786, %v948
    %v1097 = vmax.f32 %v787, %v950
    %v1098 = vmax.f32 %v788, %v952
    %v1099 = vmax.f32 %v789, %v954
    %v1100 = vmax.f32 %v790, %v956
    %v1101 = vmax.f32 %v791, %v958
    %v1102 = vmax.f32 %v792, %v960
    %v1103 = vmax.f32 %v793, %v962
    %v1104 = vmax.f32 %v794, %v964
    %v1105 = vmax.f32 %v795, %v966
    %v1106 = vmax.f32 %v796, %v968
    %v1107 = vmax.f32 %v797, %v970
    %v1108 = vmax.f32 %v798, %v972
    %v1109 = vmax.f32 %v799, %v974
    %v1110 = vmax.f32 %v800, %v976
    %v1111 = vmax.f32 %v801, %v978
    %v1112 = vmax.f32 %v802, %v980
    %v1113 = vmax.f32 %v803, %v982
    %v1114 = vmax.f32 %v804, %v984
    %v1115 = vmax.f32 %v805, %v986
    %v1116 = vmax.f32 %v806, %v988
    %v1117 = vmax.f32 %v807, %v990
    %v1118 = vmax.f32 %v808, %v992
    %v1119 = vmax.f32 %v809, %v994
    %v1120 = vmax.f32 %v810, %v996
    %v1121 = vmax.f32 %v811, %v998
    %v1122 = vmax.f32 %v812, %v997
    %vm1123 = vcmask 130048
    %1124 = vst.msk [vmem:[#allocation2] sm:$0xff] %vm1123, %v1061
    %1125 = vst.msk [vmem:[#allocation2 + $0x8] sm:$0xff] %vm1123, %v1062
    %1126 = vst.msk [vmem:[#allocation2 + $0x10] sm:$0xff] %vm1123, %v1063
    %1127 = vst.msk [vmem:[#allocation2 + $0x18] sm:$0xff] %vm1123, %v1064
    %1128 = vst.msk [vmem:[#allocation2 + $0x20] sm:$0xff] %vm1123, %v1065
    %1129 = vst.msk [vmem:[#allocation2 + $0x28] sm:$0xff] %vm1123, %v1066
    %1130 = vst.msk [vmem:[#allocation2 + $0x30] sm:$0xff] %vm1123, %v1067
    %1131 = vst.msk [vmem:[#allocation2 + $0x38] sm:$0xff] %vm1123, %v1068
    %1132 = vst.msk [vmem:[#allocation2 + $0x40] sm:$0xff] %vm1123, %v1069
    %1133 = vst.msk [vmem:[#allocation2 + $0x48] sm:$0xff] %vm1123, %v1070
    %1134 = vst.msk [vmem:[#allocation2 + $0x50] sm:$0xff] %vm1123, %v1071
    %1135 = vst.msk [vmem:[#allocation2 + $0x58] sm:$0xff] %vm1123, %v1072
    %1136 = vst.msk [vmem:[#allocation2 + $0x60] sm:$0xff] %vm1123, %v1073
    %1137 = vst.msk [vmem:[#allocation2 + $0x68] sm:$0xff] %vm1123, %v1074
    %1138 = vst.msk [vmem:[#allocation2 + $0x70] sm:$0xff] %vm1123, %v1075
    %1139 = vst.msk [vmem:[#allocation2 + $0x78] sm:$0xff] %vm1123, %v1076
    %1140 = vst.msk [vmem:[#allocation2 + $0x80] sm:$0xff] %vm1123, %v1077
    %1141 = vst.msk [vmem:[#allocation2 + $0x88] sm:$0xff] %vm1123, %v1078
    %1142 = vst.msk [vmem:[#allocation2 + $0x90] sm:$0xff] %vm1123, %v1079
    %1143 = vst.msk [vmem:[#allocation2 + $0x98] sm:$0xff] %vm1123, %v1080
    %1144 = vst.msk [vmem:[#allocation2 + $0xa0] sm:$0xff] %vm1123, %v1081
    %1145 = vst.msk [vmem:[#allocation2 + $0xa8] sm:$0xff] %vm1123, %v1082
    %1146 = vst.msk [vmem:[#allocation2 + $0xb0] sm:$0xff] %vm1123, %v1083
    %1147 = vst.msk [vmem:[#allocation2 + $0xb8] sm:$0xff] %vm1123, %v1084
    %1148 = vst.msk [vmem:[#allocation2 + $0xc0] sm:$0xff] %vm1123, %v1085
    %1149 = vst.msk [vmem:[#allocation2 + $0xc8] sm:$0xff] %vm1123, %v1086
    %1150 = vst.msk [vmem:[#allocation2 + $0xd0] sm:$0xff] %vm1123, %v1087
    %1151 = vst.msk [vmem:[#allocation2 + $0xd8] sm:$0xff] %vm1123, %v1088
    %1152 = vst.msk [vmem:[#allocation2 + $0xe0] sm:$0xff] %vm1123, %v1089
    %1153 = vst.msk [vmem:[#allocation2 + $0xe8] sm:$0xff] %vm1123, %v1090
    %1154 = vst.msk [vmem:[#allocation2 + $0xf0] sm:$0xff] %vm1123, %v1091
    %1155 = vst.msk [vmem:[#allocation2 + $0xf8] sm:$0xff] %vm1123, %v1092
    %1156 = vst.msk [vmem:[#allocation2 + $0x100] sm:$0xff] %vm1123, %v1093
    %1157 = vst.msk [vmem:[#allocation2 + $0x108] sm:$0xff] %vm1123, %v1094
    %1158 = vst.msk [vmem:[#allocation2 + $0x110] sm:$0xff] %vm1123, %v1095
    %1159 = vst.msk [vmem:[#allocation2 + $0x118] sm:$0xff] %vm1123, %v1096
    %1160 = vst.msk [vmem:[#allocation2 + $0x120] sm:$0xff] %vm1123, %v1097
    %1161 = vst.msk [vmem:[#allocation2 + $0x128] sm:$0xff] %vm1123, %v1098
    %1162 = vst.msk [vmem:[#allocation2 + $0x130] sm:$0xff] %vm1123, %v1099
    %1163 = vst.msk [vmem:[#allocation2 + $0x138] sm:$0xff] %vm1123, %v1100
    %1164 = vst.msk [vmem:[#allocation2 + $0x140] sm:$0xff] %vm1123, %v1101
    %1165 = vst.msk [vmem:[#allocation2 + $0x148] sm:$0xff] %vm1123, %v1102
    %1166 = vst.msk [vmem:[#allocation2 + $0x150] sm:$0xff] %vm1123, %v1103
    %1167 = vst.msk [vmem:[#allocation2 + $0x158] sm:$0xff] %vm1123, %v1104
    %1168 = vst.msk [vmem:[#allocation2 + $0x160] sm:$0xff] %vm1123, %v1105
    %1169 = vst.msk [vmem:[#allocation2 + $0x168] sm:$0xff] %vm1123, %v1106
    %1170 = vst.msk [vmem:[#allocation2 + $0x170] sm:$0xff] %vm1123, %v1107
    %1171 = vst.msk [vmem:[#allocation2 + $0x178] sm:$0xff] %vm1123, %v1108
    %1172 = vst.msk [vmem:[#allocation2 + $0x180] sm:$0xff] %vm1123, %v1109
    %1173 = vst.msk [vmem:[#allocation2 + $0x188] sm:$0xff] %vm1123, %v1110
    %1174 = vst.msk [vmem:[#allocation2 + $0x190] sm:$0xff] %vm1123, %v1111
    %1175 = vst.msk [vmem:[#allocation2 + $0x198] sm:$0xff] %vm1123, %v1112
    %1176 = vst.msk [vmem:[#allocation2 + $0x1a0] sm:$0xff] %vm1123, %v1113
    %1177 = vst.msk [vmem:[#allocation2 + $0x1a8] sm:$0xff] %vm1123, %v1114
    %1178 = vst.msk [vmem:[#allocation2 + $0x1b0] sm:$0xff] %vm1123, %v1115
    %1179 = vst.msk [vmem:[#allocation2 + $0x1b8] sm:$0xff] %vm1123, %v1116
    %1180 = vst.msk [vmem:[#allocation2 + $0x1c0] sm:$0xff] %vm1123, %v1117
    %1181 = vst.msk [vmem:[#allocation2 + $0x1c8] sm:$0xff] %vm1123, %v1118
    %1182 = vst.msk [vmem:[#allocation2 + $0x1d0] sm:$0xff] %vm1123, %v1119
    %1183 = vst.msk [vmem:[#allocation2 + $0x1d8] sm:$0xff] %vm1123, %v1120
    %1184 = vst.msk [vmem:[#allocation2 + $0x1e0] sm:$0xff] %vm1123, %v1121
    %vm1185 = vcmask 129024
    %1186 = vst.msk [vmem:[#allocation2 + $0x1e8] sm:$0x7f] %vm1185, %v1122
    %1187 = vst.msk [vmem:[#allocation3] sm:$0xff] %vm1123, 0.0
    %1188 = vst.msk [vmem:[#allocation3 + $0x8] sm:$0xff] %vm1123, 0.0
    %1189 = vst.msk [vmem:[#allocation3 + $0x10] sm:$0xff] %vm1123, 0.0
    %1190 = vst.msk [vmem:[#allocation3 + $0x18] sm:$0xff] %vm1123, 0.0
    %1191 = vst.msk [vmem:[#allocation3 + $0x20] sm:$0xff] %vm1123, 0.0
    %1192 = vst.msk [vmem:[#allocation3 + $0x28] sm:$0xff] %vm1123, 0.0
    %1193 = vst.msk [vmem:[#allocation3 + $0x30] sm:$0xff] %vm1123, 0.0
    %1194 = vst.msk [vmem:[#allocation3 + $0x38] sm:$0xff] %vm1123, 0.0
    %1195 = vst.msk [vmem:[#allocation3 + $0x40] sm:$0xff] %vm1123, 0.0
    %1196 = vst.msk [vmem:[#allocation3 + $0x48] sm:$0xff] %vm1123, 0.0
    %1197 = vst.msk [vmem:[#allocation3 + $0x50] sm:$0xff] %vm1123, 0.0
    %1198 = vst.msk [vmem:[#allocation3 + $0x58] sm:$0xff] %vm1123, 0.0
    %1199 = vst.msk [vmem:[#allocation3 + $0x60] sm:$0xff] %vm1123, 0.0
    %1200 = vst.msk [vmem:[#allocation3 + $0x68] sm:$0xff] %vm1123, 0.0
    %1201 = vst.msk [vmem:[#allocation3 + $0x70] sm:$0xff] %vm1123, 0.0
    %1202 = vst.msk [vmem:[#allocation3 + $0x78] sm:$0xff] %vm1123, 0.0
    %1203 = vst.msk [vmem:[#allocation3 + $0x80] sm:$0xff] %vm1123, 0.0
    %1204 = vst.msk [vmem:[#allocation3 + $0x88] sm:$0xff] %vm1123, 0.0
    %1205 = vst.msk [vmem:[#allocation3 + $0x90] sm:$0xff] %vm1123, 0.0
    %1206 = vst.msk [vmem:[#allocation3 + $0x98] sm:$0xff] %vm1123, 0.0
    %1207 = vst.msk [vmem:[#allocation3 + $0xa0] sm:$0xff] %vm1123, 0.0
    %1208 = vst.msk [vmem:[#allocation3 + $0xa8] sm:$0xff] %vm1123, 0.0
    %1209 = vst.msk [vmem:[#allocation3 + $0xb0] sm:$0xff] %vm1123, 0.0
    %1210 = vst.msk [vmem:[#allocation3 + $0xb8] sm:$0xff] %vm1123, 0.0
    %1211 = vst.msk [vmem:[#allocation3 + $0xc0] sm:$0xff] %vm1123, 0.0
    %vm1212 = vcmask 125952
    %1213 = vst.msk [vmem:[#allocation3 + $0xc8] sm:$0xf] %vm1212, 0.0
    %v1214 = vld [vmem:[#allocation2] ss:$2 sm:$0xff]
    %1215 = vst.msk [vmem:[#allocation3 + $0xc] sm:$0xff] %vm1123, %v1214
    %s1216 = scalar_lea.vmem [#allocation2], 32
    %v1217 = vld [vmem:[%s1216] ss:$2 sm:$0xff]
    %1218 = vst.msk [vmem:[#allocation3 + $0x16] sm:$0xff] %vm1123, %v1217
    %s1219 = scalar_lea.vmem [#allocation2], 64
    %v1220 = vld [vmem:[%s1219] ss:$2 sm:$0xff]
    %1221 = vst.msk [vmem:[#allocation3 + $0x20] sm:$0xff] %vm1123, %v1220
    %s1222 = scalar_lea.vmem [#allocation2], 96
    %v1223 = vld [vmem:[%s1222] ss:$2 sm:$0xff]
    %1224 = vst.msk [vmem:[#allocation3 + $0x2a] sm:$0xff] %vm1123, %v1223
    %s1225 = scalar_lea.vmem [#allocation2], 128
    %v1226 = vld [vmem:[%s1225] ss:$2 sm:$0xff]
    %1227 = vst.msk [vmem:[#allocation3 + $0x34] sm:$0xff] %vm1123, %v1226
    %s1228 = scalar_lea.vmem [#allocation2], 160
    %v1229 = vld [vmem:[%s1228] ss:$2 sm:$0xff]
    %1230 = vst.msk [vmem:[#allocation3 + $0x3e] sm:$0xff] %vm1123, %v1229
    %s1231 = scalar_lea.vmem [#allocation2], 192
    %v1232 = vld [vmem:[%s1231] ss:$2 sm:$0xff]
    %1233 = vst.msk [vmem:[#allocation3 + $0x48] sm:$0xff] %vm1123, %v1232
    %s1234 = scalar_lea.vmem [#allocation2], 224
    %v1235 = vld [vmem:[%s1234] ss:$2 sm:$0xff]
    %1236 = vst.msk [vmem:[#allocation3 + $0x52] sm:$0xff] %vm1123, %v1235
    %s1237 = scalar_lea.vmem [#allocation2], 256
    %v1238 = vld [vmem:[%s1237] ss:$2 sm:$0xff]
    %1239 = vst.msk [vmem:[#allocation3 + $0x72] sm:$0xff] %vm1123, %v1238
    %s1240 = scalar_lea.vmem [#allocation2], 288
    %v1241 = vld [vmem:[%s1240] ss:$2 sm:$0xff]
    %1242 = vst.msk [vmem:[#allocation3 + $0x7c] sm:$0xff] %vm1123, %v1241
    %s1243 = scalar_lea.vmem [#allocation2], 320
    %v1244 = vld [vmem:[%s1243] ss:$2 sm:$0xff]
    %1245 = vst.msk [vmem:[#allocation3 + $0x86] sm:$0xff] %vm1123, %v1244
    %s1246 = scalar_lea.vmem [#allocation2], 352
    %v1247 = vld [vmem:[%s1246] ss:$2 sm:$0xff]
    %1248 = vst.msk [vmem:[#allocation3 + $0x90] sm:$0xff] %vm1123, %v1247
    %s1249 = scalar_lea.vmem [#allocation2], 384
    %v1250 = vld [vmem:[%s1249] ss:$2 sm:$0xff]
    %1251 = vst.msk [vmem:[#allocation3 + $0x9a] sm:$0xff] %vm1123, %v1250
    %s1252 = scalar_lea.vmem [#allocation2], 416
    %v1253 = vld [vmem:[%s1252] ss:$2 sm:$0xff]
    %1254 = vst.msk [vmem:[#allocation3 + $0xa4] sm:$0xff] %vm1123, %v1253
    %s1255 = scalar_lea.vmem [#allocation2], 448
    %v1256 = vld [vmem:[%s1255] ss:$2 sm:$0xff]
    %1257 = vst.msk [vmem:[#allocation3 + $0xae] sm:$0xff] %vm1123, %v1256
    %s1258 = scalar_lea.vmem [#allocation2], 480
    %v1259 = vld [vmem:[%s1258] ss:$2 sm:$0xff]
    %1260 = vst.msk [vmem:[#allocation3 + $0xb8] sm:$0xff] %vm1123, %v1259
    %v1261 = vld [vmem:[#allocation3] sm:$0xff]
    %v1262 = vld [vmem:[#allocation3 + $0x8] sm:$0xff]
    %v1263 = vld [vmem:[#allocation3 + $0x10] sm:$0xff]
    %v1264 = vld [vmem:[#allocation3 + $0x18] sm:$0xff]
    %v1265 = vld [vmem:[#allocation3 + $0x20] sm:$0xff]
    %v1266 = vld [vmem:[#allocation3 + $0x28] sm:$0xff]
    %v1267 = vld [vmem:[#allocation3 + $0x30] sm:$0xff]
    %v1268 = vld [vmem:[#allocation3 + $0x38] sm:$0xff]
    %v1269 = vld [vmem:[#allocation3 + $0x40] sm:$0xff]
    %v1270 = vld [vmem:[#allocation3 + $0x48] sm:$0xff]
    %v1271 = vld [vmem:[#allocation3 + $0x50] sm:$0xff]
    %v1272 = vld [vmem:[#allocation3 + $0x58] sm:$0xff]
    %v1273 = vld [vmem:[#allocation3 + $0x60] sm:$0xff]
    %v1274 = vld [vmem:[#allocation3 + $0x68] sm:$0xff]
    %v1275 = vld [vmem:[#allocation3 + $0x70] sm:$0xff]
    %v1276 = vld [vmem:[#allocation3 + $0x78] sm:$0xff]
    %v1277 = vld [vmem:[#allocation3 + $0x80] sm:$0xff]
    %v1278 = vld [vmem:[#allocation3 + $0x88] sm:$0xff]
    %v1279 = vld [vmem:[#allocation3 + $0x90] sm:$0xff]
    %v1280 = vld [vmem:[#allocation3 + $0x98] sm:$0xff]
    %v1281 = vld [vmem:[#allocation3 + $0xa0] sm:$0xff]
    %v1282 = vld [vmem:[#allocation3 + $0xa8] sm:$0xff]
    %v1283 = vld [vmem:[#allocation3 + $0xb0] sm:$0x3f]
    %v1284 = vld [vmem:[%s3] sm:$0xff]
    %v1285 = vld [vmem:[%s3 + $0x8] sm:$0xff]
    %v1286 = vld [vmem:[#allocation3 + $0x1] sm:$0xff]
    %v1287 = vld [vmem:[#allocation3 + $0x9] sm:$0xff]
    %v1288 = vld [vmem:[#allocation3 + $0x11] sm:$0xff]
    %v1289 = vld [vmem:[#allocation3 + $0x19] sm:$0xff]
    %v1290 = vld [vmem:[#allocation3 + $0x21] sm:$0xff]
    %v1291 = vld [vmem:[#allocation3 + $0x29] sm:$0xff]
    %v1292 = vld [vmem:[#allocation3 + $0x31] sm:$0xff]
    %v1293 = vld [vmem:[#allocation3 + $0x39] sm:$0xff]
    %v1294 = vld [vmem:[#allocation3 + $0x41] sm:$0xff]
    %v1295 = vld [vmem:[#allocation3 + $0x49] sm:$0xff]
    %v1296 = vld [vmem:[#allocation3 + $0x51] sm:$0xff]
    %v1297 = vld [vmem:[#allocation3 + $0x59] sm:$0xff]
    %v1298 = vld [vmem:[#allocation3 + $0x61] sm:$0xff]
    %v1299 = vld [vmem:[#allocation3 + $0x69] sm:$0xff]
    %v1300 = vld [vmem:[#allocation3 + $0x71] sm:$0xff]
    %v1301 = vld [vmem:[#allocation3 + $0x79] sm:$0xff]
    %v1302 = vld [vmem:[#allocation3 + $0x81] sm:$0xff]
    %v1303 = vld [vmem:[#allocation3 + $0x89] sm:$0xff]
    %v1304 = vld [vmem:[#allocation3 + $0x91] sm:$0xff]
    %v1305 = vld [vmem:[#allocation3 + $0x99] sm:$0xff]
    %v1306 = vld [vmem:[#allocation3 + $0xa1] sm:$0xff]
    %v1307 = vld [vmem:[#allocation3 + $0xa9] sm:$0xff]
    %v1308 = vld [vmem:[#allocation3 + $0xb1] sm:$0x3f]
    %s1309 = scalar_lea.vmem %s3, 16
    %v1310 = vld [vmem:[%s1309] sm:$0xff]
    %v1311 = vld [vmem:[%s1309 + $0x8] sm:$0xff]
    %v1313 = vsel %vm1123, %v1286, 0
    %v1316 = vsel %vm1123, %v1287, 0
    %v1319 = vsel %vm1123, %v1288, 0
    %v1322 = vsel %vm1123, %v1289, 0
    %v1325 = vsel %vm1123, %v1290, 0
    %v1328 = vsel %vm1123, %v1291, 0
    %v1331 = vsel %vm1123, %v1292, 0
    %v1334 = vsel %vm1123, %v1293, 0
    %v1337 = vsel %vm1123, %v1294, 0
    %v1340 = vsel %vm1123, %v1295, 0
    %v1343 = vsel %vm1123, %v1296, 0
    %v1346 = vsel %vm1123, %v1297, 0
    %v1349 = vsel %vm1123, %v1298, 0
    %v1352 = vsel %vm1123, %v1299, 0
    %v1355 = vsel %vm1123, %v1300, 0
    %v1358 = vsel %vm1123, %v1301, 0
    %v1361 = vsel %vm1123, %v1302, 0
    %v1364 = vsel %vm1123, %v1303, 0
    %v1367 = vsel %vm1123, %v1304, 0
    %v1370 = vsel %vm1123, %v1305, 0
    %v1373 = vsel %vm1123, %v1306, 0
    %v1376 = vsel %vm1123, %v1307, 0
    %v1379 = vsel %vm1123, %v1308, 0
    %1381 = vmatprep.subr.mxu0 0.0
    %1382 = vmatpush1.msra.mxu0 %v1310
    %1383 = vmatprep.subr.mxu0 0.0
    %1384 = vmatpush1.msra.mxu0 %v1311
    %1385 = vmatprep.subr.mxu0 0.0
    %1386 = vmatpush1.msra.mxu0 0.0
    %1387 = vmatprep.subr.mxu0 0.0
    %1388 = vmatpush1.msra.mxu0 0.0
    %1389 = vmatprep.subr.mxu0 0.0
    %1390 = vmatpush1.msra.mxu0 0.0
    %1391 = vmatprep.subr.mxu0 0.0
    %1392 = vmatpush1.msra.mxu0 0.0
    %1393 = vmatprep.subr.mxu0 0.0
    %1394 = vmatpush1.msra.mxu0 0.0
    %1395 = vmatprep.subr.mxu0 0.0
    %1396 = vmatpush1.msra.mxu0 0.0
    %1397 = vmatprep.subr.mxu0 0.0
    %1398 = vmatpush1.msra.mxu0 0.0
    %1399 = vmatprep.subr.mxu0 0.0
    %1400 = vmatpush1.msra.mxu0 0.0
    %1401 = vmatprep.subr.mxu0 0.0
    %1402 = vmatpush1.msra.mxu0 0.0
    %1403 = vmatprep.subr.mxu0 0.0
    %1404 = vmatpush1.msra.mxu0 0.0
    %1405 = vmatprep.subr.mxu0 0.0
    %1406 = vmatpush1.msra.mxu0 0.0
    %1407 = vmatprep.subr.mxu0 0.0
    %1408 = vmatpush1.msra.mxu0 0.0
    %1409 = vmatprep.subr.mxu0 0.0
    %1410 = vmatpush1.msra.mxu0 0.0
    %1411 = vmatprep.subr.mxu0 0.0
    %1412 = vmatpush1.msra.mxu0 0.0
    %1413 = vmatprep.subr.mxu0 0.0
    %1414 = vmatpush1.msra.mxu0 0.0
    %1415 = vmatprep.subr.mxu0 0.0
    %1416 = vmatpush1.msra.mxu0 0.0
    %1417 = vmatprep.subr.mxu0 0.0
    %1418 = vmatpush1.msra.mxu0 0.0
    %1419 = vmatprep.subr.mxu0 0.0
    %1420 = vmatpush1.msra.mxu0 0.0
    %1421 = vmatprep.subr.mxu0 0.0
    %1422 = vmatpush1.msra.mxu0 0.0
    %1423 = vmatprep.subr.mxu0 0.0
    %1424 = vmatpush1.msra.mxu0 0.0
    %1425 = vmatprep.subr.mxu0 0.0
    %1426 = vmatpush1.msra.mxu0 0.0
    %1427 = vmatprep.subr.mxu0 0.0
    %1428 = vmatpush1.msra.mxu0 0.0
    %1429 = vmatprep.subr.mxu0 0.0
    %1430 = vmatpush1.msra.mxu0 0.0
    %1431 = vmatprep.subr.mxu0 0.0
    %1432 = vmatpush1.msra.mxu0 0.0
    %1433 = vmatprep.subr.mxu0 0.0
    %1434 = vmatpush1.msra.mxu0 0.0
    %1435 = vmatprep.subr.mxu0 0.0
    %1436 = vmatpush1.msra.mxu0 0.0
    %1437 = vmatprep.subr.mxu0 0.0
    %1438 = vmatpush1.msra.mxu0 0.0
    %1439 = vmatprep.subr.mxu0 0.0
    %1440 = vmatpush1.msra.mxu0 0.0
    %1441 = vmatprep.subr.mxu0 0.0
    %1442 = vmatpush1.msra.mxu0 0.0
    %1443 = vmatprep.subr.mxu0 0.0
    %1444 = vmatpush1.msra.mxu0 0.0
    %1445 = vmatprep.mubr.f32.mxu0 0.0
    %1446 = vmatmul.mubr.f32.gmra.mrb[0].mxu0 %v1313
    %v1447 = vpop.f32.mrb[0].mxu0
    %v1448 = vadd.f32 0.0, %v1447
    %v1449 = vpop.f32.mrb[0].mxu0
    %1450 = vmatprep.mubr.f32.mxu0 0.0
    %1451 = vmatmul.mubr.f32.gmra.mrb[0].mxu0 %v1316
    %v1452 = vpop.f32.mrb[0].mxu0
    %v1453 = vadd.f32 0.0, %v1452
    %v1454 = vpop.f32.mrb[0].mxu0
    %1455 = vmatprep.mubr.f32.mxu0 0.0
    %1456 = vmatmul.mubr.f32.gmra.mrb[0].mxu0 %v1319
    %v1457 = vpop.f32.mrb[0].mxu0
    %v1458 = vadd.f32 0.0, %v1457
    %v1459 = vpop.f32.mrb[0].mxu0
    %1460 = vmatprep.mubr.f32.mxu0 0.0
    %1461 = vmatmul.mubr.f32.gmra.mrb[0].mxu0 %v1322
    %v1462 = vpop.f32.mrb[0].mxu0
    %v1463 = vadd.f32 0.0, %v1462
    %v1464 = vpop.f32.mrb[0].mxu0
    %1465 = vmatprep.mubr.f32.mxu0 0.0
    %1466 = vmatmul.mubr.f32.gmra.mrb[0].mxu0 %v1325
    %v1467 = vpop.f32.mrb[0].mxu0
    %v1468 = vadd.f32 0.0, %v1467
    %v1469 = vpop.f32.mrb[0].mxu0
    %1470 = vmatprep.mubr.f32.mxu0 0.0
    %1471 = vmatmul.mubr.f32.gmra.mrb[0].mxu0 %v1328
    %v1472 = vpop.f32.mrb[0].mxu0
    %v1473 = vadd.f32 0.0, %v1472
    %v1474 = vpop.f32.mrb[0].mxu0
    %1475 = vmatprep.mubr.f32.mxu0 0.0
    %1476 = vmatmul.mubr.f32.gmra.mrb[0].mxu0 %v1331
    %v1477 = vpop.f32.mrb[0].mxu0
    %v1478 = vadd.f32 0.0, %v1477
    %v1479 = vpop.f32.mrb[0].mxu0
    %1480 = vmatprep.mubr.f32.mxu0 0.0
    %1481 = vmatmul.mubr.f32.gmra.mrb[0].mxu0 %v1334
    %v1482 = vpop.f32.mrb[0].mxu0
    %v1483 = vadd.f32 0.0, %v1482
    %v1484 = vpop.f32.mrb[0].mxu0
    %1485 = vmatprep.mubr.f32.mxu0 0.0
    %1486 = vmatmul.mubr.f32.gmra.mrb[0].mxu0 %v1337
    %v1487 = vpop.f32.mrb[0].mxu0
    %v1488 = vadd.f32 0.0, %v1487
    %v1489 = vpop.f32.mrb[0].mxu0
    %1490 = vmatprep.mubr.f32.mxu0 0.0
    %1491 = vmatmul.mubr.f32.gmra.mrb[0].mxu0 %v1340
    %v1492 = vpop.f32.mrb[0].mxu0
    %v1493 = vadd.f32 0.0, %v1492
    %v1494 = vpop.f32.mrb[0].mxu0
    %1495 = vmatprep.mubr.f32.mxu0 0.0
    %1496 = vmatmul.mubr.f32.gmra.mrb[0].mxu0 %v1343
    %v1497 = vpop.f32.mrb[0].mxu0
    %v1498 = vadd.f32 0.0, %v1497
    %v1499 = vpop.f32.mrb[0].mxu0
    %1500 = vmatprep.mubr.f32.mxu0 0.0
    %1501 = vmatmul.mubr.f32.gmra.mrb[0].mxu0 %v1346
    %v1502 = vpop.f32.mrb[0].mxu0
    %v1503 = vadd.f32 0.0, %v1502
    %v1504 = vpop.f32.mrb[0].mxu0
    %1505 = vmatprep.mubr.f32.mxu0 0.0
    %1506 = vmatmul.mubr.f32.gmra.mrb[0].mxu0 %v1349
    %v1507 = vpop.f32.mrb[0].mxu0
    %v1508 = vadd.f32 0.0, %v1507
    %v1509 = vpop.f32.mrb[0].mxu0
    %1510 = vmatprep.mubr.f32.mxu0 0.0
    %1511 = vmatmul.mubr.f32.gmra.mrb[0].mxu0 %v1352
    %v1512 = vpop.f32.mrb[0].mxu0
    %v1513 = vadd.f32 0.0, %v1512
    %v1514 = vpop.f32.mrb[0].mxu0
    %1515 = vmatprep.mubr.f32.mxu0 0.0
    %1516 = vmatmul.mubr.f32.gmra.mrb[0].mxu0 %v1355
    %v1517 = vpop.f32.mrb[0].mxu0
    %v1518 = vadd.f32 0.0, %v1517
    %v1519 = vpop.f32.mrb[0].mxu0
    %1520 = vmatprep.mubr.f32.mxu0 0.0
    %1521 = vmatmul.mubr.f32.gmra.mrb[0].mxu0 %v1358
    %v1522 = vpop.f32.mrb[0].mxu0
    %v1523 = vadd.f32 0.0, %v1522
    %v1524 = vpop.f32.mrb[0].mxu0
    %1525 = vmatprep.mubr.f32.mxu0 0.0
    %1526 = vmatmul.mubr.f32.gmra.mrb[0].mxu0 %v1361
    %v1527 = vpop.f32.mrb[0].mxu0
    %v1528 = vadd.f32 0.0, %v1527
    %v1529 = vpop.f32.mrb[0].mxu0
    %1530 = vmatprep.mubr.f32.mxu0 0.0
    %1531 = vmatmul.mubr.f32.gmra.mrb[0].mxu0 %v1364
    %v1532 = vpop.f32.mrb[0].mxu0
    %v1533 = vadd.f32 0.0, %v1532
    %v1534 = vpop.f32.mrb[0].mxu0
    %1535 = vmatprep.mubr.f32.mxu0 0.0
    %1536 = vmatmul.mubr.f32.gmra.mrb[0].mxu0 %v1367
    %v1537 = vpop.f32.mrb[0].mxu0
    %v1538 = vadd.f32 0.0, %v1537
    %v1539 = vpop.f32.mrb[0].mxu0
    %1540 = vmatprep.mubr.f32.mxu0 0.0
    %1541 = vmatmul.mubr.f32.gmra.mrb[0].mxu0 %v1370
    %v1542 = vpop.f32.mrb[0].mxu0
    %v1543 = vadd.f32 0.0, %v1542
    %v1544 = vpop.f32.mrb[0].mxu0
    %1545 = vmatprep.mubr.f32.mxu0 0.0
    %1546 = vmatmul.mubr.f32.gmra.mrb[0].mxu0 %v1373
    %v1547 = vpop.f32.mrb[0].mxu0
    %v1548 = vadd.f32 0.0, %v1547
    %v1549 = vpop.f32.mrb[0].mxu0
    %1550 = vmatprep.mubr.f32.mxu0 0.0
    %1551 = vmatmul.mubr.f32.gmra.mrb[0].mxu0 %v1376
    %v1552 = vpop.f32.mrb[0].mxu0
    %v1553 = vadd.f32 0.0, %v1552
    %v1554 = vpop.f32.mrb[0].mxu0
    %1555 = vmatprep.mubr.f32.mxu0 0.0
    %1556 = vmatmul.mubr.f32.gmra.mrb[0].mxu0 %v1379
    %v1557 = vpop.f32.mrb[0].mxu0
    %v1558 = vadd.f32 0.0, %v1557
    %v1559 = vpop.f32.mrb[0].mxu0
    %1560 = vdwg.mxu0
    %v1562 = vsel %vm1123, %v1261, 0
    %v1565 = vsel %vm1123, %v1262, 0
    %v1568 = vsel %vm1123, %v1263, 0
    %v1571 = vsel %vm1123, %v1264, 0
    %v1574 = vsel %vm1123, %v1265, 0
    %v1577 = vsel %vm1123, %v1266, 0
    %v1580 = vsel %vm1123, %v1267, 0
    %v1583 = vsel %vm1123, %v1268, 0
    %v1586 = vsel %vm1123, %v1269, 0
    %v1589 = vsel %vm1123, %v1270, 0
    %v1592 = vsel %vm1123, %v1271, 0
    %v1595 = vsel %vm1123, %v1272, 0
    %v1598 = vsel %vm1123, %v1273, 0
    %v1601 = vsel %vm1123, %v1274, 0
    %v1604 = vsel %vm1123, %v1275, 0
    %v1607 = vsel %vm1123, %v1276, 0
    %v1610 = vsel %vm1123, %v1277, 0
    %v1613 = vsel %vm1123, %v1278, 0
    %v1616 = vsel %vm1123, %v1279, 0
    %v1619 = vsel %vm1123, %v1280, 0
    %v1622 = vsel %vm1123, %v1281, 0
    %v1625 = vsel %vm1123, %v1282, 0
    %v1628 = vsel %vm1123, %v1283, 0
    %1630 = vmatprep.subr.mxu0 0.0
    %1631 = vmatpush1.msra.mxu0 %v1284
    %1632 = vmatprep.subr.mxu0 0.0
    %1633 = vmatpush1.msra.mxu0 %v1285
    %1634 = vmatprep.subr.mxu0 0.0
    %1635 = vmatpush1.msra.mxu0 0.0
    %1636 = vmatprep.subr.mxu0 0.0
    %1637 = vmatpush1.msra.mxu0 0.0
    %1638 = vmatprep.subr.mxu0 0.0
    %1639 = vmatpush1.msra.mxu0 0.0
    %1640 = vmatprep.subr.mxu0 0.0
    %1641 = vmatpush1.msra.mxu0 0.0
    %1642 = vmatprep.subr.mxu0 0.0
    %1643 = vmatpush1.msra.mxu0 0.0
    %1644 = vmatprep.subr.mxu0 0.0
    %1645 = vmatpush1.msra.mxu0 0.0
    %1646 = vmatprep.subr.mxu0 0.0
    %1647 = vmatpush1.msra.mxu0 0.0
    %1648 = vmatprep.subr.mxu0 0.0
    %1649 = vmatpush1.msra.mxu0 0.0
    %1650 = vmatprep.subr.mxu0 0.0
    %1651 = vmatpush1.msra.mxu0 0.0
    %1652 = vmatprep.subr.mxu0 0.0
    %1653 = vmatpush1.msra.mxu0 0.0
    %1654 = vmatprep.subr.mxu0 0.0
    %1655 = vmatpush1.msra.mxu0 0.0
    %1656 = vmatprep.subr.mxu0 0.0
    %1657 = vmatpush1.msra.mxu0 0.0
    %1658 = vmatprep.subr.mxu0 0.0
    %1659 = vmatpush1.msra.mxu0 0.0
    %1660 = vmatprep.subr.mxu0 0.0
    %1661 = vmatpush1.msra.mxu0 0.0
    %1662 = vmatprep.subr.mxu0 0.0
    %1663 = vmatpush1.msra.mxu0 0.0
    %1664 = vmatprep.subr.mxu0 0.0
    %1665 = vmatpush1.msra.mxu0 0.0
    %1666 = vmatprep.subr.mxu0 0.0
    %1667 = vmatpush1.msra.mxu0 0.0
    %1668 = vmatprep.subr.mxu0 0.0
    %1669 = vmatpush1.msra.mxu0 0.0
    %1670 = vmatprep.subr.mxu0 0.0
    %1671 = vmatpush1.msra.mxu0 0.0
    %1672 = vmatprep.subr.mxu0 0.0
    %1673 = vmatpush1.msra.mxu0 0.0
    %1674 = vmatprep.subr.mxu0 0.0
    %1675 = vmatpush1.msra.mxu0 0.0
    %1676 = vmatprep.subr.mxu0 0.0
    %1677 = vmatpush1.msra.mxu0 0.0
    %1678 = vmatprep.subr.mxu0 0.0
    %1679 = vmatpush1.msra.mxu0 0.0
    %1680 = vmatprep.subr.mxu0 0.0
    %1681 = vmatpush1.msra.mxu0 0.0
    %1682 = vmatprep.subr.mxu0 0.0
    %1683 = vmatpush1.msra.mxu0 0.0
    %1684 = vmatprep.subr.mxu0 0.0
    %1685 = vmatpush1.msra.mxu0 0.0
    %1686 = vmatprep.subr.mxu0 0.0
    %1687 = vmatpush1.msra.mxu0 0.0
    %1688 = vmatprep.subr.mxu0 0.0
    %1689 = vmatpush1.msra.mxu0 0.0
    %1690 = vmatprep.subr.mxu0 0.0
    %1691 = vmatpush1.msra.mxu0 0.0
    %1692 = vmatprep.subr.mxu0 0.0
    %1693 = vmatpush1.msra.mxu0 0.0
    %1694 = vmatprep.mubr.f32.mxu0 0.0
    %1695 = vmatmul.mubr.f32.gmra.mrb[0].mxu0 %v1562
    %v1696 = vpop.f32.mrb[0].mxu0
    %v1697 = vadd.f32 %v1448, %v1696
    %v1698 = vpop.f32.mrb[0].mxu0
    %1699 = vmatprep.mubr.f32.mxu0 0.0
    %1700 = vmatmul.mubr.f32.gmra.mrb[0].mxu0 %v1565
    %v1701 = vpop.f32.mrb[0].mxu0
    %v1702 = vadd.f32 %v1453, %v1701
    %v1703 = vpop.f32.mrb[0].mxu0
    %1704 = vmatprep.mubr.f32.mxu0 0.0
    %1705 = vmatmul.mubr.f32.gmra.mrb[0].mxu0 %v1568
    %v1706 = vpop.f32.mrb[0].mxu0
    %v1707 = vadd.f32 %v1458, %v1706
    %v1708 = vpop.f32.mrb[0].mxu0
    %1709 = vmatprep.mubr.f32.mxu0 0.0
    %1710 = vmatmul.mubr.f32.gmra.mrb[0].mxu0 %v1571
    %v1711 = vpop.f32.mrb[0].mxu0
    %v1712 = vadd.f32 %v1463, %v1711
    %v1713 = vpop.f32.mrb[0].mxu0
    %1714 = vmatprep.mubr.f32.mxu0 0.0
    %1715 = vmatmul.mubr.f32.gmra.mrb[0].mxu0 %v1574
    %v1716 = vpop.f32.mrb[0].mxu0
    %v1717 = vadd.f32 %v1468, %v1716
    %v1718 = vpop.f32.mrb[0].mxu0
    %1719 = vmatprep.mubr.f32.mxu0 0.0
    %1720 = vmatmul.mubr.f32.gmra.mrb[0].mxu0 %v1577
    %v1721 = vpop.f32.mrb[0].mxu0
    %v1722 = vadd.f32 %v1473, %v1721
    %v1723 = vpop.f32.mrb[0].mxu0
    %1724 = vmatprep.mubr.f32.mxu0 0.0
    %1725 = vmatmul.mubr.f32.gmra.mrb[0].mxu0 %v1580
    %v1726 = vpop.f32.mrb[0].mxu0
    %v1727 = vadd.f32 %v1478, %v1726
    %v1728 = vpop.f32.mrb[0].mxu0
    %1729 = vmatprep.mubr.f32.mxu0 0.0
    %1730 = vmatmul.mubr.f32.gmra.mrb[0].mxu0 %v1583
    %v1731 = vpop.f32.mrb[0].mxu0
    %v1732 = vadd.f32 %v1483, %v1731
    %v1733 = vpop.f32.mrb[0].mxu0
    %1734 = vmatprep.mubr.f32.mxu0 0.0
    %1735 = vmatmul.mubr.f32.gmra.mrb[0].mxu0 %v1586
    %v1736 = vpop.f32.mrb[0].mxu0
    %v1737 = vadd.f32 %v1488, %v1736
    %v1738 = vpop.f32.mrb[0].mxu0
    %1739 = vmatprep.mubr.f32.mxu0 0.0
    %1740 = vmatmul.mubr.f32.gmra.mrb[0].mxu0 %v1589
    %v1741 = vpop.f32.mrb[0].mxu0
    %v1742 = vadd.f32 %v1493, %v1741
    %v1743 = vpop.f32.mrb[0].mxu0
    %1744 = vmatprep.mubr.f32.mxu0 0.0
    %1745 = vmatmul.mubr.f32.gmra.mrb[0].mxu0 %v1592
    %v1746 = vpop.f32.mrb[0].mxu0
    %v1747 = vadd.f32 %v1498, %v1746
    %v1748 = vpop.f32.mrb[0].mxu0
    %1749 = vmatprep.mubr.f32.mxu0 0.0
    %1750 = vmatmul.mubr.f32.gmra.mrb[0].mxu0 %v1595
    %v1751 = vpop.f32.mrb[0].mxu0
    %v1752 = vadd.f32 %v1503, %v1751
    %v1753 = vpop.f32.mrb[0].mxu0
    %1754 = vmatprep.mubr.f32.mxu0 0.0
    %1755 = vmatmul.mubr.f32.gmra.mrb[0].mxu0 %v1598
    %v1756 = vpop.f32.mrb[0].mxu0
    %v1757 = vadd.f32 %v1508, %v1756
    %v1758 = vpop.f32.mrb[0].mxu0
    %1759 = vmatprep.mubr.f32.mxu0 0.0
    %1760 = vmatmul.mubr.f32.gmra.mrb[0].mxu0 %v1601
    %v1761 = vpop.f32.mrb[0].mxu0
    %v1762 = vadd.f32 %v1513, %v1761
    %v1763 = vpop.f32.mrb[0].mxu0
    %1764 = vmatprep.mubr.f32.mxu0 0.0
    %1765 = vmatmul.mubr.f32.gmra.mrb[0].mxu0 %v1604
    %v1766 = vpop.f32.mrb[0].mxu0
    %v1767 = vadd.f32 %v1518, %v1766
    %v1768 = vpop.f32.mrb[0].mxu0
    %1769 = vmatprep.mubr.f32.mxu0 0.0
    %1770 = vmatmul.mubr.f32.gmra.mrb[0].mxu0 %v1607
    %v1771 = vpop.f32.mrb[0].mxu0
    %v1772 = vadd.f32 %v1523, %v1771
    %v1773 = vpop.f32.mrb[0].mxu0
    %1774 = vmatprep.mubr.f32.mxu0 0.0
    %1775 = vmatmul.mubr.f32.gmra.mrb[0].mxu0 %v1610
    %v1776 = vpop.f32.mrb[0].mxu0
    %v1777 = vadd.f32 %v1528, %v1776
    %v1778 = vpop.f32.mrb[0].mxu0
    %1779 = vmatprep.mubr.f32.mxu0 0.0
    %1780 = vmatmul.mubr.f32.gmra.mrb[0].mxu0 %v1613
    %v1781 = vpop.f32.mrb[0].mxu0
    %v1782 = vadd.f32 %v1533, %v1781
    %v1783 = vpop.f32.mrb[0].mxu0
    %1784 = vmatprep.mubr.f32.mxu0 0.0
    %1785 = vmatmul.mubr.f32.gmra.mrb[0].mxu0 %v1616
    %v1786 = vpop.f32.mrb[0].mxu0
    %v1787 = vadd.f32 %v1538, %v1786
    %v1788 = vpop.f32.mrb[0].mxu0
    %1789 = vmatprep.mubr.f32.mxu0 0.0
    %1790 = vmatmul.mubr.f32.gmra.mrb[0].mxu0 %v1619
    %v1791 = vpop.f32.mrb[0].mxu0
    %v1792 = vadd.f32 %v1543, %v1791
    %v1793 = vpop.f32.mrb[0].mxu0
    %1794 = vmatprep.mubr.f32.mxu0 0.0
    %1795 = vmatmul.mubr.f32.gmra.mrb[0].mxu0 %v1622
    %v1796 = vpop.f32.mrb[0].mxu0
    %v1797 = vadd.f32 %v1548, %v1796
    %v1798 = vpop.f32.mrb[0].mxu0
    %1799 = vmatprep.mubr.f32.mxu0 0.0
    %1800 = vmatmul.mubr.f32.gmra.mrb[0].mxu0 %v1625
    %v1801 = vpop.f32.mrb[0].mxu0
    %v1802 = vadd.f32 %v1553, %v1801
    %v1803 = vpop.f32.mrb[0].mxu0
    %1804 = vmatprep.mubr.f32.mxu0 0.0
    %1805 = vmatmul.mubr.f32.gmra.mrb[0].mxu0 %v1628
    %v1806 = vpop.f32.mrb[0].mxu0
    %v1807 = vadd.f32 %v1558, %v1806
    %v1808 = vpop.f32.mrb[0].mxu0
    %1809 = vdwg.mxu0
    %v1810 = vld [vmem:[#allocation3 + $0x2] sm:$0xff]
    %v1811 = vld [vmem:[#allocation3 + $0xa] sm:$0xff]
    %v1812 = vld [vmem:[#allocation3 + $0x12] sm:$0xff]
    %v1813 = vld [vmem:[#allocation3 + $0x1a] sm:$0xff]
    %v1814 = vld [vmem:[#allocation3 + $0x22] sm:$0xff]
    %v1815 = vld [vmem:[#allocation3 + $0x2a] sm:$0xff]
    %v1816 = vld [vmem:[#allocation3 + $0x32] sm:$0xff]
    %v1817 = vld [vmem:[#allocation3 + $0x3a] sm:$0xff]
    %v1818 = vld [vmem:[#allocation3 + $0x42] sm:$0xff]
    %v1819 = vld [vmem:[#allocation3 + $0x4a] sm:$0xff]
    %v1820 = vld [vmem:[#allocation3 + $0x52] sm:$0xff]
    %v1821 = vld [vmem:[#allocation3 + $0x5a] sm:$0xff]
    %v1822 = vld [vmem:[#allocation3 + $0x62] sm:$0xff]
    %v1823 = vld [vmem:[#allocation3 + $0x6a] sm:$0xff]
    %v1824 = vld [vmem:[#allocation3 + $0x72] sm:$0xff]
    %v1825 = vld [vmem:[#allocation3 + $0x7a] sm:$0xff]
    %v1826 = vld [vmem:[#allocation3 + $0x82] sm:$0xff]
    %v1827 = vld [vmem:[#allocation3 + $0x8a] sm:$0xff]
    %v1828 = vld [vmem:[#allocation3 + $0x92] sm:$0xff]
    %v1829 = vld [vmem:[#allocation3 + $0x9a] sm:$0xff]
    %v1830 = vld [vmem:[#allocation3 + $0xa2] sm:$0xff]
    %v1831 = vld [vmem:[#allocation3 + $0xaa] sm:$0xff]
    %v1832 = vld [vmem:[#allocation3 + $0xb2] sm:$0x3f]
    %s1833 = scalar_lea.vmem %s3, 32
    %v1834 = vld [vmem:[%s1833] sm:$0xff]
    %v1835 = vld [vmem:[%s1833 + $0x8] sm:$0xff]
    %v1837 = vsel %vm1123, %v1810, 0
    %v1840 = vsel %vm1123, %v1811, 0
    %v1843 = vsel %vm1123, %v1812, 0
    %v1846 = vsel %vm1123, %v1813, 0
    %v1849 = vsel %vm1123, %v1814, 0
    %v1852 = vsel %vm1123, %v1815, 0
    %v1855 = vsel %vm1123, %v1816, 0
    %v1858 = vsel %vm1123, %v1817, 0
    %v1861 = vsel %vm1123, %v1818, 0
    %v1864 = vsel %vm1123, %v1819, 0
    %v1867 = vsel %vm1123, %v1820, 0
    %v1870 = vsel %vm1123, %v1821, 0
    %v1873 = vsel %vm1123, %v1822, 0
    %v1876 = vsel %vm1123, %v1823, 0
    %v1879 = vsel %vm1123, %v1824, 0
    %v1882 = vsel %vm1123, %v1825, 0
    %v1885 = vsel %vm1123, %v1826, 0
    %v1888 = vsel %vm1123, %v1827, 0
    %v1891 = vsel %vm1123, %v1828, 0
    %v1894 = vsel %vm1123, %v1829, 0
    %v1897 = vsel %vm1123, %v1830, 0
    %v1900 = vsel %vm1123, %v1831, 0
    %v1903 = vsel %vm1123, %v1832, 0
    %1905 = vmatprep.subr.mxu0 0.0
    %1906 = vmatpush1.msra.mxu0 %v1834
    %1907 = vmatprep.subr.mxu0 0.0
    %1908 = vmatpush1.msra.mxu0 %v1835
    %1909 = vmatprep.subr.mxu0 0.0
    %1910 = vmatpush1.msra.mxu0 0.0
    %1911 = vmatprep.subr.mxu0 0.0
    %1912 = vmatpush1.msra.mxu0 0.0
    %1913 = vmatprep.subr.mxu0 0.0
    %1914 = vmatpush1.msra.mxu0 0.0
    %1915 = vmatprep.subr.mxu0 0.0
    %1916 = vmatpush1.msra.mxu0 0.0
    %1917 = vmatprep.subr.mxu0 0.0
    %1918 = vmatpush1.msra.mxu0 0.0
    %1919 = vmatprep.subr.mxu0 0.0
    %1920 = vmatpush1.msra.mxu0 0.0
    %1921 = vmatprep.subr.mxu0 0.0
    %1922 = vmatpush1.msra.mxu0 0.0
    %1923 = vmatprep.subr.mxu0 0.0
    %1924 = vmatpush1.msra.mxu0 0.0
    %1925 = vmatprep.subr.mxu0 0.0
    %1926 = vmatpush1.msra.mxu0 0.0
    %1927 = vmatprep.subr.mxu0 0.0
    %1928 = vmatpush1.msra.mxu0 0.0
    %1929 = vmatprep.subr.mxu0 0.0
    %1930 = vmatpush1.msra.mxu0 0.0
    %1931 = vmatprep.subr.mxu0 0.0
    %1932 = vmatpush1.msra.mxu0 0.0
    %1933 = vmatprep.subr.mxu0 0.0
    %1934 = vmatpush1.msra.mxu0 0.0
    %1935 = vmatprep.subr.mxu0 0.0
    %1936 = vmatpush1.msra.mxu0 0.0
    %1937 = vmatprep.subr.mxu0 0.0
    %1938 = vmatpush1.msra.mxu0 0.0
    %1939 = vmatprep.subr.mxu0 0.0
    %1940 = vmatpush1.msra.mxu0 0.0
    %1941 = vmatprep.subr.mxu0 0.0
    %1942 = vmatpush1.msra.mxu0 0.0
    %1943 = vmatprep.subr.mxu0 0.0
    %1944 = vmatpush1.msra.mxu0 0.0
    %1945 = vmatprep.subr.mxu0 0.0
    %1946 = vmatpush1.msra.mxu0 0.0
    %1947 = vmatprep.subr.mxu0 0.0
    %1948 = vmatpush1.msra.mxu0 0.0
    %1949 = vmatprep.subr.mxu0 0.0
    %1950 = vmatpush1.msra.mxu0 0.0
    %1951 = vmatprep.subr.mxu0 0.0
    %1952 = vmatpush1.msra.mxu0 0.0
    %1953 = vmatprep.subr.mxu0 0.0
    %1954 = vmatpush1.msra.mxu0 0.0
    %1955 = vmatprep.subr.mxu0 0.0
    %1956 = vmatpush1.msra.mxu0 0.0
    %1957 = vmatprep.subr.mxu0 0.0
    %1958 = vmatpush1.msra.mxu0 0.0
    %1959 = vmatprep.subr.mxu0 0.0
    %1960 = vmatpush1.msra.mxu0 0.0
    %1961 = vmatprep.subr.mxu0 0.0
    %1962 = vmatpush1.msra.mxu0 0.0
    %1963 = vmatprep.subr.mxu0 0.0
    %1964 = vmatpush1.msra.mxu0 0.0
    %1965 = vmatprep.subr.mxu0 0.0
    %1966 = vmatpush1.msra.mxu0 0.0
    %1967 = vmatprep.subr.mxu0 0.0
    %1968 = vmatpush1.msra.mxu0 0.0
    %1969 = vmatprep.mubr.f32.mxu0 0.0
    %1970 = vmatmul.mubr.f32.gmra.mrb[0].mxu0 %v1837
    %v1971 = vpop.f32.mrb[0].mxu0
    %v1972 = vadd.f32 0.0, %v1971
    %v1973 = vpop.f32.mrb[0].mxu0
    %1974 = vmatprep.mubr.f32.mxu0 0.0
    %1975 = vmatmul.mubr.f32.gmra.mrb[0].mxu0 %v1840
    %v1976 = vpop.f32.mrb[0].mxu0
    %v1977 = vadd.f32 0.0, %v1976
    %v1978 = vpop.f32.mrb[0].mxu0
    %1979 = vmatprep.mubr.f32.mxu0 0.0
    %1980 = vmatmul.mubr.f32.gmra.mrb[0].mxu0 %v1843
    %v1981 = vpop.f32.mrb[0].mxu0
    %v1982 = vadd.f32 0.0, %v1981
    %v1983 = vpop.f32.mrb[0].mxu0
    %1984 = vmatprep.mubr.f32.mxu0 0.0
    %1985 = vmatmul.mubr.f32.gmra.mrb[0].mxu0 %v1846
    %v1986 = vpop.f32.mrb[0].mxu0
    %v1987 = vadd.f32 0.0, %v1986
    %v1988 = vpop.f32.mrb[0].mxu0
    %1989 = vmatprep.mubr.f32.mxu0 0.0
    %1990 = vmatmul.mubr.f32.gmra.mrb[0].mxu0 %v1849
    %v1991 = vpop.f32.mrb[0].mxu0
    %v1992 = vadd.f32 0.0, %v1991
    %v1993 = vpop.f32.mrb[0].mxu0
    %1994 = vmatprep.mubr.f32.mxu0 0.0
    %1995 = vmatmul.mubr.f32.gmra.mrb[0].mxu0 %v1852
    %v1996 = vpop.f32.mrb[0].mxu0
    %v1997 = vadd.f32 0.0, %v1996
    %v1998 = vpop.f32.mrb[0].mxu0
    %1999 = vmatprep.mubr.f32.mxu0 0.0
    %2000 = vmatmul.mubr.f32.gmra.mrb[0].mxu0 %v1855
    %v2001 = vpop.f32.mrb[0].mxu0
    %v2002 = vadd.f32 0.0, %v2001
    %v2003 = vpop.f32.mrb[0].mxu0
    %2004 = vmatprep.mubr.f32.mxu0 0.0
    %2005 = vmatmul.mubr.f32.gmra.mrb[0].mxu0 %v1858
    %v2006 = vpop.f32.mrb[0].mxu0
    %v2007 = vadd.f32 0.0, %v2006
    %v2008 = vpop.f32.mrb[0].mxu0
    %2009 = vmatprep.mubr.f32.mxu0 0.0
    %2010 = vmatmul.mubr.f32.gmra.mrb[0].mxu0 %v1861
    %v2011 = vpop.f32.mrb[0].mxu0
    %v2012 = vadd.f32 0.0, %v2011
    %v2013 = vpop.f32.mrb[0].mxu0
    %2014 = vmatprep.mubr.f32.mxu0 0.0
    %2015 = vmatmul.mubr.f32.gmra.mrb[0].mxu0 %v1864
    %v2016 = vpop.f32.mrb[0].mxu0
    %v2017 = vadd.f32 0.0, %v2016
    %v2018 = vpop.f32.mrb[0].mxu0
    %2019 = vmatprep.mubr.f32.mxu0 0.0
    %2020 = vmatmul.mubr.f32.gmra.mrb[0].mxu0 %v1867
    %v2021 = vpop.f32.mrb[0].mxu0
    %v2022 = vadd.f32 0.0, %v2021
    %v2023 = vpop.f32.mrb[0].mxu0
    %2024 = vmatprep.mubr.f32.mxu0 0.0
    %2025 = vmatmul.mubr.f32.gmra.mrb[0].mxu0 %v1870
    %v2026 = vpop.f32.mrb[0].mxu0
    %v2027 = vadd.f32 0.0, %v2026
    %v2028 = vpop.f32.mrb[0].mxu0
    %2029 = vmatprep.mubr.f32.mxu0 0.0
    %2030 = vmatmul.mubr.f32.gmra.mrb[0].mxu0 %v1873
    %v2031 = vpop.f32.mrb[0].mxu0
    %v2032 = vadd.f32 0.0, %v2031
    %v2033 = vpop.f32.mrb[0].mxu0
    %2034 = vmatprep.mubr.f32.mxu0 0.0
    %2035 = vmatmul.mubr.f32.gmra.mrb[0].mxu0 %v1876
    %v2036 = vpop.f32.mrb[0].mxu0
    %v2037 = vadd.f32 0.0, %v2036
    %v2038 = vpop.f32.mrb[0].mxu0
    %2039 = vmatprep.mubr.f32.mxu0 0.0
    %2040 = vmatmul.mubr.f32.gmra.mrb[0].mxu0 %v1879
    %v2041 = vpop.f32.mrb[0].mxu0
    %v2042 = vadd.f32 0.0, %v2041
    %v2043 = vpop.f32.mrb[0].mxu0
    %2044 = vmatprep.mubr.f32.mxu0 0.0
    %2045 = vmatmul.mubr.f32.gmra.mrb[0].mxu0 %v1882
    %v2046 = vpop.f32.mrb[0].mxu0
    %v2047 = vadd.f32 0.0, %v2046
    %v2048 = vpop.f32.mrb[0].mxu0
    %2049 = vmatprep.mubr.f32.mxu0 0.0
    %2050 = vmatmul.mubr.f32.gmra.mrb[0].mxu0 %v1885
    %v2051 = vpop.f32.mrb[0].mxu0
    %v2052 = vadd.f32 0.0, %v2051
    %v2053 = vpop.f32.mrb[0].mxu0
    %2054 = vmatprep.mubr.f32.mxu0 0.0
    %2055 = vmatmul.mubr.f32.gmra.mrb[0].mxu0 %v1888
    %v2056 = vpop.f32.mrb[0].mxu0
    %v2057 = vadd.f32 0.0, %v2056
    %v2058 = vpop.f32.mrb[0].mxu0
    %2059 = vmatprep.mubr.f32.mxu0 0.0
    %2060 = vmatmul.mubr.f32.gmra.mrb[0].mxu0 %v1891
    %v2061 = vpop.f32.mrb[0].mxu0
    %v2062 = vadd.f32 0.0, %v2061
    %v2063 = vpop.f32.mrb[0].mxu0
    %2064 = vmatprep.mubr.f32.mxu0 0.0
    %2065 = vmatmul.mubr.f32.gmra.mrb[0].mxu0 %v1894
    %v2066 = vpop.f32.mrb[0].mxu0
    %v2067 = vadd.f32 0.0, %v2066
    %v2068 = vpop.f32.mrb[0].mxu0
    %2069 = vmatprep.mubr.f32.mxu0 0.0
    %2070 = vmatmul.mubr.f32.gmra.mrb[0].mxu0 %v1897
    %v2071 = vpop.f32.mrb[0].mxu0
    %v2072 = vadd.f32 0.0, %v2071
    %v2073 = vpop.f32.mrb[0].mxu0
    %2074 = vmatprep.mubr.f32.mxu0 0.0
    %2075 = vmatmul.mubr.f32.gmra.mrb[0].mxu0 %v1900
    %v2076 = vpop.f32.mrb[0].mxu0
    %v2077 = vadd.f32 0.0, %v2076
    %v2078 = vpop.f32.mrb[0].mxu0
    %2079 = vmatprep.mubr.f32.mxu0 0.0
    %2080 = vmatmul.mubr.f32.gmra.mrb[0].mxu0 %v1903
    %v2081 = vpop.f32.mrb[0].mxu0
    %v2082 = vadd.f32 0.0, %v2081
    %v2083 = vpop.f32.mrb[0].mxu0
    %2084 = vdwg.mxu0
    %v2085 = vadd.f32 %v1697, %v1972
    %v2086 = vadd.f32 %v1702, %v1977
    %v2087 = vadd.f32 %v1707, %v1982
    %v2088 = vadd.f32 %v1712, %v1987
    %v2089 = vadd.f32 %v1717, %v1992
    %v2090 = vadd.f32 %v1722, %v1997
    %v2091 = vadd.f32 %v1727, %v2002
    %v2092 = vadd.f32 %v1732, %v2007
    %v2093 = vadd.f32 %v1737, %v2012
    %v2094 = vadd.f32 %v1742, %v2017
    %v2095 = vadd.f32 %v1747, %v2022
    %v2096 = vadd.f32 %v1752, %v2027
    %v2097 = vadd.f32 %v1757, %v2032
    %v2098 = vadd.f32 %v1762, %v2037
    %v2099 = vadd.f32 %v1767, %v2042
    %v2100 = vadd.f32 %v1772, %v2047
    %v2101 = vadd.f32 %v1777, %v2052
    %v2102 = vadd.f32 %v1782, %v2057
    %v2103 = vadd.f32 %v1787, %v2062
    %v2104 = vadd.f32 %v1792, %v2067
    %v2105 = vadd.f32 %v1797, %v2072
    %v2106 = vadd.f32 %v1802, %v2077
    %v2107 = vadd.f32 %v1807, %v2082
    %v2108 = vld [vmem:[#allocation3 + $0xa] sm:$0xff]
    %v2109 = vld [vmem:[#allocation3 + $0x12] sm:$0xff]
    %v2110 = vld [vmem:[#allocation3 + $0x1a] sm:$0xff]
    %v2111 = vld [vmem:[#allocation3 + $0x22] sm:$0xff]
    %v2112 = vld [vmem:[#allocation3 + $0x2a] sm:$0xff]
    %v2113 = vld [vmem:[#allocation3 + $0x32] sm:$0xff]
    %v2114 = vld [vmem:[#allocation3 + $0x3a] sm:$0xff]
    %v2115 = vld [vmem:[#allocation3 + $0x42] sm:$0xff]
    %v2116 = vld [vmem:[#allocation3 + $0x4a] sm:$0xff]
    %v2117 = vld [vmem:[#allocation3 + $0x52] sm:$0xff]
    %v2118 = vld [vmem:[#allocation3 + $0x5a] sm:$0xff]
    %v2119 = vld [vmem:[#allocation3 + $0x62] sm:$0xff]
    %v2120 = vld [vmem:[#allocation3 + $0x6a] sm:$0xff]
    %v2121 = vld [vmem:[#allocation3 + $0x72] sm:$0xff]
    %v2122 = vld [vmem:[#allocation3 + $0x7a] sm:$0xff]
    %v2123 = vld [vmem:[#allocation3 + $0x82] sm:$0xff]
    %v2124 = vld [vmem:[#allocation3 + $0x8a] sm:$0xff]
    %v2125 = vld [vmem:[#allocation3 + $0x92] sm:$0xff]
    %v2126 = vld [vmem:[#allocation3 + $0x9a] sm:$0xff]
    %v2127 = vld [vmem:[#allocation3 + $0xa2] sm:$0xff]
    %v2128 = vld [vmem:[#allocation3 + $0xaa] sm:$0xff]
    %v2129 = vld [vmem:[#allocation3 + $0xb2] sm:$0xff]
    %v2130 = vld [vmem:[#allocation3 + $0xba] sm:$0x3f]
    %s2131 = scalar_lea.vmem %s3, 48
    %v2132 = vld [vmem:[%s2131] sm:$0xff]
    %v2133 = vld [vmem:[%s2131 + $0x8] sm:$0xff]
    %v2135 = vsel %vm1123, %v2108, 0
    %v2138 = vsel %vm1123, %v2109, 0
    %v2141 = vsel %vm1123, %v2110, 0
    %v2144 = vsel %vm1123, %v2111, 0
    %v2147 = vsel %vm1123, %v2112, 0
    %v2150 = vsel %vm1123, %v2113, 0
    %v2153 = vsel %vm1123, %v2114, 0
    %v2156 = vsel %vm1123, %v2115, 0
    %v2159 = vsel %vm1123, %v2116, 0
    %v2162 = vsel %vm1123, %v2117, 0
    %v2165 = vsel %vm1123, %v2118, 0
    %v2168 = vsel %vm1123, %v2119, 0
    %v2171 = vsel %vm1123, %v2120, 0
    %v2174 = vsel %vm1123, %v2121, 0
    %v2177 = vsel %vm1123, %v2122, 0
    %v2180 = vsel %vm1123, %v2123, 0
    %v2183 = vsel %vm1123, %v2124, 0
    %v2186 = vsel %vm1123, %v2125, 0
    %v2189 = vsel %vm1123, %v2126, 0
    %v2192 = vsel %vm1123, %v2127, 0
    %v2195 = vsel %vm1123, %v2128, 0
    %v2198 = vsel %vm1123, %v2129, 0
    %v2201 = vsel %vm1123, %v2130, 0
    %2203 = vmatprep.subr.mxu0 0.0
    %2204 = vmatpush1.msra.mxu0 %v2132
    %2205 = vmatprep.subr.mxu0 0.0
    %2206 = vmatpush1.msra.mxu0 %v2133
    %2207 = vmatprep.subr.mxu0 0.0
    %2208 = vmatpush1.msra.mxu0 0.0
    %2209 = vmatprep.subr.mxu0 0.0
    %2210 = vmatpush1.msra.mxu0 0.0
    %2211 = vmatprep.subr.mxu0 0.0
    %2212 = vmatpush1.msra.mxu0 0.0
    %2213 = vmatprep.subr.mxu0 0.0
    %2214 = vmatpush1.msra.mxu0 0.0
    %2215 = vmatprep.subr.mxu0 0.0
    %2216 = vmatpush1.msra.mxu0 0.0
    %2217 = vmatprep.subr.mxu0 0.0
    %2218 = vmatpush1.msra.mxu0 0.0
    %2219 = vmatprep.subr.mxu0 0.0
    %2220 = vmatpush1.msra.mxu0 0.0
    %2221 = vmatprep.subr.mxu0 0.0
    %2222 = vmatpush1.msra.mxu0 0.0
    %2223 = vmatprep.subr.mxu0 0.0
    %2224 = vmatpush1.msra.mxu0 0.0
    %2225 = vmatprep.subr.mxu0 0.0
    %2226 = vmatpush1.msra.mxu0 0.0
    %2227 = vmatprep.subr.mxu0 0.0
    %2228 = vmatpush1.msra.mxu0 0.0
    %2229 = vmatprep.subr.mxu0 0.0
    %2230 = vmatpush1.msra.mxu0 0.0
    %2231 = vmatprep.subr.mxu0 0.0
    %2232 = vmatpush1.msra.mxu0 0.0
    %2233 = vmatprep.subr.mxu0 0.0
    %2234 = vmatpush1.msra.mxu0 0.0
    %2235 = vmatprep.subr.mxu0 0.0
    %2236 = vmatpush1.msra.mxu0 0.0
    %2237 = vmatprep.subr.mxu0 0.0
    %2238 = vmatpush1.msra.mxu0 0.0
    %2239 = vmatprep.subr.mxu0 0.0
    %2240 = vmatpush1.msra.mxu0 0.0
    %2241 = vmatprep.subr.mxu0 0.0
    %2242 = vmatpush1.msra.mxu0 0.0
    %2243 = vmatprep.subr.mxu0 0.0
    %2244 = vmatpush1.msra.mxu0 0.0
    %2245 = vmatprep.subr.mxu0 0.0
    %2246 = vmatpush1.msra.mxu0 0.0
    %2247 = vmatprep.subr.mxu0 0.0
    %2248 = vmatpush1.msra.mxu0 0.0
    %2249 = vmatprep.subr.mxu0 0.0
    %2250 = vmatpush1.msra.mxu0 0.0
    %2251 = vmatprep.subr.mxu0 0.0
    %2252 = vmatpush1.msra.mxu0 0.0
    %2253 = vmatprep.subr.mxu0 0.0
    %2254 = vmatpush1.msra.mxu0 0.0
    %2255 = vmatprep.subr.mxu0 0.0
    %2256 = vmatpush1.msra.mxu0 0.0
    %2257 = vmatprep.subr.mxu0 0.0
    %2258 = vmatpush1.msra.mxu0 0.0
    %2259 = vmatprep.subr.mxu0 0.0
    %2260 = vmatpush1.msra.mxu0 0.0
    %2261 = vmatprep.subr.mxu0 0.0
    %2262 = vmatpush1.msra.mxu0 0.0
    %2263 = vmatprep.subr.mxu0 0.0
    %2264 = vmatpush1.msra.mxu0 0.0
    %2265 = vmatprep.subr.mxu0 0.0
    %2266 = vmatpush1.msra.mxu0 0.0
    %2267 = vmatprep.mubr.f32.mxu0 0.0
    %2268 = vmatmul.mubr.f32.gmra.mrb[0].mxu0 %v2135
    %v2269 = vpop.f32.mrb[0].mxu0
    %v2270 = vadd.f32 0.0, %v2269
    %v2271 = vpop.f32.mrb[0].mxu0
    %2272 = vmatprep.mubr.f32.mxu0 0.0
    %2273 = vmatmul.mubr.f32.gmra.mrb[0].mxu0 %v2138
    %v2274 = vpop.f32.mrb[0].mxu0
    %v2275 = vadd.f32 0.0, %v2274
    %v2276 = vpop.f32.mrb[0].mxu0
    %2277 = vmatprep.mubr.f32.mxu0 0.0
    %2278 = vmatmul.mubr.f32.gmra.mrb[0].mxu0 %v2141
    %v2279 = vpop.f32.mrb[0].mxu0
    %v2280 = vadd.f32 0.0, %v2279
    %v2281 = vpop.f32.mrb[0].mxu0
    %2282 = vmatprep.mubr.f32.mxu0 0.0
    %2283 = vmatmul.mubr.f32.gmra.mrb[0].mxu0 %v2144
    %v2284 = vpop.f32.mrb[0].mxu0
    %v2285 = vadd.f32 0.0, %v2284
    %v2286 = vpop.f32.mrb[0].mxu0
    %2287 = vmatprep.mubr.f32.mxu0 0.0
    %2288 = vmatmul.mubr.f32.gmra.mrb[0].mxu0 %v2147
    %v2289 = vpop.f32.mrb[0].mxu0
    %v2290 = vadd.f32 0.0, %v2289
    %v2291 = vpop.f32.mrb[0].mxu0
    %2292 = vmatprep.mubr.f32.mxu0 0.0
    %2293 = vmatmul.mubr.f32.gmra.mrb[0].mxu0 %v2150
    %v2294 = vpop.f32.mrb[0].mxu0
    %v2295 = vadd.f32 0.0, %v2294
    %v2296 = vpop.f32.mrb[0].mxu0
    %2297 = vmatprep.mubr.f32.mxu0 0.0
    %2298 = vmatmul.mubr.f32.gmra.mrb[0].mxu0 %v2153
    %v2299 = vpop.f32.mrb[0].mxu0
    %v2300 = vadd.f32 0.0, %v2299
    %v2301 = vpop.f32.mrb[0].mxu0
    %2302 = vmatprep.mubr.f32.mxu0 0.0
    %2303 = vmatmul.mubr.f32.gmra.mrb[0].mxu0 %v2156
    %v2304 = vpop.f32.mrb[0].mxu0
    %v2305 = vadd.f32 0.0, %v2304
    %v2306 = vpop.f32.mrb[0].mxu0
    %2307 = vmatprep.mubr.f32.mxu0 0.0
    %2308 = vmatmul.mubr.f32.gmra.mrb[0].mxu0 %v2159
    %v2309 = vpop.f32.mrb[0].mxu0
    %v2310 = vadd.f32 0.0, %v2309
    %v2311 = vpop.f32.mrb[0].mxu0
    %2312 = vmatprep.mubr.f32.mxu0 0.0
    %2313 = vmatmul.mubr.f32.gmra.mrb[0].mxu0 %v2162
    %v2314 = vpop.f32.mrb[0].mxu0
    %v2315 = vadd.f32 0.0, %v2314
    %v2316 = vpop.f32.mrb[0].mxu0
    %2317 = vmatprep.mubr.f32.mxu0 0.0
    %2318 = vmatmul.mubr.f32.gmra.mrb[0].mxu0 %v2165
    %v2319 = vpop.f32.mrb[0].mxu0
    %v2320 = vadd.f32 0.0, %v2319
    %v2321 = vpop.f32.mrb[0].mxu0
    %2322 = vmatprep.mubr.f32.mxu0 0.0
    %2323 = vmatmul.mubr.f32.gmra.mrb[0].mxu0 %v2168
    %v2324 = vpop.f32.mrb[0].mxu0
    %v2325 = vadd.f32 0.0, %v2324
    %v2326 = vpop.f32.mrb[0].mxu0
    %2327 = vmatprep.mubr.f32.mxu0 0.0
    %2328 = vmatmul.mubr.f32.gmra.mrb[0].mxu0 %v2171
    %v2329 = vpop.f32.mrb[0].mxu0
    %v2330 = vadd.f32 0.0, %v2329
    %v2331 = vpop.f32.mrb[0].mxu0
    %2332 = vmatprep.mubr.f32.mxu0 0.0
    %2333 = vmatmul.mubr.f32.gmra.mrb[0].mxu0 %v2174
    %v2334 = vpop.f32.mrb[0].mxu0
    %v2335 = vadd.f32 0.0, %v2334
    %v2336 = vpop.f32.mrb[0].mxu0
    %2337 = vmatprep.mubr.f32.mxu0 0.0
    %2338 = vmatmul.mubr.f32.gmra.mrb[0].mxu0 %v2177
    %v2339 = vpop.f32.mrb[0].mxu0
    %v2340 = vadd.f32 0.0, %v2339
    %v2341 = vpop.f32.mrb[0].mxu0
    %2342 = vmatprep.mubr.f32.mxu0 0.0
    %2343 = vmatmul.mubr.f32.gmra.mrb[0].mxu0 %v2180
    %v2344 = vpop.f32.mrb[0].mxu0
    %v2345 = vadd.f32 0.0, %v2344
    %v2346 = vpop.f32.mrb[0].mxu0
    %2347 = vmatprep.mubr.f32.mxu0 0.0
    %2348 = vmatmul.mubr.f32.gmra.mrb[0].mxu0 %v2183
    %v2349 = vpop.f32.mrb[0].mxu0
    %v2350 = vadd.f32 0.0, %v2349
    %v2351 = vpop.f32.mrb[0].mxu0
    %2352 = vmatprep.mubr.f32.mxu0 0.0
    %2353 = vmatmul.mubr.f32.gmra.mrb[0].mxu0 %v2186
    %v2354 = vpop.f32.mrb[0].mxu0
    %v2355 = vadd.f32 0.0, %v2354
    %v2356 = vpop.f32.mrb[0].mxu0
    %2357 = vmatprep.mubr.f32.mxu0 0.0
    %2358 = vmatmul.mubr.f32.gmra.mrb[0].mxu0 %v2189
    %v2359 = vpop.f32.mrb[0].mxu0
    %v2360 = vadd.f32 0.0, %v2359
    %v2361 = vpop.f32.mrb[0].mxu0
    %2362 = vmatprep.mubr.f32.mxu0 0.0
    %2363 = vmatmul.mubr.f32.gmra.mrb[0].mxu0 %v2192
    %v2364 = vpop.f32.mrb[0].mxu0
    %v2365 = vadd.f32 0.0, %v2364
    %v2366 = vpop.f32.mrb[0].mxu0
    %2367 = vmatprep.mubr.f32.mxu0 0.0
    %2368 = vmatmul.mubr.f32.gmra.mrb[0].mxu0 %v2195
    %v2369 = vpop.f32.mrb[0].mxu0
    %v2370 = vadd.f32 0.0, %v2369
    %v2371 = vpop.f32.mrb[0].mxu0
    %2372 = vmatprep.mubr.f32.mxu0 0.0
    %2373 = vmatmul.mubr.f32.gmra.mrb[0].mxu0 %v2198
    %v2374 = vpop.f32.mrb[0].mxu0
    %v2375 = vadd.f32 0.0, %v2374
    %v2376 = vpop.f32.mrb[0].mxu0
    %2377 = vmatprep.mubr.f32.mxu0 0.0
    %2378 = vmatmul.mubr.f32.gmra.mrb[0].mxu0 %v2201
    %v2379 = vpop.f32.mrb[0].mxu0
    %v2380 = vadd.f32 0.0, %v2379
    %v2381 = vpop.f32.mrb[0].mxu0
    %2382 = vdwg.mxu0
    %v2383 = vadd.f32 %v2085, %v2270
    %v2384 = vadd.f32 %v2086, %v2275
    %v2385 = vadd.f32 %v2087, %v2280
    %v2386 = vadd.f32 %v2088, %v2285
    %v2387 = vadd.f32 %v2089, %v2290
    %v2388 = vadd.f32 %v2090, %v2295
    %v2389 = vadd.f32 %v2091, %v2300
    %v2390 = vadd.f32 %v2092, %v2305
    %v2391 = vadd.f32 %v2093, %v2310
    %v2392 = vadd.f32 %v2094, %v2315
    %v2393 = vadd.f32 %v2095, %v2320
    %v2394 = vadd.f32 %v2096, %v2325
    %v2395 = vadd.f32 %v2097, %v2330
    %v2396 = vadd.f32 %v2098, %v2335
    %v2397 = vadd.f32 %v2099, %v2340
    %v2398 = vadd.f32 %v2100, %v2345
    %v2399 = vadd.f32 %v2101, %v2350
    %v2400 = vadd.f32 %v2102, %v2355
    %v2401 = vadd.f32 %v2103, %v2360
    %v2402 = vadd.f32 %v2104, %v2365
    %v2403 = vadd.f32 %v2105, %v2370
    %v2404 = vadd.f32 %v2106, %v2375
    %v2405 = vadd.f32 %v2107, %v2380
    %v2406 = vld [vmem:[#allocation3 + $0xb] sm:$0xff]
    %v2407 = vld [vmem:[#allocation3 + $0x13] sm:$0xff]
    %v2408 = vld [vmem:[#allocation3 + $0x1b] sm:$0xff]
    %v2409 = vld [vmem:[#allocation3 + $0x23] sm:$0xff]
    %v2410 = vld [vmem:[#allocation3 + $0x2b] sm:$0xff]
    %v2411 = vld [vmem:[#allocation3 + $0x33] sm:$0xff]
    %v2412 = vld [vmem:[#allocation3 + $0x3b] sm:$0xff]
    %v2413 = vld [vmem:[#allocation3 + $0x43] sm:$0xff]
    %v2414 = vld [vmem:[#allocation3 + $0x4b] sm:$0xff]
    %v2415 = vld [vmem:[#allocation3 + $0x53] sm:$0xff]
    %v2416 = vld [vmem:[#allocation3 + $0x5b] sm:$0xff]
    %v2417 = vld [vmem:[#allocation3 + $0x63] sm:$0xff]
    %v2418 = vld [vmem:[#allocation3 + $0x6b] sm:$0xff]
    %v2419 = vld [vmem:[#allocation3 + $0x73] sm:$0xff]
    %v2420 = vld [vmem:[#allocation3 + $0x7b] sm:$0xff]
    %v2421 = vld [vmem:[#allocation3 + $0x83] sm:$0xff]
    %v2422 = vld [vmem:[#allocation3 + $0x8b] sm:$0xff]
    %v2423 = vld [vmem:[#allocation3 + $0x93] sm:$0xff]
    %v2424 = vld [vmem:[#allocation3 + $0x9b] sm:$0xff]
    %v2425 = vld [vmem:[#allocation3 + $0xa3] sm:$0xff]
    %v2426 = vld [vmem:[#allocation3 + $0xab] sm:$0xff]
    %v2427 = vld [vmem:[#allocation3 + $0xb3] sm:$0xff]
    %v2428 = vld [vmem:[#allocation3 + $0xbb] sm:$0x3f]
    %s2429 = scalar_lea.vmem %s3, 64
    %v2430 = vld [vmem:[%s2429] sm:$0xff]
    %v2431 = vld [vmem:[%s2429 + $0x8] sm:$0xff]
    %v2433 = vsel %vm1123, %v2406, 0
    %v2436 = vsel %vm1123, %v2407, 0
    %v2439 = vsel %vm1123, %v2408, 0
    %v2442 = vsel %vm1123, %v2409, 0
    %v2445 = vsel %vm1123, %v2410, 0
    %v2448 = vsel %vm1123, %v2411, 0
    %v2451 = vsel %vm1123, %v2412, 0
    %v2454 = vsel %vm1123, %v2413, 0
    %v2457 = vsel %vm1123, %v2414, 0
    %v2460 = vsel %vm1123, %v2415, 0
    %v2463 = vsel %vm1123, %v2416, 0
    %v2466 = vsel %vm1123, %v2417, 0
    %v2469 = vsel %vm1123, %v2418, 0
    %v2472 = vsel %vm1123, %v2419, 0
    %v2475 = vsel %vm1123, %v2420, 0
    %v2478 = vsel %vm1123, %v2421, 0
    %v2481 = vsel %vm1123, %v2422, 0
    %v2484 = vsel %vm1123, %v2423, 0
    %v2487 = vsel %vm1123, %v2424, 0
    %v2490 = vsel %vm1123, %v2425, 0
    %v2493 = vsel %vm1123, %v2426, 0
    %v2496 = vsel %vm1123, %v2427, 0
    %v2499 = vsel %vm1123, %v2428, 0
    %2501 = vmatprep.subr.mxu0 0.0
    %2502 = vmatpush1.msra.mxu0 %v2430
    %2503 = vmatprep.subr.mxu0 0.0
    %2504 = vmatpush1.msra.mxu0 %v2431
    %2505 = vmatprep.subr.mxu0 0.0
    %2506 = vmatpush1.msra.mxu0 0.0
    %2507 = vmatprep.subr.mxu0 0.0
    %2508 = vmatpush1.msra.mxu0 0.0
    %2509 = vmatprep.subr.mxu0 0.0
    %2510 = vmatpush1.msra.mxu0 0.0
    %2511 = vmatprep.subr.mxu0 0.0
    %2512 = vmatpush1.msra.mxu0 0.0
    %2513 = vmatprep.subr.mxu0 0.0
    %2514 = vmatpush1.msra.mxu0 0.0
    %2515 = vmatprep.subr.mxu0 0.0
    %2516 = vmatpush1.msra.mxu0 0.0
    %2517 = vmatprep.subr.mxu0 0.0
    %2518 = vmatpush1.msra.mxu0 0.0
    %2519 = vmatprep.subr.mxu0 0.0
    %2520 = vmatpush1.msra.mxu0 0.0
    %2521 = vmatprep.subr.mxu0 0.0
    %2522 = vmatpush1.msra.mxu0 0.0
    %2523 = vmatprep.subr.mxu0 0.0
    %2524 = vmatpush1.msra.mxu0 0.0
    %2525 = vmatprep.subr.mxu0 0.0
    %2526 = vmatpush1.msra.mxu0 0.0
    %2527 = vmatprep.subr.mxu0 0.0
    %2528 = vmatpush1.msra.mxu0 0.0
    %2529 = vmatprep.subr.mxu0 0.0
    %2530 = vmatpush1.msra.mxu0 0.0
    %2531 = vmatprep.subr.mxu0 0.0
    %2532 = vmatpush1.msra.mxu0 0.0
    %2533 = vmatprep.subr.mxu0 0.0
    %2534 = vmatpush1.msra.mxu0 0.0
    %2535 = vmatprep.subr.mxu0 0.0
    %2536 = vmatpush1.msra.mxu0 0.0
    %2537 = vmatprep.subr.mxu0 0.0
    %2538 = vmatpush1.msra.mxu0 0.0
    %2539 = vmatprep.subr.mxu0 0.0
    %2540 = vmatpush1.msra.mxu0 0.0
    %2541 = vmatprep.subr.mxu0 0.0
    %2542 = vmatpush1.msra.mxu0 0.0
    %2543 = vmatprep.subr.mxu0 0.0
    %2544 = vmatpush1.msra.mxu0 0.0
    %2545 = vmatprep.subr.mxu0 0.0
    %2546 = vmatpush1.msra.mxu0 0.0
    %2547 = vmatprep.subr.mxu0 0.0
    %2548 = vmatpush1.msra.mxu0 0.0
    %2549 = vmatprep.subr.mxu0 0.0
    %2550 = vmatpush1.msra.mxu0 0.0
    %2551 = vmatprep.subr.mxu0 0.0
    %2552 = vmatpush1.msra.mxu0 0.0
    %2553 = vmatprep.subr.mxu0 0.0
    %2554 = vmatpush1.msra.mxu0 0.0
    %2555 = vmatprep.subr.mxu0 0.0
    %2556 = vmatpush1.msra.mxu0 0.0
    %2557 = vmatprep.subr.mxu0 0.0
    %2558 = vmatpush1.msra.mxu0 0.0
    %2559 = vmatprep.subr.mxu0 0.0
    %2560 = vmatpush1.msra.mxu0 0.0
    %2561 = vmatprep.subr.mxu0 0.0
    %2562 = vmatpush1.msra.mxu0 0.0
    %2563 = vmatprep.subr.mxu0 0.0
    %2564 = vmatpush1.msra.mxu0 0.0
    %2565 = vmatprep.mubr.f32.mxu0 0.0
    %2566 = vmatmul.mubr.f32.gmra.mrb[0].mxu0 %v2433
    %v2567 = vpop.f32.mrb[0].mxu0
    %v2568 = vadd.f32 0.0, %v2567
    %v2569 = vpop.f32.mrb[0].mxu0
    %2570 = vmatprep.mubr.f32.mxu0 0.0
    %2571 = vmatmul.mubr.f32.gmra.mrb[0].mxu0 %v2436
    %v2572 = vpop.f32.mrb[0].mxu0
    %v2573 = vadd.f32 0.0, %v2572
    %v2574 = vpop.f32.mrb[0].mxu0
    %2575 = vmatprep.mubr.f32.mxu0 0.0
    %2576 = vmatmul.mubr.f32.gmra.mrb[0].mxu0 %v2439
    %v2577 = vpop.f32.mrb[0].mxu0
    %v2578 = vadd.f32 0.0, %v2577
    %v2579 = vpop.f32.mrb[0].mxu0
    %2580 = vmatprep.mubr.f32.mxu0 0.0
    %2581 = vmatmul.mubr.f32.gmra.mrb[0].mxu0 %v2442
    %v2582 = vpop.f32.mrb[0].mxu0
    %v2583 = vadd.f32 0.0, %v2582
    %v2584 = vpop.f32.mrb[0].mxu0
    %2585 = vmatprep.mubr.f32.mxu0 0.0
    %2586 = vmatmul.mubr.f32.gmra.mrb[0].mxu0 %v2445
    %v2587 = vpop.f32.mrb[0].mxu0
    %v2588 = vadd.f32 0.0, %v2587
    %v2589 = vpop.f32.mrb[0].mxu0
    %2590 = vmatprep.mubr.f32.mxu0 0.0
    %2591 = vmatmul.mubr.f32.gmra.mrb[0].mxu0 %v2448
    %v2592 = vpop.f32.mrb[0].mxu0
    %v2593 = vadd.f32 0.0, %v2592
    %v2594 = vpop.f32.mrb[0].mxu0
    %2595 = vmatprep.mubr.f32.mxu0 0.0
    %2596 = vmatmul.mubr.f32.gmra.mrb[0].mxu0 %v2451
    %v2597 = vpop.f32.mrb[0].mxu0
    %v2598 = vadd.f32 0.0, %v2597
    %v2599 = vpop.f32.mrb[0].mxu0
    %2600 = vmatprep.mubr.f32.mxu0 0.0
    %2601 = vmatmul.mubr.f32.gmra.mrb[0].mxu0 %v2454
    %v2602 = vpop.f32.mrb[0].mxu0
    %v2603 = vadd.f32 0.0, %v2602
    %v2604 = vpop.f32.mrb[0].mxu0
    %2605 = vmatprep.mubr.f32.mxu0 0.0
    %2606 = vmatmul.mubr.f32.gmra.mrb[0].mxu0 %v2457
    %v2607 = vpop.f32.mrb[0].mxu0
    %v2608 = vadd.f32 0.0, %v2607
    %v2609 = vpop.f32.mrb[0].mxu0
    %2610 = vmatprep.mubr.f32.mxu0 0.0
    %2611 = vmatmul.mubr.f32.gmra.mrb[0].mxu0 %v2460
    %v2612 = vpop.f32.mrb[0].mxu0
    %v2613 = vadd.f32 0.0, %v2612
    %v2614 = vpop.f32.mrb[0].mxu0
    %2615 = vmatprep.mubr.f32.mxu0 0.0
    %2616 = vmatmul.mubr.f32.gmra.mrb[0].mxu0 %v2463
    %v2617 = vpop.f32.mrb[0].mxu0
    %v2618 = vadd.f32 0.0, %v2617
    %v2619 = vpop.f32.mrb[0].mxu0
    %2620 = vmatprep.mubr.f32.mxu0 0.0
    %2621 = vmatmul.mubr.f32.gmra.mrb[0].mxu0 %v2466
    %v2622 = vpop.f32.mrb[0].mxu0
    %v2623 = vadd.f32 0.0, %v2622
    %v2624 = vpop.f32.mrb[0].mxu0
    %2625 = vmatprep.mubr.f32.mxu0 0.0
    %2626 = vmatmul.mubr.f32.gmra.mrb[0].mxu0 %v2469
    %v2627 = vpop.f32.mrb[0].mxu0
    %v2628 = vadd.f32 0.0, %v2627
    %v2629 = vpop.f32.mrb[0].mxu0
    %2630 = vmatprep.mubr.f32.mxu0 0.0
    %2631 = vmatmul.mubr.f32.gmra.mrb[0].mxu0 %v2472
    %v2632 = vpop.f32.mrb[0].mxu0
    %v2633 = vadd.f32 0.0, %v2632
    %v2634 = vpop.f32.mrb[0].mxu0
    %2635 = vmatprep.mubr.f32.mxu0 0.0
    %2636 = vmatmul.mubr.f32.gmra.mrb[0].mxu0 %v2475
    %v2637 = vpop.f32.mrb[0].mxu0
    %v2638 = vadd.f32 0.0, %v2637
    %v2639 = vpop.f32.mrb[0].mxu0
    %2640 = vmatprep.mubr.f32.mxu0 0.0
    %2641 = vmatmul.mubr.f32.gmra.mrb[0].mxu0 %v2478
    %v2642 = vpop.f32.mrb[0].mxu0
    %v2643 = vadd.f32 0.0, %v2642
    %v2644 = vpop.f32.mrb[0].mxu0
    %2645 = vmatprep.mubr.f32.mxu0 0.0
    %2646 = vmatmul.mubr.f32.gmra.mrb[0].mxu0 %v2481
    %v2647 = vpop.f32.mrb[0].mxu0
    %v2648 = vadd.f32 0.0, %v2647
    %v2649 = vpop.f32.mrb[0].mxu0
    %2650 = vmatprep.mubr.f32.mxu0 0.0
    %2651 = vmatmul.mubr.f32.gmra.mrb[0].mxu0 %v2484
    %v2652 = vpop.f32.mrb[0].mxu0
    %v2653 = vadd.f32 0.0, %v2652
    %v2654 = vpop.f32.mrb[0].mxu0
    %2655 = vmatprep.mubr.f32.mxu0 0.0
    %2656 = vmatmul.mubr.f32.gmra.mrb[0].mxu0 %v2487
    %v2657 = vpop.f32.mrb[0].mxu0
    %v2658 = vadd.f32 0.0, %v2657
    %v2659 = vpop.f32.mrb[0].mxu0
    %2660 = vmatprep.mubr.f32.mxu0 0.0
    %2661 = vmatmul.mubr.f32.gmra.mrb[0].mxu0 %v2490
    %v2662 = vpop.f32.mrb[0].mxu0
    %v2663 = vadd.f32 0.0, %v2662
    %v2664 = vpop.f32.mrb[0].mxu0
    %2665 = vmatprep.mubr.f32.mxu0 0.0
    %2666 = vmatmul.mubr.f32.gmra.mrb[0].mxu0 %v2493
    %v2667 = vpop.f32.mrb[0].mxu0
    %v2668 = vadd.f32 0.0, %v2667
    %v2669 = vpop.f32.mrb[0].mxu0
    %2670 = vmatprep.mubr.f32.mxu0 0.0
    %2671 = vmatmul.mubr.f32.gmra.mrb[0].mxu0 %v2496
    %v2672 = vpop.f32.mrb[0].mxu0
    %v2673 = vadd.f32 0.0, %v2672
    %v2674 = vpop.f32.mrb[0].mxu0
    %2675 = vmatprep.mubr.f32.mxu0 0.0
    %2676 = vmatmul.mubr.f32.gmra.mrb[0].mxu0 %v2499
    %v2677 = vpop.f32.mrb[0].mxu0
    %v2678 = vadd.f32 0.0, %v2677
    %v2679 = vpop.f32.mrb[0].mxu0
    %2680 = vdwg.mxu0
    %v2681 = vadd.f32 %v2383, %v2568
    %v2682 = vadd.f32 %v2384, %v2573
    %v2683 = vadd.f32 %v2385, %v2578
    %v2684 = vadd.f32 %v2386, %v2583
    %v2685 = vadd.f32 %v2387, %v2588
    %v2686 = vadd.f32 %v2388, %v2593
    %v2687 = vadd.f32 %v2389, %v2598
    %v2688 = vadd.f32 %v2390, %v2603
    %v2689 = vadd.f32 %v2391, %v2608
    %v2690 = vadd.f32 %v2392, %v2613
    %v2691 = vadd.f32 %v2393, %v2618
    %v2692 = vadd.f32 %v2394, %v2623
    %v2693 = vadd.f32 %v2395, %v2628
    %v2694 = vadd.f32 %v2396, %v2633
    %v2695 = vadd.f32 %v2397, %v2638
    %v2696 = vadd.f32 %v2398, %v2643
    %v2697 = vadd.f32 %v2399, %v2648
    %v2698 = vadd.f32 %v2400, %v2653
    %v2699 = vadd.f32 %v2401, %v2658
    %v2700 = vadd.f32 %v2402, %v2663
    %v2701 = vadd.f32 %v2403, %v2668
    %v2702 = vadd.f32 %v2404, %v2673
    %v2703 = vadd.f32 %v2405, %v2678
    %v2704 = vld [vmem:[#allocation3 + $0xc] sm:$0xff]
    %v2705 = vld [vmem:[#allocation3 + $0x14] sm:$0xff]
    %v2706 = vld [vmem:[#allocation3 + $0x1c] sm:$0xff]
    %v2707 = vld [vmem:[#allocation3 + $0x24] sm:$0xff]
    %v2708 = vld [vmem:[#allocation3 + $0x2c] sm:$0xff]
    %v2709 = vld [vmem:[#allocation3 + $0x34] sm:$0xff]
    %v2710 = vld [vmem:[#allocation3 + $0x3c] sm:$0xff]
    %v2711 = vld [vmem:[#allocation3 + $0x44] sm:$0xff]
    %v2712 = vld [vmem:[#allocation3 + $0x4c] sm:$0xff]
    %v2713 = vld [vmem:[#allocation3 + $0x54] sm:$0xff]
    %v2714 = vld [vmem:[#allocation3 + $0x5c] sm:$0xff]
    %v2715 = vld [vmem:[#allocation3 + $0x64] sm:$0xff]
    %v2716 = vld [vmem:[#allocation3 + $0x6c] sm:$0xff]
    %v2717 = vld [vmem:[#allocation3 + $0x74] sm:$0xff]
    %v2718 = vld [vmem:[#allocation3 + $0x7c] sm:$0xff]
    %v2719 = vld [vmem:[#allocation3 + $0x84] sm:$0xff]
    %v2720 = vld [vmem:[#allocation3 + $0x8c] sm:$0xff]
    %v2721 = vld [vmem:[#allocation3 + $0x94] sm:$0xff]
    %v2722 = vld [vmem:[#allocation3 + $0x9c] sm:$0xff]
    %v2723 = vld [vmem:[#allocation3 + $0xa4] sm:$0xff]
    %v2724 = vld [vmem:[#allocation3 + $0xac] sm:$0xff]
    %v2725 = vld [vmem:[#allocation3 + $0xb4] sm:$0xff]
    %v2726 = vld [vmem:[#allocation3 + $0xbc] sm:$0x3f]
    %s2727 = scalar_lea.vmem %s3, 80
    %v2728 = vld [vmem:[%s2727] sm:$0xff]
    %v2729 = vld [vmem:[%s2727 + $0x8] sm:$0xff]
    %v2731 = vsel %vm1123, %v2704, 0
    %v2734 = vsel %vm1123, %v2705, 0
    %v2737 = vsel %vm1123, %v2706, 0
    %v2740 = vsel %vm1123, %v2707, 0
    %v2743 = vsel %vm1123, %v2708, 0
    %v2746 = vsel %vm1123, %v2709, 0
    %v2749 = vsel %vm1123, %v2710, 0
    %v2752 = vsel %vm1123, %v2711, 0
    %v2755 = vsel %vm1123, %v2712, 0
    %v2758 = vsel %vm1123, %v2713, 0
    %v2761 = vsel %vm1123, %v2714, 0
    %v2764 = vsel %vm1123, %v2715, 0
    %v2767 = vsel %vm1123, %v2716, 0
    %v2770 = vsel %vm1123, %v2717, 0
    %v2773 = vsel %vm1123, %v2718, 0
    %v2776 = vsel %vm1123, %v2719, 0
    %v2779 = vsel %vm1123, %v2720, 0
    %v2782 = vsel %vm1123, %v2721, 0
    %v2785 = vsel %vm1123, %v2722, 0
    %v2788 = vsel %vm1123, %v2723, 0
    %v2791 = vsel %vm1123, %v2724, 0
    %v2794 = vsel %vm1123, %v2725, 0
    %v2797 = vsel %vm1123, %v2726, 0
    %2799 = vmatprep.subr.mxu0 0.0
    %2800 = vmatpush1.msra.mxu0 %v2728
    %2801 = vmatprep.subr.mxu0 0.0
    %2802 = vmatpush1.msra.mxu0 %v2729
    %2803 = vmatprep.subr.mxu0 0.0
    %2804 = vmatpush1.msra.mxu0 0.0
    %2805 = vmatprep.subr.mxu0 0.0
    %2806 = vmatpush1.msra.mxu0 0.0
    %2807 = vmatprep.subr.mxu0 0.0
    %2808 = vmatpush1.msra.mxu0 0.0
    %2809 = vmatprep.subr.mxu0 0.0
    %2810 = vmatpush1.msra.mxu0 0.0
    %2811 = vmatprep.subr.mxu0 0.0
    %2812 = vmatpush1.msra.mxu0 0.0
    %2813 = vmatprep.subr.mxu0 0.0
    %2814 = vmatpush1.msra.mxu0 0.0
    %2815 = vmatprep.subr.mxu0 0.0
    %2816 = vmatpush1.msra.mxu0 0.0
    %2817 = vmatprep.subr.mxu0 0.0
    %2818 = vmatpush1.msra.mxu0 0.0
    %2819 = vmatprep.subr.mxu0 0.0
    %2820 = vmatpush1.msra.mxu0 0.0
    %2821 = vmatprep.subr.mxu0 0.0
    %2822 = vmatpush1.msra.mxu0 0.0
    %2823 = vmatprep.subr.mxu0 0.0
    %2824 = vmatpush1.msra.mxu0 0.0
    %2825 = vmatprep.subr.mxu0 0.0
    %2826 = vmatpush1.msra.mxu0 0.0
    %2827 = vmatprep.subr.mxu0 0.0
    %2828 = vmatpush1.msra.mxu0 0.0
    %2829 = vmatprep.subr.mxu0 0.0
    %2830 = vmatpush1.msra.mxu0 0.0
    %2831 = vmatprep.subr.mxu0 0.0
    %2832 = vmatpush1.msra.mxu0 0.0
    %2833 = vmatprep.subr.mxu0 0.0
    %2834 = vmatpush1.msra.mxu0 0.0
    %2835 = vmatprep.subr.mxu0 0.0
    %2836 = vmatpush1.msra.mxu0 0.0
    %2837 = vmatprep.subr.mxu0 0.0
    %2838 = vmatpush1.msra.mxu0 0.0
    %2839 = vmatprep.subr.mxu0 0.0
    %2840 = vmatpush1.msra.mxu0 0.0
    %2841 = vmatprep.subr.mxu0 0.0
    %2842 = vmatpush1.msra.mxu0 0.0
    %2843 = vmatprep.subr.mxu0 0.0
    %2844 = vmatpush1.msra.mxu0 0.0
    %2845 = vmatprep.subr.mxu0 0.0
    %2846 = vmatpush1.msra.mxu0 0.0
    %2847 = vmatprep.subr.mxu0 0.0
    %2848 = vmatpush1.msra.mxu0 0.0
    %2849 = vmatprep.subr.mxu0 0.0
    %2850 = vmatpush1.msra.mxu0 0.0
    %2851 = vmatprep.subr.mxu0 0.0
    %2852 = vmatpush1.msra.mxu0 0.0
    %2853 = vmatprep.subr.mxu0 0.0
    %2854 = vmatpush1.msra.mxu0 0.0
    %2855 = vmatprep.subr.mxu0 0.0
    %2856 = vmatpush1.msra.mxu0 0.0
    %2857 = vmatprep.subr.mxu0 0.0
    %2858 = vmatpush1.msra.mxu0 0.0
    %2859 = vmatprep.subr.mxu0 0.0
    %2860 = vmatpush1.msra.mxu0 0.0
    %2861 = vmatprep.subr.mxu0 0.0
    %2862 = vmatpush1.msra.mxu0 0.0
    %2863 = vmatprep.mubr.f32.mxu0 0.0
    %2864 = vmatmul.mubr.f32.gmra.mrb[0].mxu0 %v2731
    %v2865 = vpop.f32.mrb[0].mxu0
    %v2866 = vadd.f32 0.0, %v2865
    %v2867 = vpop.f32.mrb[0].mxu0
    %2868 = vmatprep.mubr.f32.mxu0 0.0
    %2869 = vmatmul.mubr.f32.gmra.mrb[0].mxu0 %v2734
    %v2870 = vpop.f32.mrb[0].mxu0
    %v2871 = vadd.f32 0.0, %v2870
    %v2872 = vpop.f32.mrb[0].mxu0
    %2873 = vmatprep.mubr.f32.mxu0 0.0
    %2874 = vmatmul.mubr.f32.gmra.mrb[0].mxu0 %v2737
    %v2875 = vpop.f32.mrb[0].mxu0
    %v2876 = vadd.f32 0.0, %v2875
    %v2877 = vpop.f32.mrb[0].mxu0
    %2878 = vmatprep.mubr.f32.mxu0 0.0
    %2879 = vmatmul.mubr.f32.gmra.mrb[0].mxu0 %v2740
    %v2880 = vpop.f32.mrb[0].mxu0
    %v2881 = vadd.f32 0.0, %v2880
    %v2882 = vpop.f32.mrb[0].mxu0
    %2883 = vmatprep.mubr.f32.mxu0 0.0
    %2884 = vmatmul.mubr.f32.gmra.mrb[0].mxu0 %v2743
    %v2885 = vpop.f32.mrb[0].mxu0
    %v2886 = vadd.f32 0.0, %v2885
    %v2887 = vpop.f32.mrb[0].mxu0
    %2888 = vmatprep.mubr.f32.mxu0 0.0
    %2889 = vmatmul.mubr.f32.gmra.mrb[0].mxu0 %v2746
    %v2890 = vpop.f32.mrb[0].mxu0
    %v2891 = vadd.f32 0.0, %v2890
    %v2892 = vpop.f32.mrb[0].mxu0
    %2893 = vmatprep.mubr.f32.mxu0 0.0
    %2894 = vmatmul.mubr.f32.gmra.mrb[0].mxu0 %v2749
    %v2895 = vpop.f32.mrb[0].mxu0
    %v2896 = vadd.f32 0.0, %v2895
    %v2897 = vpop.f32.mrb[0].mxu0
    %2898 = vmatprep.mubr.f32.mxu0 0.0
    %2899 = vmatmul.mubr.f32.gmra.mrb[0].mxu0 %v2752
    %v2900 = vpop.f32.mrb[0].mxu0
    %v2901 = vadd.f32 0.0, %v2900
    %v2902 = vpop.f32.mrb[0].mxu0
    %2903 = vmatprep.mubr.f32.mxu0 0.0
    %2904 = vmatmul.mubr.f32.gmra.mrb[0].mxu0 %v2755
    %v2905 = vpop.f32.mrb[0].mxu0
    %v2906 = vadd.f32 0.0, %v2905
    %v2907 = vpop.f32.mrb[0].mxu0
    %2908 = vmatprep.mubr.f32.mxu0 0.0
    %2909 = vmatmul.mubr.f32.gmra.mrb[0].mxu0 %v2758
    %v2910 = vpop.f32.mrb[0].mxu0
    %v2911 = vadd.f32 0.0, %v2910
    %v2912 = vpop.f32.mrb[0].mxu0
    %2913 = vmatprep.mubr.f32.mxu0 0.0
    %2914 = vmatmul.mubr.f32.gmra.mrb[0].mxu0 %v2761
    %v2915 = vpop.f32.mrb[0].mxu0
    %v2916 = vadd.f32 0.0, %v2915
    %v2917 = vpop.f32.mrb[0].mxu0
    %2918 = vmatprep.mubr.f32.mxu0 0.0
    %2919 = vmatmul.mubr.f32.gmra.mrb[0].mxu0 %v2764
    %v2920 = vpop.f32.mrb[0].mxu0
    %v2921 = vadd.f32 0.0, %v2920
    %v2922 = vpop.f32.mrb[0].mxu0
    %2923 = vmatprep.mubr.f32.mxu0 0.0
    %2924 = vmatmul.mubr.f32.gmra.mrb[0].mxu0 %v2767
    %v2925 = vpop.f32.mrb[0].mxu0
    %v2926 = vadd.f32 0.0, %v2925
    %v2927 = vpop.f32.mrb[0].mxu0
    %2928 = vmatprep.mubr.f32.mxu0 0.0
    %2929 = vmatmul.mubr.f32.gmra.mrb[0].mxu0 %v2770
    %v2930 = vpop.f32.mrb[0].mxu0
    %v2931 = vadd.f32 0.0, %v2930
    %v2932 = vpop.f32.mrb[0].mxu0
    %2933 = vmatprep.mubr.f32.mxu0 0.0
    %2934 = vmatmul.mubr.f32.gmra.mrb[0].mxu0 %v2773
    %v2935 = vpop.f32.mrb[0].mxu0
    %v2936 = vadd.f32 0.0, %v2935
    %v2937 = vpop.f32.mrb[0].mxu0
    %2938 = vmatprep.mubr.f32.mxu0 0.0
    %2939 = vmatmul.mubr.f32.gmra.mrb[0].mxu0 %v2776
    %v2940 = vpop.f32.mrb[0].mxu0
    %v2941 = vadd.f32 0.0, %v2940
    %v2942 = vpop.f32.mrb[0].mxu0
    %2943 = vmatprep.mubr.f32.mxu0 0.0
    %2944 = vmatmul.mubr.f32.gmra.mrb[0].mxu0 %v2779
    %v2945 = vpop.f32.mrb[0].mxu0
    %v2946 = vadd.f32 0.0, %v2945
    %v2947 = vpop.f32.mrb[0].mxu0
    %2948 = vmatprep.mubr.f32.mxu0 0.0
    %2949 = vmatmul.mubr.f32.gmra.mrb[0].mxu0 %v2782
    %v2950 = vpop.f32.mrb[0].mxu0
    %v2951 = vadd.f32 0.0, %v2950
    %v2952 = vpop.f32.mrb[0].mxu0
    %2953 = vmatprep.mubr.f32.mxu0 0.0
    %2954 = vmatmul.mubr.f32.gmra.mrb[0].mxu0 %v2785
    %v2955 = vpop.f32.mrb[0].mxu0
    %v2956 = vadd.f32 0.0, %v2955
    %v2957 = vpop.f32.mrb[0].mxu0
    %2958 = vmatprep.mubr.f32.mxu0 0.0
    %2959 = vmatmul.mubr.f32.gmra.mrb[0].mxu0 %v2788
    %v2960 = vpop.f32.mrb[0].mxu0
    %v2961 = vadd.f32 0.0, %v2960
    %v2962 = vpop.f32.mrb[0].mxu0
    %2963 = vmatprep.mubr.f32.mxu0 0.0
    %2964 = vmatmul.mubr.f32.gmra.mrb[0].mxu0 %v2791
    %v2965 = vpop.f32.mrb[0].mxu0
    %v2966 = vadd.f32 0.0, %v2965
    %v2967 = vpop.f32.mrb[0].mxu0
    %2968 = vmatprep.mubr.f32.mxu0 0.0
    %2969 = vmatmul.mubr.f32.gmra.mrb[0].mxu0 %v2794
    %v2970 = vpop.f32.mrb[0].mxu0
    %v2971 = vadd.f32 0.0, %v2970
    %v2972 = vpop.f32.mrb[0].mxu0
    %2973 = vmatprep.mubr.f32.mxu0 0.0
    %2974 = vmatmul.mubr.f32.gmra.mrb[0].mxu0 %v2797
    %v2975 = vpop.f32.mrb[0].mxu0
    %v2976 = vadd.f32 0.0, %v2975
    %v2977 = vpop.f32.mrb[0].mxu0
    %2978 = vdwg.mxu0
    %v2979 = vadd.f32 %v2681, %v2866
    %v2980 = vadd.f32 %v2682, %v2871
    %v2981 = vadd.f32 %v2683, %v2876
    %v2982 = vadd.f32 %v2684, %v2881
    %v2983 = vadd.f32 %v2685, %v2886
    %v2984 = vadd.f32 %v2686, %v2891
    %v2985 = vadd.f32 %v2687, %v2896
    %v2986 = vadd.f32 %v2688, %v2901
    %v2987 = vadd.f32 %v2689, %v2906
    %v2988 = vadd.f32 %v2690, %v2911
    %v2989 = vadd.f32 %v2691, %v2916
    %v2990 = vadd.f32 %v2692, %v2921
    %v2991 = vadd.f32 %v2693, %v2926
    %v2992 = vadd.f32 %v2694, %v2931
    %v2993 = vadd.f32 %v2695, %v2936
    %v2994 = vadd.f32 %v2696, %v2941
    %v2995 = vadd.f32 %v2697, %v2946
    %v2996 = vadd.f32 %v2698, %v2951
    %v2997 = vadd.f32 %v2699, %v2956
    %v2998 = vadd.f32 %v2700, %v2961
    %v2999 = vadd.f32 %v2701, %v2966
    %v3000 = vadd.f32 %v2702, %v2971
    %v3001 = vadd.f32 %v2703, %v2976
    %v3002 = vld [vmem:[#allocation3 + $0x14] sm:$0xff]
    %v3003 = vld [vmem:[#allocation3 + $0x1c] sm:$0xff]
    %v3004 = vld [vmem:[#allocation3 + $0x24] sm:$0xff]
    %v3005 = vld [vmem:[#allocation3 + $0x2c] sm:$0xff]
    %v3006 = vld [vmem:[#allocation3 + $0x34] sm:$0xff]
    %v3007 = vld [vmem:[#allocation3 + $0x3c] sm:$0xff]
    %v3008 = vld [vmem:[#allocation3 + $0x44] sm:$0xff]
    %v3009 = vld [vmem:[#allocation3 + $0x4c] sm:$0xff]
    %v3010 = vld [vmem:[#allocation3 + $0x54] sm:$0xff]
    %v3011 = vld [vmem:[#allocation3 + $0x5c] sm:$0xff]
    %v3012 = vld [vmem:[#allocation3 + $0x64] sm:$0xff]
    %v3013 = vld [vmem:[#allocation3 + $0x6c] sm:$0xff]
    %v3014 = vld [vmem:[#allocation3 + $0x74] sm:$0xff]
    %v3015 = vld [vmem:[#allocation3 + $0x7c] sm:$0xff]
    %v3016 = vld [vmem:[#allocation3 + $0x84] sm:$0xff]
    %v3017 = vld [vmem:[#allocation3 + $0x8c] sm:$0xff]
    %v3018 = vld [vmem:[#allocation3 + $0x94] sm:$0xff]
    %v3019 = vld [vmem:[#allocation3 + $0x9c] sm:$0xff]
    %v3020 = vld [vmem:[#allocation3 + $0xa4] sm:$0xff]
    %v3021 = vld [vmem:[#allocation3 + $0xac] sm:$0xff]
    %v3022 = vld [vmem:[#allocation3 + $0xb4] sm:$0xff]
    %v3023 = vld [vmem:[#allocation3 + $0xbc] sm:$0xff]
    %v3024 = vld [vmem:[#allocation3 + $0xc4] sm:$0x3f]
    %s3025 = scalar_lea.vmem %s3, 96
    %v3026 = vld [vmem:[%s3025] sm:$0xff]
    %v3027 = vld [vmem:[%s3025 + $0x8] sm:$0xff]
    %v3029 = vsel %vm1123, %v3002, 0
    %v3032 = vsel %vm1123, %v3003, 0
    %v3035 = vsel %vm1123, %v3004, 0
    %v3038 = vsel %vm1123, %v3005, 0
    %v3041 = vsel %vm1123, %v3006, 0
    %v3044 = vsel %vm1123, %v3007, 0
    %v3047 = vsel %vm1123, %v3008, 0
    %v3050 = vsel %vm1123, %v3009, 0
    %v3053 = vsel %vm1123, %v3010, 0
    %v3056 = vsel %vm1123, %v3011, 0
    %v3059 = vsel %vm1123, %v3012, 0
    %v3062 = vsel %vm1123, %v3013, 0
    %v3065 = vsel %vm1123, %v3014, 0
    %v3068 = vsel %vm1123, %v3015, 0
    %v3071 = vsel %vm1123, %v3016, 0
    %v3074 = vsel %vm1123, %v3017, 0
    %v3077 = vsel %vm1123, %v3018, 0
    %v3080 = vsel %vm1123, %v3019, 0
    %v3083 = vsel %vm1123, %v3020, 0
    %v3086 = vsel %vm1123, %v3021, 0
    %v3089 = vsel %vm1123, %v3022, 0
    %v3092 = vsel %vm1123, %v3023, 0
    %v3095 = vsel %vm1123, %v3024, 0
    %3097 = vmatprep.subr.mxu0 0.0
    %3098 = vmatpush1.msra.mxu0 %v3026
    %3099 = vmatprep.subr.mxu0 0.0
    %3100 = vmatpush1.msra.mxu0 %v3027
    %3101 = vmatprep.subr.mxu0 0.0
    %3102 = vmatpush1.msra.mxu0 0.0
    %3103 = vmatprep.subr.mxu0 0.0
    %3104 = vmatpush1.msra.mxu0 0.0
    %3105 = vmatprep.subr.mxu0 0.0
    %3106 = vmatpush1.msra.mxu0 0.0
    %3107 = vmatprep.subr.mxu0 0.0
    %3108 = vmatpush1.msra.mxu0 0.0
    %3109 = vmatprep.subr.mxu0 0.0
    %3110 = vmatpush1.msra.mxu0 0.0
    %3111 = vmatprep.subr.mxu0 0.0
    %3112 = vmatpush1.msra.mxu0 0.0
    %3113 = vmatprep.subr.mxu0 0.0
    %3114 = vmatpush1.msra.mxu0 0.0
    %3115 = vmatprep.subr.mxu0 0.0
    %3116 = vmatpush1.msra.mxu0 0.0
    %3117 = vmatprep.subr.mxu0 0.0
    %3118 = vmatpush1.msra.mxu0 0.0
    %3119 = vmatprep.subr.mxu0 0.0
    %3120 = vmatpush1.msra.mxu0 0.0
    %3121 = vmatprep.subr.mxu0 0.0
    %3122 = vmatpush1.msra.mxu0 0.0
    %3123 = vmatprep.subr.mxu0 0.0
    %3124 = vmatpush1.msra.mxu0 0.0
    %3125 = vmatprep.subr.mxu0 0.0
    %3126 = vmatpush1.msra.mxu0 0.0
    %3127 = vmatprep.subr.mxu0 0.0
    %3128 = vmatpush1.msra.mxu0 0.0
    %3129 = vmatprep.subr.mxu0 0.0
    %3130 = vmatpush1.msra.mxu0 0.0
    %3131 = vmatprep.subr.mxu0 0.0
    %3132 = vmatpush1.msra.mxu0 0.0
    %3133 = vmatprep.subr.mxu0 0.0
    %3134 = vmatpush1.msra.mxu0 0.0
    %3135 = vmatprep.subr.mxu0 0.0
    %3136 = vmatpush1.msra.mxu0 0.0
    %3137 = vmatprep.subr.mxu0 0.0
    %3138 = vmatpush1.msra.mxu0 0.0
    %3139 = vmatprep.subr.mxu0 0.0
    %3140 = vmatpush1.msra.mxu0 0.0
    %3141 = vmatprep.subr.mxu0 0.0
    %3142 = vmatpush1.msra.mxu0 0.0
    %3143 = vmatprep.subr.mxu0 0.0
    %3144 = vmatpush1.msra.mxu0 0.0
    %3145 = vmatprep.subr.mxu0 0.0
    %3146 = vmatpush1.msra.mxu0 0.0
    %3147 = vmatprep.subr.mxu0 0.0
    %3148 = vmatpush1.msra.mxu0 0.0
    %3149 = vmatprep.subr.mxu0 0.0
    %3150 = vmatpush1.msra.mxu0 0.0
    %3151 = vmatprep.subr.mxu0 0.0
    %3152 = vmatpush1.msra.mxu0 0.0
    %3153 = vmatprep.subr.mxu0 0.0
    %3154 = vmatpush1.msra.mxu0 0.0
    %3155 = vmatprep.subr.mxu0 0.0
    %3156 = vmatpush1.msra.mxu0 0.0
    %3157 = vmatprep.subr.mxu0 0.0
    %3158 = vmatpush1.msra.mxu0 0.0
    %3159 = vmatprep.subr.mxu0 0.0
    %3160 = vmatpush1.msra.mxu0 0.0
    %3161 = vmatprep.mubr.f32.mxu0 0.0
    %3162 = vmatmul.mubr.f32.gmra.mrb[0].mxu0 %v3029
    %v3163 = vpop.f32.mrb[0].mxu0
    %v3164 = vadd.f32 0.0, %v3163
    %v3165 = vpop.f32.mrb[0].mxu0
    %3166 = vmatprep.mubr.f32.mxu0 0.0
    %3167 = vmatmul.mubr.f32.gmra.mrb[0].mxu0 %v3032
    %v3168 = vpop.f32.mrb[0].mxu0
    %v3169 = vadd.f32 0.0, %v3168
    %v3170 = vpop.f32.mrb[0].mxu0
    %3171 = vmatprep.mubr.f32.mxu0 0.0
    %3172 = vmatmul.mubr.f32.gmra.mrb[0].mxu0 %v3035
    %v3173 = vpop.f32.mrb[0].mxu0
    %v3174 = vadd.f32 0.0, %v3173
    %v3175 = vpop.f32.mrb[0].mxu0
    %3176 = vmatprep.mubr.f32.mxu0 0.0
    %3177 = vmatmul.mubr.f32.gmra.mrb[0].mxu0 %v3038
    %v3178 = vpop.f32.mrb[0].mxu0
    %v3179 = vadd.f32 0.0, %v3178
    %v3180 = vpop.f32.mrb[0].mxu0
    %3181 = vmatprep.mubr.f32.mxu0 0.0
    %3182 = vmatmul.mubr.f32.gmra.mrb[0].mxu0 %v3041
    %v3183 = vpop.f32.mrb[0].mxu0
    %v3184 = vadd.f32 0.0, %v3183
    %v3185 = vpop.f32.mrb[0].mxu0
    %3186 = vmatprep.mubr.f32.mxu0 0.0
    %3187 = vmatmul.mubr.f32.gmra.mrb[0].mxu0 %v3044
    %v3188 = vpop.f32.mrb[0].mxu0
    %v3189 = vadd.f32 0.0, %v3188
    %v3190 = vpop.f32.mrb[0].mxu0
    %3191 = vmatprep.mubr.f32.mxu0 0.0
    %3192 = vmatmul.mubr.f32.gmra.mrb[0].mxu0 %v3047
    %v3193 = vpop.f32.mrb[0].mxu0
    %v3194 = vadd.f32 0.0, %v3193
    %v3195 = vpop.f32.mrb[0].mxu0
    %3196 = vmatprep.mubr.f32.mxu0 0.0
    %3197 = vmatmul.mubr.f32.gmra.mrb[0].mxu0 %v3050
    %v3198 = vpop.f32.mrb[0].mxu0
    %v3199 = vadd.f32 0.0, %v3198
    %v3200 = vpop.f32.mrb[0].mxu0
    %3201 = vmatprep.mubr.f32.mxu0 0.0
    %3202 = vmatmul.mubr.f32.gmra.mrb[0].mxu0 %v3053
    %v3203 = vpop.f32.mrb[0].mxu0
    %v3204 = vadd.f32 0.0, %v3203
    %v3205 = vpop.f32.mrb[0].mxu0
    %3206 = vmatprep.mubr.f32.mxu0 0.0
    %3207 = vmatmul.mubr.f32.gmra.mrb[0].mxu0 %v3056
    %v3208 = vpop.f32.mrb[0].mxu0
    %v3209 = vadd.f32 0.0, %v3208
    %v3210 = vpop.f32.mrb[0].mxu0
    %3211 = vmatprep.mubr.f32.mxu0 0.0
    %3212 = vmatmul.mubr.f32.gmra.mrb[0].mxu0 %v3059
    %v3213 = vpop.f32.mrb[0].mxu0
    %v3214 = vadd.f32 0.0, %v3213
    %v3215 = vpop.f32.mrb[0].mxu0
    %3216 = vmatprep.mubr.f32.mxu0 0.0
    %3217 = vmatmul.mubr.f32.gmra.mrb[0].mxu0 %v3062
    %v3218 = vpop.f32.mrb[0].mxu0
    %v3219 = vadd.f32 0.0, %v3218
    %v3220 = vpop.f32.mrb[0].mxu0
    %3221 = vmatprep.mubr.f32.mxu0 0.0
    %3222 = vmatmul.mubr.f32.gmra.mrb[0].mxu0 %v3065
    %v3223 = vpop.f32.mrb[0].mxu0
    %v3224 = vadd.f32 0.0, %v3223
    %v3225 = vpop.f32.mrb[0].mxu0
    %3226 = vmatprep.mubr.f32.mxu0 0.0
    %3227 = vmatmul.mubr.f32.gmra.mrb[0].mxu0 %v3068
    %v3228 = vpop.f32.mrb[0].mxu0
    %v3229 = vadd.f32 0.0, %v3228
    %v3230 = vpop.f32.mrb[0].mxu0
    %3231 = vmatprep.mubr.f32.mxu0 0.0
    %3232 = vmatmul.mubr.f32.gmra.mrb[0].mxu0 %v3071
    %v3233 = vpop.f32.mrb[0].mxu0
    %v3234 = vadd.f32 0.0, %v3233
    %v3235 = vpop.f32.mrb[0].mxu0
    %3236 = vmatprep.mubr.f32.mxu0 0.0
    %3237 = vmatmul.mubr.f32.gmra.mrb[0].mxu0 %v3074
    %v3238 = vpop.f32.mrb[0].mxu0
    %v3239 = vadd.f32 0.0, %v3238
    %v3240 = vpop.f32.mrb[0].mxu0
    %3241 = vmatprep.mubr.f32.mxu0 0.0
    %3242 = vmatmul.mubr.f32.gmra.mrb[0].mxu0 %v3077
    %v3243 = vpop.f32.mrb[0].mxu0
    %v3244 = vadd.f32 0.0, %v3243
    %v3245 = vpop.f32.mrb[0].mxu0
    %3246 = vmatprep.mubr.f32.mxu0 0.0
    %3247 = vmatmul.mubr.f32.gmra.mrb[0].mxu0 %v3080
    %v3248 = vpop.f32.mrb[0].mxu0
    %v3249 = vadd.f32 0.0, %v3248
    %v3250 = vpop.f32.mrb[0].mxu0
    %3251 = vmatprep.mubr.f32.mxu0 0.0
    %3252 = vmatmul.mubr.f32.gmra.mrb[0].mxu0 %v3083
    %v3253 = vpop.f32.mrb[0].mxu0
    %v3254 = vadd.f32 0.0, %v3253
    %v3255 = vpop.f32.mrb[0].mxu0
    %3256 = vmatprep.mubr.f32.mxu0 0.0
    %3257 = vmatmul.mubr.f32.gmra.mrb[0].mxu0 %v3086
    %v3258 = vpop.f32.mrb[0].mxu0
    %v3259 = vadd.f32 0.0, %v3258
    %v3260 = vpop.f32.mrb[0].mxu0
    %3261 = vmatprep.mubr.f32.mxu0 0.0
    %3262 = vmatmul.mubr.f32.gmra.mrb[0].mxu0 %v3089
    %v3263 = vpop.f32.mrb[0].mxu0
    %v3264 = vadd.f32 0.0, %v3263
    %v3265 = vpop.f32.mrb[0].mxu0
    %3266 = vmatprep.mubr.f32.mxu0 0.0
    %3267 = vmatmul.mubr.f32.gmra.mrb[0].mxu0 %v3092
    %v3268 = vpop.f32.mrb[0].mxu0
    %v3269 = vadd.f32 0.0, %v3268
    %v3270 = vpop.f32.mrb[0].mxu0
    %3271 = vmatprep.mubr.f32.mxu0 0.0
    %3272 = vmatmul.mubr.f32.gmra.mrb[0].mxu0 %v3095
    %v3273 = vpop.f32.mrb[0].mxu0
    %v3274 = vadd.f32 0.0, %v3273
    %v3275 = vpop.f32.mrb[0].mxu0
    %3276 = vdwg.mxu0
    %v3277 = vadd.f32 %v2979, %v3164
    %v3278 = vadd.f32 %v2980, %v3169
    %v3279 = vadd.f32 %v2981, %v3174
    %v3280 = vadd.f32 %v2982, %v3179
    %v3281 = vadd.f32 %v2983, %v3184
    %v3282 = vadd.f32 %v2984, %v3189
    %v3283 = vadd.f32 %v2985, %v3194
    %v3284 = vadd.f32 %v2986, %v3199
    %v3285 = vadd.f32 %v2987, %v3204
    %v3286 = vadd.f32 %v2988, %v3209
    %v3287 = vadd.f32 %v2989, %v3214
    %v3288 = vadd.f32 %v2990, %v3219
    %v3289 = vadd.f32 %v2991, %v3224
    %v3290 = vadd.f32 %v2992, %v3229
    %v3291 = vadd.f32 %v2993, %v3234
    %v3292 = vadd.f32 %v2994, %v3239
    %v3293 = vadd.f32 %v2995, %v3244
    %v3294 = vadd.f32 %v2996, %v3249
    %v3295 = vadd.f32 %v2997, %v3254
    %v3296 = vadd.f32 %v2998, %v3259
    %v3297 = vadd.f32 %v2999, %v3264
    %v3298 = vadd.f32 %v3000, %v3269
    %v3299 = vadd.f32 %v3001, %v3274
    %v3300 = vld [vmem:[#allocation3 + $0x15] sm:$0xff]
    %v3301 = vld [vmem:[#allocation3 + $0x1d] sm:$0xff]
    %v3302 = vld [vmem:[#allocation3 + $0x25] sm:$0xff]
    %v3303 = vld [vmem:[#allocation3 + $0x2d] sm:$0xff]
    %v3304 = vld [vmem:[#allocation3 + $0x35] sm:$0xff]
    %v3305 = vld [vmem:[#allocation3 + $0x3d] sm:$0xff]
    %v3306 = vld [vmem:[#allocation3 + $0x45] sm:$0xff]
    %v3307 = vld [vmem:[#allocation3 + $0x4d] sm:$0xff]
    %v3308 = vld [vmem:[#allocation3 + $0x55] sm:$0xff]
    %v3309 = vld [vmem:[#allocation3 + $0x5d] sm:$0xff]
    %v3310 = vld [vmem:[#allocation3 + $0x65] sm:$0xff]
    %v3311 = vld [vmem:[#allocation3 + $0x6d] sm:$0xff]
    %v3312 = vld [vmem:[#allocation3 + $0x75] sm:$0xff]
    %v3313 = vld [vmem:[#allocation3 + $0x7d] sm:$0xff]
    %v3314 = vld [vmem:[#allocation3 + $0x85] sm:$0xff]
    %v3315 = vld [vmem:[#allocation3 + $0x8d] sm:$0xff]
    %v3316 = vld [vmem:[#allocation3 + $0x95] sm:$0xff]
    %v3317 = vld [vmem:[#allocation3 + $0x9d] sm:$0xff]
    %v3318 = vld [vmem:[#allocation3 + $0xa5] sm:$0xff]
    %v3319 = vld [vmem:[#allocation3 + $0xad] sm:$0xff]
    %v3320 = vld [vmem:[#allocation3 + $0xb5] sm:$0xff]
    %v3321 = vld [vmem:[#allocation3 + $0xbd] sm:$0xff]
    %v3322 = vld [vmem:[#allocation3 + $0xc5] sm:$0x3f]
    %s3323 = scalar_lea.vmem %s3, 112
    %v3324 = vld [vmem:[%s3323] sm:$0xff]
    %v3325 = vld [vmem:[%s3323 + $0x8] sm:$0xff]
    %v3327 = vsel %vm1123, %v3300, 0
    %v3330 = vsel %vm1123, %v3301, 0
    %v3333 = vsel %vm1123, %v3302, 0
    %v3336 = vsel %vm1123, %v3303, 0
    %v3339 = vsel %vm1123, %v3304, 0
    %v3342 = vsel %vm1123, %v3305, 0
    %v3345 = vsel %vm1123, %v3306, 0
    %v3348 = vsel %vm1123, %v3307, 0
    %v3351 = vsel %vm1123, %v3308, 0
    %v3354 = vsel %vm1123, %v3309, 0
    %v3357 = vsel %vm1123, %v3310, 0
    %v3360 = vsel %vm1123, %v3311, 0
    %v3363 = vsel %vm1123, %v3312, 0
    %v3366 = vsel %vm1123, %v3313, 0
    %v3369 = vsel %vm1123, %v3314, 0
    %v3372 = vsel %vm1123, %v3315, 0
    %v3375 = vsel %vm1123, %v3316, 0
    %v3378 = vsel %vm1123, %v3317, 0
    %v3381 = vsel %vm1123, %v3318, 0
    %v3384 = vsel %vm1123, %v3319, 0
    %v3387 = vsel %vm1123, %v3320, 0
    %v3390 = vsel %vm1123, %v3321, 0
    %v3393 = vsel %vm1123, %v3322, 0
    %3395 = vmatprep.subr.mxu0 0.0
    %3396 = vmatpush1.msra.mxu0 %v3324
    %3397 = vmatprep.subr.mxu0 0.0
    %3398 = vmatpush1.msra.mxu0 %v3325
    %3399 = vmatprep.subr.mxu0 0.0
    %3400 = vmatpush1.msra.mxu0 0.0
    %3401 = vmatprep.subr.mxu0 0.0
    %3402 = vmatpush1.msra.mxu0 0.0
    %3403 = vmatprep.subr.mxu0 0.0
    %3404 = vmatpush1.msra.mxu0 0.0
    %3405 = vmatprep.subr.mxu0 0.0
    %3406 = vmatpush1.msra.mxu0 0.0
    %3407 = vmatprep.subr.mxu0 0.0
    %3408 = vmatpush1.msra.mxu0 0.0
    %3409 = vmatprep.subr.mxu0 0.0
    %3410 = vmatpush1.msra.mxu0 0.0
    %3411 = vmatprep.subr.mxu0 0.0
    %3412 = vmatpush1.msra.mxu0 0.0
    %3413 = vmatprep.subr.mxu0 0.0
    %3414 = vmatpush1.msra.mxu0 0.0
    %3415 = vmatprep.subr.mxu0 0.0
    %3416 = vmatpush1.msra.mxu0 0.0
    %3417 = vmatprep.subr.mxu0 0.0
    %3418 = vmatpush1.msra.mxu0 0.0
    %3419 = vmatprep.subr.mxu0 0.0
    %3420 = vmatpush1.msra.mxu0 0.0
    %3421 = vmatprep.subr.mxu0 0.0
    %3422 = vmatpush1.msra.mxu0 0.0
    %3423 = vmatprep.subr.mxu0 0.0
    %3424 = vmatpush1.msra.mxu0 0.0
    %3425 = vmatprep.subr.mxu0 0.0
    %3426 = vmatpush1.msra.mxu0 0.0
    %3427 = vmatprep.subr.mxu0 0.0
    %3428 = vmatpush1.msra.mxu0 0.0
    %3429 = vmatprep.subr.mxu0 0.0
    %3430 = vmatpush1.msra.mxu0 0.0
    %3431 = vmatprep.subr.mxu0 0.0
    %3432 = vmatpush1.msra.mxu0 0.0
    %3433 = vmatprep.subr.mxu0 0.0
    %3434 = vmatpush1.msra.mxu0 0.0
    %3435 = vmatprep.subr.mxu0 0.0
    %3436 = vmatpush1.msra.mxu0 0.0
    %3437 = vmatprep.subr.mxu0 0.0
    %3438 = vmatpush1.msra.mxu0 0.0
    %3439 = vmatprep.subr.mxu0 0.0
    %3440 = vmatpush1.msra.mxu0 0.0
    %3441 = vmatprep.subr.mxu0 0.0
    %3442 = vmatpush1.msra.mxu0 0.0
    %3443 = vmatprep.subr.mxu0 0.0
    %3444 = vmatpush1.msra.mxu0 0.0
    %3445 = vmatprep.subr.mxu0 0.0
    %3446 = vmatpush1.msra.mxu0 0.0
    %3447 = vmatprep.subr.mxu0 0.0
    %3448 = vmatpush1.msra.mxu0 0.0
    %3449 = vmatprep.subr.mxu0 0.0
    %3450 = vmatpush1.msra.mxu0 0.0
    %3451 = vmatprep.subr.mxu0 0.0
    %3452 = vmatpush1.msra.mxu0 0.0
    %3453 = vmatprep.subr.mxu0 0.0
    %3454 = vmatpush1.msra.mxu0 0.0
    %3455 = vmatprep.subr.mxu0 0.0
    %3456 = vmatpush1.msra.mxu0 0.0
    %3457 = vmatprep.subr.mxu0 0.0
    %3458 = vmatpush1.msra.mxu0 0.0
    %3459 = vmatprep.mubr.f32.mxu0 0.0
    %3460 = vmatmul.mubr.f32.gmra.mrb[0].mxu0 %v3327
    %v3461 = vpop.f32.mrb[0].mxu0
    %v3462 = vadd.f32 0.0, %v3461
    %v3463 = vpop.f32.mrb[0].mxu0
    %3464 = vmatprep.mubr.f32.mxu0 0.0
    %3465 = vmatmul.mubr.f32.gmra.mrb[0].mxu0 %v3330
    %v3466 = vpop.f32.mrb[0].mxu0
    %v3467 = vadd.f32 0.0, %v3466
    %v3468 = vpop.f32.mrb[0].mxu0
    %3469 = vmatprep.mubr.f32.mxu0 0.0
    %3470 = vmatmul.mubr.f32.gmra.mrb[0].mxu0 %v3333
    %v3471 = vpop.f32.mrb[0].mxu0
    %v3472 = vadd.f32 0.0, %v3471
    %v3473 = vpop.f32.mrb[0].mxu0
    %3474 = vmatprep.mubr.f32.mxu0 0.0
    %3475 = vmatmul.mubr.f32.gmra.mrb[0].mxu0 %v3336
    %v3476 = vpop.f32.mrb[0].mxu0
    %v3477 = vadd.f32 0.0, %v3476
    %v3478 = vpop.f32.mrb[0].mxu0
    %3479 = vmatprep.mubr.f32.mxu0 0.0
    %3480 = vmatmul.mubr.f32.gmra.mrb[0].mxu0 %v3339
    %v3481 = vpop.f32.mrb[0].mxu0
    %v3482 = vadd.f32 0.0, %v3481
    %v3483 = vpop.f32.mrb[0].mxu0
    %3484 = vmatprep.mubr.f32.mxu0 0.0
    %3485 = vmatmul.mubr.f32.gmra.mrb[0].mxu0 %v3342
    %v3486 = vpop.f32.mrb[0].mxu0
    %v3487 = vadd.f32 0.0, %v3486
    %v3488 = vpop.f32.mrb[0].mxu0
    %3489 = vmatprep.mubr.f32.mxu0 0.0
    %3490 = vmatmul.mubr.f32.gmra.mrb[0].mxu0 %v3345
    %v3491 = vpop.f32.mrb[0].mxu0
    %v3492 = vadd.f32 0.0, %v3491
    %v3493 = vpop.f32.mrb[0].mxu0
    %3494 = vmatprep.mubr.f32.mxu0 0.0
    %3495 = vmatmul.mubr.f32.gmra.mrb[0].mxu0 %v3348
    %v3496 = vpop.f32.mrb[0].mxu0
    %v3497 = vadd.f32 0.0, %v3496
    %v3498 = vpop.f32.mrb[0].mxu0
    %3499 = vmatprep.mubr.f32.mxu0 0.0
    %3500 = vmatmul.mubr.f32.gmra.mrb[0].mxu0 %v3351
    %v3501 = vpop.f32.mrb[0].mxu0
    %v3502 = vadd.f32 0.0, %v3501
    %v3503 = vpop.f32.mrb[0].mxu0
    %3504 = vmatprep.mubr.f32.mxu0 0.0
    %3505 = vmatmul.mubr.f32.gmra.mrb[0].mxu0 %v3354
    %v3506 = vpop.f32.mrb[0].mxu0
    %v3507 = vadd.f32 0.0, %v3506
    %v3508 = vpop.f32.mrb[0].mxu0
    %3509 = vmatprep.mubr.f32.mxu0 0.0
    %3510 = vmatmul.mubr.f32.gmra.mrb[0].mxu0 %v3357
    %v3511 = vpop.f32.mrb[0].mxu0
    %v3512 = vadd.f32 0.0, %v3511
    %v3513 = vpop.f32.mrb[0].mxu0
    %3514 = vmatprep.mubr.f32.mxu0 0.0
    %3515 = vmatmul.mubr.f32.gmra.mrb[0].mxu0 %v3360
    %v3516 = vpop.f32.mrb[0].mxu0
    %v3517 = vadd.f32 0.0, %v3516
    %v3518 = vpop.f32.mrb[0].mxu0
    %3519 = vmatprep.mubr.f32.mxu0 0.0
    %3520 = vmatmul.mubr.f32.gmra.mrb[0].mxu0 %v3363
    %v3521 = vpop.f32.mrb[0].mxu0
    %v3522 = vadd.f32 0.0, %v3521
    %v3523 = vpop.f32.mrb[0].mxu0
    %3524 = vmatprep.mubr.f32.mxu0 0.0
    %3525 = vmatmul.mubr.f32.gmra.mrb[0].mxu0 %v3366
    %v3526 = vpop.f32.mrb[0].mxu0
    %v3527 = vadd.f32 0.0, %v3526
    %v3528 = vpop.f32.mrb[0].mxu0
    %3529 = vmatprep.mubr.f32.mxu0 0.0
    %3530 = vmatmul.mubr.f32.gmra.mrb[0].mxu0 %v3369
    %v3531 = vpop.f32.mrb[0].mxu0
    %v3532 = vadd.f32 0.0, %v3531
    %v3533 = vpop.f32.mrb[0].mxu0
    %3534 = vmatprep.mubr.f32.mxu0 0.0
    %3535 = vmatmul.mubr.f32.gmra.mrb[0].mxu0 %v3372
    %v3536 = vpop.f32.mrb[0].mxu0
    %v3537 = vadd.f32 0.0, %v3536
    %v3538 = vpop.f32.mrb[0].mxu0
    %3539 = vmatprep.mubr.f32.mxu0 0.0
    %3540 = vmatmul.mubr.f32.gmra.mrb[0].mxu0 %v3375
    %v3541 = vpop.f32.mrb[0].mxu0
    %v3542 = vadd.f32 0.0, %v3541
    %v3543 = vpop.f32.mrb[0].mxu0
    %3544 = vmatprep.mubr.f32.mxu0 0.0
    %3545 = vmatmul.mubr.f32.gmra.mrb[0].mxu0 %v3378
    %v3546 = vpop.f32.mrb[0].mxu0
    %v3547 = vadd.f32 0.0, %v3546
    %v3548 = vpop.f32.mrb[0].mxu0
    %3549 = vmatprep.mubr.f32.mxu0 0.0
    %3550 = vmatmul.mubr.f32.gmra.mrb[0].mxu0 %v3381
    %v3551 = vpop.f32.mrb[0].mxu0
    %v3552 = vadd.f32 0.0, %v3551
    %v3553 = vpop.f32.mrb[0].mxu0
    %3554 = vmatprep.mubr.f32.mxu0 0.0
    %3555 = vmatmul.mubr.f32.gmra.mrb[0].mxu0 %v3384
    %v3556 = vpop.f32.mrb[0].mxu0
    %v3557 = vadd.f32 0.0, %v3556
    %v3558 = vpop.f32.mrb[0].mxu0
    %3559 = vmatprep.mubr.f32.mxu0 0.0
    %3560 = vmatmul.mubr.f32.gmra.mrb[0].mxu0 %v3387
    %v3561 = vpop.f32.mrb[0].mxu0
    %v3562 = vadd.f32 0.0, %v3561
    %v3563 = vpop.f32.mrb[0].mxu0
    %3564 = vmatprep.mubr.f32.mxu0 0.0
    %3565 = vmatmul.mubr.f32.gmra.mrb[0].mxu0 %v3390
    %v3566 = vpop.f32.mrb[0].mxu0
    %v3567 = vadd.f32 0.0, %v3566
    %v3568 = vpop.f32.mrb[0].mxu0
    %3569 = vmatprep.mubr.f32.mxu0 0.0
    %3570 = vmatmul.mubr.f32.gmra.mrb[0].mxu0 %v3393
    %v3571 = vpop.f32.mrb[0].mxu0
    %v3572 = vadd.f32 0.0, %v3571
    %v3573 = vpop.f32.mrb[0].mxu0
    %3574 = vdwg.mxu0
    %v3575 = vadd.f32 %v3277, %v3462
    %v3576 = vadd.f32 %v3278, %v3467
    %v3577 = vadd.f32 %v3279, %v3472
    %v3578 = vadd.f32 %v3280, %v3477
    %v3579 = vadd.f32 %v3281, %v3482
    %v3580 = vadd.f32 %v3282, %v3487
    %v3581 = vadd.f32 %v3283, %v3492
    %v3582 = vadd.f32 %v3284, %v3497
    %v3583 = vadd.f32 %v3285, %v3502
    %v3584 = vadd.f32 %v3286, %v3507
    %v3585 = vadd.f32 %v3287, %v3512
    %v3586 = vadd.f32 %v3288, %v3517
    %v3587 = vadd.f32 %v3289, %v3522
    %v3588 = vadd.f32 %v3290, %v3527
    %v3589 = vadd.f32 %v3291, %v3532
    %v3590 = vadd.f32 %v3292, %v3537
    %v3591 = vadd.f32 %v3293, %v3542
    %v3592 = vadd.f32 %v3294, %v3547
    %v3593 = vadd.f32 %v3295, %v3552
    %v3594 = vadd.f32 %v3296, %v3557
    %v3595 = vadd.f32 %v3297, %v3562
    %v3596 = vadd.f32 %v3298, %v3567
    %v3597 = vadd.f32 %v3299, %v3572
    %v3598 = vld [vmem:[#allocation3 + $0x16] sm:$0xff]
    %v3599 = vld [vmem:[#allocation3 + $0x1e] sm:$0xff]
    %v3600 = vld [vmem:[#allocation3 + $0x26] sm:$0xff]
    %v3601 = vld [vmem:[#allocation3 + $0x2e] sm:$0xff]
    %v3602 = vld [vmem:[#allocation3 + $0x36] sm:$0xff]
    %v3603 = vld [vmem:[#allocation3 + $0x3e] sm:$0xff]
    %v3604 = vld [vmem:[#allocation3 + $0x46] sm:$0xff]
    %v3605 = vld [vmem:[#allocation3 + $0x4e] sm:$0xff]
    %v3606 = vld [vmem:[#allocation3 + $0x56] sm:$0xff]
    %v3607 = vld [vmem:[#allocation3 + $0x5e] sm:$0xff]
    %v3608 = vld [vmem:[#allocation3 + $0x66] sm:$0xff]
    %v3609 = vld [vmem:[#allocation3 + $0x6e] sm:$0xff]
    %v3610 = vld [vmem:[#allocation3 + $0x76] sm:$0xff]
    %v3611 = vld [vmem:[#allocation3 + $0x7e] sm:$0xff]
    %v3612 = vld [vmem:[#allocation3 + $0x86] sm:$0xff]
    %v3613 = vld [vmem:[#allocation3 + $0x8e] sm:$0xff]
    %v3614 = vld [vmem:[#allocation3 + $0x96] sm:$0xff]
    %v3615 = vld [vmem:[#allocation3 + $0x9e] sm:$0xff]
    %v3616 = vld [vmem:[#allocation3 + $0xa6] sm:$0xff]
    %v3617 = vld [vmem:[#allocation3 + $0xae] sm:$0xff]
    %v3618 = vld [vmem:[#allocation3 + $0xb6] sm:$0xff]
    %v3619 = vld [vmem:[#allocation3 + $0xbe] sm:$0xff]
    %v3620 = vld [vmem:[#allocation3 + $0xc6] sm:$0x3f]
    %s3621 = scalar_lea.vmem %s3, 128
    %v3622 = vld [vmem:[%s3621] sm:$0xff]
    %v3623 = vld [vmem:[%s3621 + $0x8] sm:$0xff]
    %v3625 = vsel %vm1123, %v3598, 0
    %v3628 = vsel %vm1123, %v3599, 0
    %v3631 = vsel %vm1123, %v3600, 0
    %v3634 = vsel %vm1123, %v3601, 0
    %v3637 = vsel %vm1123, %v3602, 0
    %v3640 = vsel %vm1123, %v3603, 0
    %v3643 = vsel %vm1123, %v3604, 0
    %v3646 = vsel %vm1123, %v3605, 0
    %v3649 = vsel %vm1123, %v3606, 0
    %v3652 = vsel %vm1123, %v3607, 0
    %v3655 = vsel %vm1123, %v3608, 0
    %v3658 = vsel %vm1123, %v3609, 0
    %v3661 = vsel %vm1123, %v3610, 0
    %v3664 = vsel %vm1123, %v3611, 0
    %v3667 = vsel %vm1123, %v3612, 0
    %v3670 = vsel %vm1123, %v3613, 0
    %v3673 = vsel %vm1123, %v3614, 0
    %v3676 = vsel %vm1123, %v3615, 0
    %v3679 = vsel %vm1123, %v3616, 0
    %v3682 = vsel %vm1123, %v3617, 0
    %v3685 = vsel %vm1123, %v3618, 0
    %v3688 = vsel %vm1123, %v3619, 0
    %v3691 = vsel %vm1123, %v3620, 0
    %3693 = vmatprep.subr.mxu0 0.0
    %3694 = vmatpush1.msra.mxu0 %v3622
    %3695 = vmatprep.subr.mxu0 0.0
    %3696 = vmatpush1.msra.mxu0 %v3623
    %3697 = vmatprep.subr.mxu0 0.0
    %3698 = vmatpush1.msra.mxu0 0.0
    %3699 = vmatprep.subr.mxu0 0.0
    %3700 = vmatpush1.msra.mxu0 0.0
    %3701 = vmatprep.subr.mxu0 0.0
    %3702 = vmatpush1.msra.mxu0 0.0
    %3703 = vmatprep.subr.mxu0 0.0
    %3704 = vmatpush1.msra.mxu0 0.0
    %3705 = vmatprep.subr.mxu0 0.0
    %3706 = vmatpush1.msra.mxu0 0.0
    %3707 = vmatprep.subr.mxu0 0.0
    %3708 = vmatpush1.msra.mxu0 0.0
    %3709 = vmatprep.subr.mxu0 0.0
    %3710 = vmatpush1.msra.mxu0 0.0
    %3711 = vmatprep.subr.mxu0 0.0
    %3712 = vmatpush1.msra.mxu0 0.0
    %3713 = vmatprep.subr.mxu0 0.0
    %3714 = vmatpush1.msra.mxu0 0.0
    %3715 = vmatprep.subr.mxu0 0.0
    %3716 = vmatpush1.msra.mxu0 0.0
    %3717 = vmatprep.subr.mxu0 0.0
    %3718 = vmatpush1.msra.mxu0 0.0
    %3719 = vmatprep.subr.mxu0 0.0
    %3720 = vmatpush1.msra.mxu0 0.0
    %3721 = vmatprep.subr.mxu0 0.0
    %3722 = vmatpush1.msra.mxu0 0.0
    %3723 = vmatprep.subr.mxu0 0.0
    %3724 = vmatpush1.msra.mxu0 0.0
    %3725 = vmatprep.subr.mxu0 0.0
    %3726 = vmatpush1.msra.mxu0 0.0
    %3727 = vmatprep.subr.mxu0 0.0
    %3728 = vmatpush1.msra.mxu0 0.0
    %3729 = vmatprep.subr.mxu0 0.0
    %3730 = vmatpush1.msra.mxu0 0.0
    %3731 = vmatprep.subr.mxu0 0.0
    %3732 = vmatpush1.msra.mxu0 0.0
    %3733 = vmatprep.subr.mxu0 0.0
    %3734 = vmatpush1.msra.mxu0 0.0
    %3735 = vmatprep.subr.mxu0 0.0
    %3736 = vmatpush1.msra.mxu0 0.0
    %3737 = vmatprep.subr.mxu0 0.0
    %3738 = vmatpush1.msra.mxu0 0.0
    %3739 = vmatprep.subr.mxu0 0.0
    %3740 = vmatpush1.msra.mxu0 0.0
    %3741 = vmatprep.subr.mxu0 0.0
    %3742 = vmatpush1.msra.mxu0 0.0
    %3743 = vmatprep.subr.mxu0 0.0
    %3744 = vmatpush1.msra.mxu0 0.0
    %3745 = vmatprep.subr.mxu0 0.0
    %3746 = vmatpush1.msra.mxu0 0.0
    %3747 = vmatprep.subr.mxu0 0.0
    %3748 = vmatpush1.msra.mxu0 0.0
    %3749 = vmatprep.subr.mxu0 0.0
    %3750 = vmatpush1.msra.mxu0 0.0
    %3751 = vmatprep.subr.mxu0 0.0
    %3752 = vmatpush1.msra.mxu0 0.0
    %3753 = vmatprep.subr.mxu0 0.0
    %3754 = vmatpush1.msra.mxu0 0.0
    %3755 = vmatprep.subr.mxu0 0.0
    %3756 = vmatpush1.msra.mxu0 0.0
    %3757 = vmatprep.mubr.f32.mxu0 0.0
    %3758 = vmatmul.mubr.f32.gmra.mrb[0].mxu0 %v3625
    %v3759 = vpop.f32.mrb[0].mxu0
    %v3760 = vadd.f32 0.0, %v3759
    %v3761 = vpop.f32.mrb[0].mxu0
    %3762 = vmatprep.mubr.f32.mxu0 0.0
    %3763 = vmatmul.mubr.f32.gmra.mrb[0].mxu0 %v3628
    %v3764 = vpop.f32.mrb[0].mxu0
    %v3765 = vadd.f32 0.0, %v3764
    %v3766 = vpop.f32.mrb[0].mxu0
    %3767 = vmatprep.mubr.f32.mxu0 0.0
    %3768 = vmatmul.mubr.f32.gmra.mrb[0].mxu0 %v3631
    %v3769 = vpop.f32.mrb[0].mxu0
    %v3770 = vadd.f32 0.0, %v3769
    %v3771 = vpop.f32.mrb[0].mxu0
    %3772 = vmatprep.mubr.f32.mxu0 0.0
    %3773 = vmatmul.mubr.f32.gmra.mrb[0].mxu0 %v3634
    %v3774 = vpop.f32.mrb[0].mxu0
    %v3775 = vadd.f32 0.0, %v3774
    %v3776 = vpop.f32.mrb[0].mxu0
    %3777 = vmatprep.mubr.f32.mxu0 0.0
    %3778 = vmatmul.mubr.f32.gmra.mrb[0].mxu0 %v3637
    %v3779 = vpop.f32.mrb[0].mxu0
    %v3780 = vadd.f32 0.0, %v3779
    %v3781 = vpop.f32.mrb[0].mxu0
    %3782 = vmatprep.mubr.f32.mxu0 0.0
    %3783 = vmatmul.mubr.f32.gmra.mrb[0].mxu0 %v3640
    %v3784 = vpop.f32.mrb[0].mxu0
    %v3785 = vadd.f32 0.0, %v3784
    %v3786 = vpop.f32.mrb[0].mxu0
    %3787 = vmatprep.mubr.f32.mxu0 0.0
    %3788 = vmatmul.mubr.f32.gmra.mrb[0].mxu0 %v3643
    %v3789 = vpop.f32.mrb[0].mxu0
    %v3790 = vadd.f32 0.0, %v3789
    %v3791 = vpop.f32.mrb[0].mxu0
    %3792 = vmatprep.mubr.f32.mxu0 0.0
    %3793 = vmatmul.mubr.f32.gmra.mrb[0].mxu0 %v3646
    %v3794 = vpop.f32.mrb[0].mxu0
    %v3795 = vadd.f32 0.0, %v3794
    %v3796 = vpop.f32.mrb[0].mxu0
    %3797 = vmatprep.mubr.f32.mxu0 0.0
    %3798 = vmatmul.mubr.f32.gmra.mrb[0].mxu0 %v3649
    %v3799 = vpop.f32.mrb[0].mxu0
    %v3800 = vadd.f32 0.0, %v3799
    %v3801 = vpop.f32.mrb[0].mxu0
    %3802 = vmatprep.mubr.f32.mxu0 0.0
    %3803 = vmatmul.mubr.f32.gmra.mrb[0].mxu0 %v3652
    %v3804 = vpop.f32.mrb[0].mxu0
    %v3805 = vadd.f32 0.0, %v3804
    %v3806 = vpop.f32.mrb[0].mxu0
    %3807 = vmatprep.mubr.f32.mxu0 0.0
    %3808 = vmatmul.mubr.f32.gmra.mrb[0].mxu0 %v3655
    %v3809 = vpop.f32.mrb[0].mxu0
    %v3810 = vadd.f32 0.0, %v3809
    %v3811 = vpop.f32.mrb[0].mxu0
    %3812 = vmatprep.mubr.f32.mxu0 0.0
    %3813 = vmatmul.mubr.f32.gmra.mrb[0].mxu0 %v3658
    %v3814 = vpop.f32.mrb[0].mxu0
    %v3815 = vadd.f32 0.0, %v3814
    %v3816 = vpop.f32.mrb[0].mxu0
    %3817 = vmatprep.mubr.f32.mxu0 0.0
    %3818 = vmatmul.mubr.f32.gmra.mrb[0].mxu0 %v3661
    %v3819 = vpop.f32.mrb[0].mxu0
    %v3820 = vadd.f32 0.0, %v3819
    %v3821 = vpop.f32.mrb[0].mxu0
    %3822 = vmatprep.mubr.f32.mxu0 0.0
    %3823 = vmatmul.mubr.f32.gmra.mrb[0].mxu0 %v3664
    %v3824 = vpop.f32.mrb[0].mxu0
    %v3825 = vadd.f32 0.0, %v3824
    %v3826 = vpop.f32.mrb[0].mxu0
    %3827 = vmatprep.mubr.f32.mxu0 0.0
    %3828 = vmatmul.mubr.f32.gmra.mrb[0].mxu0 %v3667
    %v3829 = vpop.f32.mrb[0].mxu0
    %v3830 = vadd.f32 0.0, %v3829
    %v3831 = vpop.f32.mrb[0].mxu0
    %3832 = vmatprep.mubr.f32.mxu0 0.0
    %3833 = vmatmul.mubr.f32.gmra.mrb[0].mxu0 %v3670
    %v3834 = vpop.f32.mrb[0].mxu0
    %v3835 = vadd.f32 0.0, %v3834
    %v3836 = vpop.f32.mrb[0].mxu0
    %3837 = vmatprep.mubr.f32.mxu0 0.0
    %3838 = vmatmul.mubr.f32.gmra.mrb[0].mxu0 %v3673
    %v3839 = vpop.f32.mrb[0].mxu0
    %v3840 = vadd.f32 0.0, %v3839
    %v3841 = vpop.f32.mrb[0].mxu0
    %3842 = vmatprep.mubr.f32.mxu0 0.0
    %3843 = vmatmul.mubr.f32.gmra.mrb[0].mxu0 %v3676
    %v3844 = vpop.f32.mrb[0].mxu0
    %v3845 = vadd.f32 0.0, %v3844
    %v3846 = vpop.f32.mrb[0].mxu0
    %3847 = vmatprep.mubr.f32.mxu0 0.0
    %3848 = vmatmul.mubr.f32.gmra.mrb[0].mxu0 %v3679
    %v3849 = vpop.f32.mrb[0].mxu0
    %v3850 = vadd.f32 0.0, %v3849
    %v3851 = vpop.f32.mrb[0].mxu0
    %3852 = vmatprep.mubr.f32.mxu0 0.0
    %3853 = vmatmul.mubr.f32.gmra.mrb[0].mxu0 %v3682
    %v3854 = vpop.f32.mrb[0].mxu0
    %v3855 = vadd.f32 0.0, %v3854
    %v3856 = vpop.f32.mrb[0].mxu0
    %3857 = vmatprep.mubr.f32.mxu0 0.0
    %3858 = vmatmul.mubr.f32.gmra.mrb[0].mxu0 %v3685
    %v3859 = vpop.f32.mrb[0].mxu0
    %v3860 = vadd.f32 0.0, %v3859
    %v3861 = vpop.f32.mrb[0].mxu0
    %3862 = vmatprep.mubr.f32.mxu0 0.0
    %3863 = vmatmul.mubr.f32.gmra.mrb[0].mxu0 %v3688
    %v3864 = vpop.f32.mrb[0].mxu0
    %v3865 = vadd.f32 0.0, %v3864
    %v3866 = vpop.f32.mrb[0].mxu0
    %3867 = vmatprep.mubr.f32.mxu0 0.0
    %3868 = vmatmul.mubr.f32.gmra.mrb[0].mxu0 %v3691
    %v3869 = vpop.f32.mrb[0].mxu0
    %v3870 = vadd.f32 0.0, %v3869
    %v3871 = vpop.f32.mrb[0].mxu0
    %3872 = vdwg.mxu0
    %v3873 = vadd.f32 %v3575, %v3760
    %v3874 = vadd.f32 %v3576, %v3765
    %v3875 = vadd.f32 %v3577, %v3770
    %v3876 = vadd.f32 %v3578, %v3775
    %v3877 = vadd.f32 %v3579, %v3780
    %v3878 = vadd.f32 %v3580, %v3785
    %v3879 = vadd.f32 %v3581, %v3790
    %v3880 = vadd.f32 %v3582, %v3795
    %v3881 = vadd.f32 %v3583, %v3800
    %v3882 = vadd.f32 %v3584, %v3805
    %v3883 = vadd.f32 %v3585, %v3810
    %v3884 = vadd.f32 %v3586, %v3815
    %v3885 = vadd.f32 %v3587, %v3820
    %v3886 = vadd.f32 %v3588, %v3825
    %v3887 = vadd.f32 %v3589, %v3830
    %v3888 = vadd.f32 %v3590, %v3835
    %v3889 = vadd.f32 %v3591, %v3840
    %v3890 = vadd.f32 %v3592, %v3845
    %v3891 = vadd.f32 %v3593, %v3850
    %v3892 = vadd.f32 %v3594, %v3855
    %v3893 = vadd.f32 %v3595, %v3860
    %v3894 = vadd.f32 %v3596, %v3865
    %v3895 = vadd.f32 %v3597, %v3870
    %v3896 = vld [vmem:[%s4] sm:$0x1]
    %v3898 = vlaneseq
    %v3899 = vshrl.u32 %v3898, 7
    %v3900 = vsub.s32 0, %v3899
    %v3901 = vrot.slane %v3896, %v3900
    %v3903 = vadd.f32 %v3873, %v3901
    %v3904 = vadd.f32 %v3874, %v3901
    %v3905 = vadd.f32 %v3875, %v3901
    %v3906 = vadd.f32 %v3876, %v3901
    %v3907 = vadd.f32 %v3877, %v3901
    %v3908 = vadd.f32 %v3878, %v3901
    %v3909 = vadd.f32 %v3879, %v3901
    %v3910 = vadd.f32 %v3880, %v3901
    %v3911 = vadd.f32 %v3881, %v3901
    %v3912 = vadd.f32 %v3882, %v3901
    %v3913 = vadd.f32 %v3883, %v3901
    %v3914 = vadd.f32 %v3884, %v3901
    %v3915 = vadd.f32 %v3885, %v3901
    %v3916 = vadd.f32 %v3886, %v3901
    %v3917 = vadd.f32 %v3887, %v3901
    %v3918 = vadd.f32 %v3888, %v3901
    %v3919 = vadd.f32 %v3889, %v3901
    %v3920 = vadd.f32 %v3890, %v3901
    %v3921 = vadd.f32 %v3891, %v3901
    %v3922 = vadd.f32 %v3892, %v3901
    %v3923 = vadd.f32 %v3893, %v3901
    %v3924 = vadd.f32 %v3894, %v3901
    %v3925 = vadd.f32 %v3895, %v3901
    %v3926 = vmax.f32 %v3903, 0.0
    %v3927 = vmax.f32 %v3904, 0.0
    %v3928 = vmax.f32 %v3905, 0.0
    %v3929 = vmax.f32 %v3906, 0.0
    %v3930 = vmax.f32 %v3907, 0.0
    %v3931 = vmax.f32 %v3908, 0.0
    %v3932 = vmax.f32 %v3909, 0.0
    %v3933 = vmax.f32 %v3910, 0.0
    %v3934 = vmax.f32 %v3911, 0.0
    %v3935 = vmax.f32 %v3912, 0.0
    %v3936 = vmax.f32 %v3913, 0.0
    %v3937 = vmax.f32 %v3914, 0.0
    %v3938 = vmax.f32 %v3915, 0.0
    %v3939 = vmax.f32 %v3916, 0.0
    %v3940 = vmax.f32 %v3917, 0.0
    %v3941 = vmax.f32 %v3918, 0.0
    %v3942 = vmax.f32 %v3919, 0.0
    %v3943 = vmax.f32 %v3920, 0.0
    %v3944 = vmax.f32 %v3921, 0.0
    %v3945 = vmax.f32 %v3922, 0.0
    %v3946 = vmax.f32 %v3923, 0.0
    %v3947 = vmax.f32 %v3924, 0.0
    %v3948 = vmax.f32 %v3925, 0.0
    %v3949 = vld [vmem:[%s5] sm:$0xf]
    %v3952 = vunpack.c.l.s4 1983009808
    %v3953 = vunpack.c.0.s8 %v3952
    %v3954 = vlaneseq
    %v3955 = vshrl.u32 %v3954, 7
    %v3956 = vsub.s32 %v3953, %v3955
    %v3957 = vrot.slane %v3949, %v3956
    %v3958 = vcombine.high %v3957, %v3957
    %vm3960 = vcmask 441344
    %v3961 = vsel %vm3960, %v3958, 0
    %vm3963 = vcmask 1045504
    %v3965 = vsel %vm3963, %v3948, 0
    %3967 = vmatprep.subr.mxu0 0.0
    %3968 = vmatpush1.msra.mxu0 %v3926
    %3969 = vmatprep.subr.mxu0 0.0
    %3970 = vmatpush1.msra.mxu0 %v3927
    %3971 = vmatprep.subr.mxu0 0.0
    %3972 = vmatpush1.msra.mxu0 %v3928
    %3973 = vmatprep.subr.mxu0 0.0
    %3974 = vmatpush1.msra.mxu0 %v3929
    %3975 = vmatprep.subr.mxu0 0.0
    %3976 = vmatpush1.msra.mxu0 %v3930
    %3977 = vmatprep.subr.mxu0 0.0
    %3978 = vmatpush1.msra.mxu0 %v3931
    %3979 = vmatprep.subr.mxu0 0.0
    %3980 = vmatpush1.msra.mxu0 %v3932
    %3981 = vmatprep.subr.mxu0 0.0
    %3982 = vmatpush1.msra.mxu0 %v3933
    %3983 = vmatprep.subr.mxu0 0.0
    %3984 = vmatpush1.msra.mxu0 %v3934
    %3985 = vmatprep.subr.mxu0 0.0
    %3986 = vmatpush1.msra.mxu0 %v3935
    %3987 = vmatprep.subr.mxu0 0.0
    %3988 = vmatpush1.msra.mxu0 %v3936
    %3989 = vmatprep.subr.mxu0 0.0
    %3990 = vmatpush1.msra.mxu0 %v3937
    %3991 = vmatprep.subr.mxu0 0.0
    %3992 = vmatpush1.msra.mxu0 %v3938
    %3993 = vmatprep.subr.mxu0 0.0
    %3994 = vmatpush1.msra.mxu0 %v3939
    %3995 = vmatprep.subr.mxu0 0.0
    %3996 = vmatpush1.msra.mxu0 %v3940
    %3997 = vmatprep.subr.mxu0 0.0
    %3998 = vmatpush1.msra.mxu0 %v3941
    %3999 = vmatprep.subr.mxu0 0.0
    %4000 = vmatpush1.msra.mxu0 %v3942
    %4001 = vmatprep.subr.mxu0 0.0
    %4002 = vmatpush1.msra.mxu0 %v3943
    %4003 = vmatprep.subr.mxu0 0.0
    %4004 = vmatpush1.msra.mxu0 %v3944
    %4005 = vmatprep.subr.mxu0 0.0
    %4006 = vmatpush1.msra.mxu0 %v3945
    %4007 = vmatprep.subr.mxu0 0.0
    %4008 = vmatpush1.msra.mxu0 %v3946
    %4009 = vmatprep.subr.mxu0 0.0
    %4010 = vmatpush1.msra.mxu0 %v3947
    %4011 = vmatprep.subr.mxu0 0.0
    %4012 = vmatpush1.msra.mxu0 %v3965
    %4013 = vmatprep.subr.mxu0 0.0
    %4014 = vmatpush1.msra.mxu0 0.0
    %4015 = vmatprep.subr.mxu0 0.0
    %4016 = vmatpush1.msra.mxu0 0.0
    %4017 = vmatprep.subr.mxu0 0.0
    %4018 = vmatpush1.msra.mxu0 0.0
    %4019 = vmatprep.subr.mxu0 0.0
    %4020 = vmatpush1.msra.mxu0 0.0
    %4021 = vmatprep.subr.mxu0 0.0
    %4022 = vmatpush1.msra.mxu0 0.0
    %4023 = vmatprep.subr.mxu0 0.0
    %4024 = vmatpush1.msra.mxu0 0.0
    %4025 = vmatprep.subr.mxu0 0.0
    %4026 = vmatpush1.msra.mxu0 0.0
    %4027 = vmatprep.subr.mxu0 0.0
    %4028 = vmatpush1.msra.mxu0 0.0
    %4029 = vmatprep.subr.mxu0 0.0
    %4030 = vmatpush1.msra.mxu0 0.0
    %4031 = vmatprep.mubr.f32.mxu0 %v3961
    %4032 = vmatmul.mubr.f32.gmra.mrb[0].mxu0 %v3957
    %v4033 = vpop.f32.mrb[0].mxu0
    %v4034 = vadd.f32 0.0, %v4033
    %v4035 = vpop.f32.mrb[0].mxu0
    %4036 = vdwg.mxu0
    %v4037 = vld [vmem:[%s6] sm:$0xff]
    %v4038 = vld [vmem:[%s6 + $0x8] sm:$0xff]
    %v4039 = vld [vmem:[%s6 + $0x10] sm:$0xff]
    %v4040 = vld [vmem:[%s6 + $0x18] sm:$0xff]
    %v4041 = vld [vmem:[%s7] sm:$0x1]
    %v4043 = vlaneseq
    %v4044 = vshrl.u32 %v4043, 7
    %v4045 = vsub.s32 0, %v4044
    %v4046 = vrot.slane %v4041, %v4045
    %vm4048 = vcmask 261120
    %v4050 = vsel %vm4048, %v4034, 0
    %4052 = vmatprep.subr.mxu0 0.0
    %4053 = vmatpush1.msra.mxu0 %v4037
    %4054 = vmatprep.subr.mxu0 0.0
    %4055 = vmatpush1.msra.mxu0 %v4038
    %4056 = vmatprep.subr.mxu0 0.0
    %4057 = vmatpush1.msra.mxu0 %v4039
    %4058 = vmatprep.subr.mxu0 0.0
    %4059 = vmatpush1.msra.mxu0 %v4040
    %4060 = vmatprep.subr.mxu0 0.0
    %4061 = vmatpush1.msra.mxu0 0.0
    %4062 = vmatprep.subr.mxu0 0.0
    %4063 = vmatpush1.msra.mxu0 0.0
    %4064 = vmatprep.subr.mxu0 0.0
    %4065 = vmatpush1.msra.mxu0 0.0
    %4066 = vmatprep.subr.mxu0 0.0
    %4067 = vmatpush1.msra.mxu0 0.0
    %4068 = vmatprep.subr.mxu0 0.0
    %4069 = vmatpush1.msra.mxu0 0.0
    %4070 = vmatprep.subr.mxu0 0.0
    %4071 = vmatpush1.msra.mxu0 0.0
    %4072 = vmatprep.subr.mxu0 0.0
    %4073 = vmatpush1.msra.mxu0 0.0
    %4074 = vmatprep.subr.mxu0 0.0
    %4075 = vmatpush1.msra.mxu0 0.0
    %4076 = vmatprep.subr.mxu0 0.0
    %4077 = vmatpush1.msra.mxu0 0.0
    %4078 = vmatprep.subr.mxu0 0.0
    %4079 = vmatpush1.msra.mxu0 0.0
    %4080 = vmatprep.subr.mxu0 0.0
    %4081 = vmatpush1.msra.mxu0 0.0
    %4082 = vmatprep.subr.mxu0 0.0
    %4083 = vmatpush1.msra.mxu0 0.0
    %4084 = vmatprep.subr.mxu0 0.0
    %4085 = vmatpush1.msra.mxu0 0.0
    %4086 = vmatprep.subr.mxu0 0.0
    %4087 = vmatpush1.msra.mxu0 0.0
    %4088 = vmatprep.subr.mxu0 0.0
    %4089 = vmatpush1.msra.mxu0 0.0
    %4090 = vmatprep.subr.mxu0 0.0
    %4091 = vmatpush1.msra.mxu0 0.0
    %4092 = vmatprep.subr.mxu0 0.0
    %4093 = vmatpush1.msra.mxu0 0.0
    %4094 = vmatprep.subr.mxu0 0.0
    %4095 = vmatpush1.msra.mxu0 0.0
    %4096 = vmatprep.subr.mxu0 0.0
    %4097 = vmatpush1.msra.mxu0 0.0
    %4098 = vmatprep.subr.mxu0 0.0
    %4099 = vmatpush1.msra.mxu0 0.0
    %4100 = vmatprep.subr.mxu0 0.0
    %4101 = vmatpush1.msra.mxu0 0.0
    %4102 = vmatprep.subr.mxu0 0.0
    %4103 = vmatpush1.msra.mxu0 0.0
    %4104 = vmatprep.subr.mxu0 0.0
    %4105 = vmatpush1.msra.mxu0 0.0
    %4106 = vmatprep.subr.mxu0 0.0
    %4107 = vmatpush1.msra.mxu0 0.0
    %4108 = vmatprep.subr.mxu0 0.0
    %4109 = vmatpush1.msra.mxu0 0.0
    %4110 = vmatprep.subr.mxu0 0.0
    %4111 = vmatpush1.msra.mxu0 0.0
    %4112 = vmatprep.subr.mxu0 0.0
    %4113 = vmatpush1.msra.mxu0 0.0
    %4114 = vmatprep.subr.mxu0 0.0
    %4115 = vmatpush1.msra.mxu0 0.0
    %4116 = vmatprep.mubr.f32.mxu0 0.0
    %4117 = vmatmul.mubr.f32.gmra.mrb[0].mxu0 %v4050
    %v4118 = vpop.f32.mrb[0].mxu0
    %v4119 = vadd.f32 %v4046, %v4118
    %v4120 = vpop.f32.mrb[0].mxu0
    %4121 = vdwg.mxu0
    %vm4122 = vcmask 254976
    %4123 = vst.msk [vmem:[#allocation4] sm:$0x3] %vm4122, %v4119
    // Predicated region
    $region34: #{tpu_custom_call.1} parent=1 // pred_check
      _
    $region35: #{tpu_custom_call.1} parent=1 // pred_check_branch
      %4125 = sbr.rel (0) target = $region37
    $region36: #{tpu_custom_call.1} parent=1 // pred_region
      %s4127 = ssub.s32 32, 32
      %4128 = vsyncadd [#allocation5], %s4127
      %s4130 = sshll.u32 [#allocation4], 4
      %s4131 = int_to_ptr.vmem [resolvable:$true] %s4130
      %4133 = dma.vmem_to_hbm [thread:$0]  %s4131, 32, %s8, [#allocation5]
    $region37: #{tpu_custom_call.1} parent=1 // pred_fallthru
      _
    // Predicated region
    $region38: #{tpu_custom_call.1} parent=1 // pred_check
      _
    $region39: #{tpu_custom_call.1} parent=1 // pred_check_branch
      %4135 = sbr.rel (0) target = $region41
    $region40: #{tpu_custom_call.1} parent=1 // pred_region
      %4136 = dma.done [#allocation5], 32
    $region41: #{tpu_custom_call.1} parent=1 // pred_fallthru
      _
    %4137 = vsyncpa [#allocation5], 1

</llo_original>
